<compile_context>
chip_gen: v6e
topology: v6e:2x2x1
jax: 0.10.0
libtpu: 0.0.40
codegen_flags: <defaults>
</compile_context>

<pallas_src>
import functools
import math
from typing import NamedTuple

import jax
import jax.numpy as jnp
from jax.experimental import pallas as pl
from jax.experimental.pallas import tpu as pltpu
from jax.scipy.linalg import block_diag


NEG_INF = -1e30
N_WEIGHTS = 10  # packed weight tensors passed to the kernel per layer


class CoreCfg(NamedTuple):
    ninp: int
    nhid: int
    nb: int
    bs: int
    topk: int
    att_out: int
    dk_in: int
    n_head: int
    dk_c: int


def _weight_shapes(cfg: CoreCfg):
    """Shapes/dtypes of the packed per-layer weights (order fixed)."""
    nb, bs, nhid = cfg.nb, cfg.bs, cfg.nhid
    dk_in, att_out, H, dk_c = cfg.dk_in, cfg.att_out, cfg.n_head, cfg.dk_c
    Hc = H * nb * dk_c
    hn = H * nb
    bf16, f32 = jnp.bfloat16, jnp.float32
    return (
        ((cfg.ninp, nb * (dk_in + att_out)), bf16),   # w_x   = [Wk tiled | Wv tiled]
        ((nhid, nb * dk_in + 4 * nhid), bf16),        # w_hx  = [Wq_in bd | Whh gate-major]
        ((nb * att_out, 4 * nhid), bf16),             # w_ih  (block-diag, gate-major)
        ((1, 4 * nhid), f32),                         # b_lstm (gate-major)
        ((nhid, 3 * Hc), bf16),                       # w_qkv (comm attention, head-major)
        ((Hc, nhid), bf16),                           # wo_c
        ((nb * dk_in, nb), bf16),                     # S_q   segment-sum (0/1)
        ((nb, nb * att_out), bf16),                   # E_a   block->att_out expand (0/1)
        ((nb, nhid), bf16),                           # E_h   block->nhid expand (0/1)
        ((hn, hn), f32),                              # comm head-block mask (0 / -inf)
    )


# ---------------------------------------------------------------------------
# Kernel body (pure function on VMEM-resident values).
# ---------------------------------------------------------------------------
def _core_step(cfg: CoreCfg, x, hx, cx, w):
    """One BlocksCore update; every stage is a 2-D lane-dense MXU matmul."""
    (w_x, w_hx, w_ih, b_lstm, w_qkv, wo_c, s_q, e_a, e_h, comm_mask) = w
    B = x.shape[0]
    nb, nhid = cfg.nb, cfg.nhid
    dk_in = cfg.dk_in
    H, dk_c = cfg.n_head, cfg.dk_c
    nq = nb * dk_in
    Hc = H * nb * dk_c
    hn = H * nb
    inv_sqrt_dk_in = 1.0 / math.sqrt(dk_in)
    inv_sqrt_dk_c = 1.0 / math.sqrt(dk_c)
    bf16 = jnp.bfloat16

    # ---- one x matmul: tiled key & value for every block's input-attention slot
    kv = jnp.dot(x.astype(bf16), w_x, preferred_element_type=jnp.float32)
    k_tiled = kv[:, :nq]                                  # (B, nb*dk_in)
    v_tiled = kv[:, nq:]                                  # (B, nb*att_out)

    # ---- one hx matmul: block queries + LSTM hidden-gate contribution
    hq = jnp.dot(hx.astype(bf16), w_hx, preferred_element_type=jnp.float32)
    q_all = hq[:, :nq]                                    # (B, nb*dk_in)
    gates_h = hq[:, nq:]                                  # (B, 4*nhid)

    # ---- input attention: 2-slot softmax over [null(0), input] == sigmoid(score).
    # scores via segment-sum matmul (stays 2-D, MXU).
    scores = jnp.dot((q_all * k_tiled).astype(bf16), s_q,
                     preferred_element_type=jnp.float32) * inv_sqrt_dk_in   # (B, nb)
    a_in = jax.nn.sigmoid(scores)

    # ---- top-k active blocks per example (largest attention on the real input)
    mask = jnp.zeros((B, nb), jnp.float32)
    work = scores
    col_idx = jax.lax.broadcasted_iota(jnp.int32, (B, nb), 1)
    for _ in range(cfg.topk):
        m = jnp.max(work, axis=1, keepdims=True)
        cand = jnp.where(work >= m, col_idx, nb)          # tie-break: lowest index
        first = jnp.min(cand, axis=1, keepdims=True)
        onehot = (col_idx == first).astype(jnp.float32)
        mask = mask + onehot
        work = jnp.where(onehot > 0, NEG_INF, work)

    # ---- per-block attended input (broadcast via 0/1 matmul, lane-dense 2-D)
    a_exp = jnp.dot(a_in.astype(bf16), e_a, preferred_element_type=jnp.float32)
    inp_all = a_exp * v_tiled                             # (B, nb*att_out)

    # ---- block-diagonal LSTM: one fused gate-major matmul
    gates = (jnp.dot(inp_all.astype(bf16), w_ih, preferred_element_type=jnp.float32)
             + gates_h + b_lstm)                          # (B, 4*nhid)
    i_g = jax.nn.sigmoid(gates[:, 0 * nhid:1 * nhid])
    f_g = jax.nn.sigmoid(gates[:, 1 * nhid:2 * nhid])
    g_g = jnp.tanh(gates[:, 2 * nhid:3 * nhid])
    o_g = jax.nn.sigmoid(gates[:, 3 * nhid:4 * nhid])
    c_new = f_g * cx + i_g * g_g                          # (B, nhid)
    h_new = o_g * jnp.tanh(c_new)                         # (B, nhid)

    # ---- communication attention: one fused QKV matmul, head-blocked softmax
    qkv = jnp.dot(h_new.astype(bf16), w_qkv, preferred_element_type=jnp.float32)
    q3 = qkv[:, 0 * Hc:1 * Hc].reshape(B, hn, dk_c).astype(bf16)
    k3 = qkv[:, 1 * Hc:2 * Hc].reshape(B, hn, dk_c).astype(bf16)
    v3 = qkv[:, 2 * Hc:3 * Hc].reshape(B, hn, dk_c).astype(bf16)
    s = jnp.einsum('bid,bjd->bij', q3, k3,
                   preferred_element_type=jnp.float32) * inv_sqrt_dk_c
    s = s + comm_mask[None, :, :]                         # -inf between different heads
    s = s - jnp.max(s, axis=-1, keepdims=True)
    e = jnp.exp(s)
    p = e * pl.reciprocal(jnp.sum(e, axis=-1, keepdims=True), approx=True)
    oh = jnp.einsum('bij,bjd->bid', p.astype(bf16), v3,
                    preferred_element_type=jnp.float32)   # (B, hn, dk_c)
    att = oh.reshape(B, Hc)
    h_comm = h_new + jnp.dot(att.astype(bf16), wo_c, preferred_element_type=jnp.float32)

    # ---- active blocks take the new state, inactive keep the old one
    mask_full = jnp.dot(mask.astype(bf16), e_h, preferred_element_type=jnp.float32)
    hx_out = mask_full * h_comm + (1.0 - mask_full) * hx
    cx_out = mask_full * c_new + (1.0 - mask_full) * cx
    return hx_out, cx_out


def make_blocks_kernel(cfgs):
    """Fused kernel: all layers + the whole time loop in one pallas_call."""
    L = len(cfgs)
    n_in = 2 + L * N_WEIGHTS

    def kernel(*refs):
        x_ref, st0_ref = refs[0], refs[1]
        w_refs = refs[2:n_in]
        out_ref = refs[n_in]
        scr = refs[n_in + 1:]                      # [hx_0, cx_0, hx_1, cx_1, ...]
        t = pl.program_id(1)
        t_last = pl.num_programs(1) - 1

        @pl.when(t == 0)
        def _init():                               # unpack initial state into VMEM scratch
            off = 0
            for l, cfg in enumerate(cfgs):
                nh = cfg.nhid
                scr[2 * l][...] = st0_ref[:, off:off + nh]
                scr[2 * l + 1][...] = st0_ref[:, off + nh:off + 2 * nh]
                off += 2 * nh

        inp = x_ref[...]
        for l, cfg in enumerate(cfgs):
            w = tuple(w_refs[l * N_WEIGHTS + i][...] for i in range(N_WEIGHTS))
            h_new, c_new = _core_step(cfg, inp, scr[2 * l][...], scr[2 * l + 1][...], w)
            scr[2 * l][...] = h_new
            scr[2 * l + 1][...] = c_new
            inp = h_new                            # feeds next layer, stays in VMEM

        @pl.when(t == t_last)
        def _store():                              # one lane-dense packed store
            out_ref[...] = jnp.concatenate([scr[i][...] for i in range(2 * L)], axis=1)

    return kernel


# ---------------------------------------------------------------------------
# pallas_call builder (cached per static config) + python wrappers.
# ---------------------------------------------------------------------------
def _cost_estimate(B, T, cfgs):
    flops, transc = 0, 0
    nbytes = 4 * T * B * cfgs[0].ninp + 2 * 4 * B * sum(2 * c.nhid for c in cfgs)
    for cfg in cfgs:
        nhid, nb = cfg.nhid, cfg.nb
        ninp, dk_in, att_out = cfg.ninp, cfg.dk_in, cfg.att_out
        H, dk_c = cfg.n_head, cfg.dk_c
        hn = H * nb
        Hc = hn * dk_c
        per_step = 2 * B * (ninp * nb * (dk_in + att_out)
                            + nhid * (nb * dk_in + 4 * nhid)
                            + nb * att_out * 4 * nhid
                            + nb * dk_in * nb
                            + nb * nb * att_out
                            + nhid * 3 * Hc
                            + 2 * hn * hn * dk_c
                            + Hc * nhid
                            + nb * nhid)
        flops += T * per_step
        transc += T * B * (nb + 5 * nhid + hn * hn)
        nbytes += sum(2 * math.prod(s) for s, _ in _weight_shapes(cfg))
    return int(flops), int(transc), int(nbytes)


@functools.lru_cache(maxsize=None)
def _build_blocks_call(B, T, cfgs):
    cfgs = tuple(cfgs)
    L = len(cfgs)
    SW = sum(2 * c.nhid for c in cfgs)
    ninp0 = cfgs[0].ninp

    # batch tiling: split a large batch across the two v7x TensorCores.
    bB = B // 2 if (B >= 16 and B % 16 == 0) else B
    nbb = B // bB

    kernel = make_blocks_kernel(cfgs)

    in_specs = [
        pl.BlockSpec((None, bB, ninp0), lambda b, t: (t, b, 0)),   # x sequence (per step)
        pl.BlockSpec((bB, SW), lambda b, t: (b, 0)),               # packed initial state
    ]
    for cfg in cfgs:
        for shape, _ in _weight_shapes(cfg):
            in_specs.append(pl.BlockSpec(shape, lambda b, t: (0, 0)))  # resident weights

    out_specs = pl.BlockSpec((bB, SW), lambda b, t: (b, 0))
    scratch = []
    for cfg in cfgs:
        scratch += [pltpu.VMEM((bB, cfg.nhid), jnp.float32),
                    pltpu.VMEM((bB, cfg.nhid), jnp.float32)]

    flops, transc, nbytes = _cost_estimate(B, T, cfgs)
    call = pl.pallas_call(
        kernel,
        out_shape=jax.ShapeDtypeStruct((B, SW), jnp.float32),
        grid_spec=pltpu.PrefetchScalarGridSpec(
            num_scalar_prefetch=0,
            grid=(nbb, T),
            in_specs=in_specs,
            out_specs=out_specs,
            scratch_shapes=scratch),
        compiler_params=pltpu.CompilerParams(
            dimension_semantics=("parallel", "arbitrary")),
        cost_estimate=pl.CostEstimate(flops=flops, transcendentals=transc,
                                      bytes_accessed=nbytes),
    )
    return jax.jit(call)


def blocks_forward_seq(layer_cfgs, layer_weights, x_seq, hx_list, cx_list):
    """Run a whole (T, B, ninp) sequence in one fused kernel launch; returns final state."""
    T, B, _ = x_seq.shape
    cfgs = tuple(layer_cfgs)
    call = _build_blocks_call(B, T, cfgs)
    state0 = jnp.concatenate(
        [jnp.concatenate([hx_list[l], cx_list[l]], axis=1) for l in range(len(cfgs))],
        axis=1)
    args = [x_seq, state0]
    for lw in layer_weights:
        args.extend(lw)
    out = call(*args)
    hx_new, cx_new, off = [], [], 0
    for cfg in cfgs:
        nh = cfg.nhid
        hx_new.append(out[:, off:off + nh])
        cx_new.append(out[:, off + nh:off + 2 * nh])
        off += 2 * nh
    return hx_new, cx_new


def blocks_forward(layer_cfgs, layer_weights, inp, hx_list, cx_list, step=0):
    """Equivalent of Blocks.forward for a single time step (T == 1)."""
    return blocks_forward_seq(layer_cfgs, layer_weights, inp[None], hx_list, cx_list)


# ---------------------------------------------------------------------------
# Parameter init (raw per-block weights) + host-side packing.
# ---------------------------------------------------------------------------
def init_layer_raw(key, ninp, nhid, nb, topk, *, dk_in=16, n_head=2, dk_c=8):
    bs = nhid // nb
    att_out = 2 * bs
    cfg = CoreCfg(ninp=ninp, nhid=nhid, nb=nb, bs=bs, topk=topk,
                  att_out=att_out, dk_in=dk_in, n_head=n_head, dk_c=dk_c)
    ks = jax.random.split(key, 10)
    s = 0.1
    raw = dict(
        wq_in=s * jax.random.normal(ks[0], (nb * bs, dk_in), jnp.float32),
        wk_in=s * jax.random.normal(ks[1], (ninp, dk_in), jnp.float32),
        wv_in=s * jax.random.normal(ks[2], (ninp, att_out), jnp.float32),
        w_ih=s * jax.random.normal(ks[3], (nb * att_out, 4 * bs), jnp.float32),
        w_hh=s * jax.random.normal(ks[4], (nb * bs, 4 * bs), jnp.float32),
        b_lstm=s * jax.random.normal(ks[5], (nb, 4 * bs), jnp.float32),
        wq_c=s * jax.random.normal(ks[6], (nb * bs, n_head * dk_c), jnp.float32),
        wk_c=s * jax.random.normal(ks[7], (nb * bs, n_head * dk_c), jnp.float32),
        wv_c=s * jax.random.normal(ks[8], (nb * bs, n_head * dk_c), jnp.float32),
        wo_c=s * jax.random.normal(ks[9], (n_head * dk_c, bs), jnp.float32),
    )
    return cfg, raw


def prepare_layer_weights(cfg, raw):
    """Pack raw per-block weights into fused block-diagonal / gate-major matrices."""
    nb, bs, nhid = cfg.nb, cfg.bs, cfg.nhid
    att_out, H, dk_c, dk_in = cfg.att_out, cfg.n_head, cfg.dk_c, cfg.dk_in

    # input attention: key/value tiled per block so one x-matmul serves all blocks
    w_x = jnp.concatenate([jnp.tile(raw['wk_in'], (1, nb)),
                           jnp.tile(raw['wv_in'], (1, nb))], axis=1)

    # block-diagonal queries + gate-major recurrent LSTM weight share one hx-matmul
    wq_in_bd = block_diag(*[raw['wq_in'][i * bs:(i + 1) * bs] for i in range(nb)])
    w_hh_bd = block_diag(*[raw['w_hh'][i * bs:(i + 1) * bs] for i in range(nb)])
    w_hh_bd = (w_hh_bd.reshape(nhid, nb, 4, bs).transpose(0, 2, 1, 3)
               .reshape(nhid, 4 * nhid))
    w_hx = jnp.concatenate([wq_in_bd, w_hh_bd], axis=1)

    w_ih_bd = block_diag(*[raw['w_ih'][i * att_out:(i + 1) * att_out] for i in range(nb)])
    w_ih_bd = (w_ih_bd.reshape(nb * att_out, nb, 4, bs).transpose(0, 2, 1, 3)
               .reshape(nb * att_out, 4 * nhid))
    b_flat = raw['b_lstm'].reshape(nb, 4, bs).transpose(1, 0, 2).reshape(1, 4 * nhid)

    # communication attention: block-diag, columns permuted (blk,head,d)->(head,blk,d)
    def comm_bd(w):
        bd = block_diag(*[w[i * bs:(i + 1) * bs] for i in range(nb)])
        return (bd.reshape(nhid, nb, H, dk_c).transpose(0, 2, 1, 3)
                .reshape(nhid, nb * H * dk_c))

    w_qkv = jnp.concatenate([comm_bd(raw['wq_c']), comm_bd(raw['wk_c']),
                             comm_bd(raw['wv_c'])], axis=1)
    wo_c_bd = jnp.concatenate(
        [block_diag(*([raw['wo_c'][h * dk_c:(h + 1) * dk_c]] * nb)) for h in range(H)],
        axis=0)                                                     # (H*nb*dk_c, nhid)

    # constant 0/1 helper matrices keep the gating math 2-D on the MXU
    s_q = (jnp.arange(nb * dk_in)[:, None] // dk_in ==
           jnp.arange(nb)[None, :]).astype(jnp.float32)
    e_a = (jnp.arange(nb)[:, None] ==
           jnp.arange(nb * att_out)[None, :] // att_out).astype(jnp.float32)
    e_h = (jnp.arange(nb)[:, None] ==
           jnp.arange(nhid)[None, :] // bs).astype(jnp.float32)
    hn = H * nb
    same_head = (jnp.arange(hn)[:, None] // nb == jnp.arange(hn)[None, :] // nb)
    comm_mask = jnp.where(same_head, 0.0, NEG_INF).astype(jnp.float32)

    packed = [w_x, w_hx, w_ih_bd, b_flat, w_qkv, wo_c_bd, s_q, e_a, e_h, comm_mask]
    out = []
    for arr, (shape, dtype) in zip(packed, _weight_shapes(cfg)):
        assert arr.shape == shape, (arr.shape, shape)
        out.append(arr.astype(dtype))
    return tuple(out)


# TODO(synk): `BlocksCore` source is not included in the prompt; its forward is
# reconstructed from the reference RIMs implementation (input attention + top-k
# gating + block LSTM + communication attention + active/inactive mixing).
# Dropout (identity in eval) and blocked_grad (backward-only) are omitted.
# TODO(synk): bf16 MXU operands introduce ~1e-3-level deviations vs. pure f32.

if __name__ == "__main__":
    # small config consistent with the module: 2 layers, nhid=[32,32],
    # num_blocks=[4,2], top_k=[2,1], ninp=16, batch=8, seq=8, do_gru=False
    B, T = 8, 8
    ninp = 16
    nhid = [32, 32]
    num_blocks = [4, 2]
    top_k = [2, 1]
    nlayers = 2

    key = jax.random.PRNGKey(0)
    k_params, k_x, k_h, k_c = jax.random.split(key, 4)

    cfgs, weights = [], []
    pk = jax.random.split(k_params, nlayers)
    for l in range(nlayers):
        lin = ninp if l == 0 else nhid[l - 1]
        cfg, raw = init_layer_raw(pk[l], lin, nhid[l], num_blocks[l], top_k[l])
        cfgs.append(cfg)
        weights.append(prepare_layer_weights(cfg, raw))
    cfgs = tuple(cfgs)

    x_seq = jax.random.normal(k_x, (T, B, ninp), jnp.float32)
    hks = jax.random.split(k_h, nlayers)
    cks = jax.random.split(k_c, nlayers)
    hx_list = [jax.random.normal(hks[l], (B, nhid[l]), jnp.float32) for l in range(nlayers)]
    cx_list = [jax.random.normal(cks[l], (B, nhid[l]), jnp.float32) for l in range(nlayers)]

    # single-step call == Blocks.forward semantics
    hx1, cx1 = blocks_forward(cfgs, weights, x_seq[0], hx_list, cx_list, step=0)
    # fused full-sequence call: the time loop is a grid axis inside the kernel
    hxT, cxT = blocks_forward_seq(cfgs, weights, x_seq, hx_list, cx_list)

    for t in hx1 + cx1 + hxT + cxT:
        jax.block_until_ready(t)

    assert all(h.shape == (B, nhid[l]) for l, h in enumerate(hx1))
    assert all(c.shape == (B, nhid[l]) for l, c in enumerate(cx1))
    assert all(bool(jnp.all(jnp.isfinite(a))) for a in hx1 + cx1 + hxT + cxT)
    print("KERNEL_OK")
</pallas_src>

<mosaic_0001>
module attributes {stable_mosaic.version = 11 : i64} {
  func.func @kernel(%arg0: i32, %arg1: i32, %arg2: memref<1x8x16xf32, #tpu.memory_space<vmem>>, %arg3: memref<8x128xf32, #tpu.memory_space<vmem>>, %arg4: memref<16x128xbf16, #tpu.memory_space<vmem>>, %arg5: memref<32x192xbf16, #tpu.memory_space<vmem>>, %arg6: memref<64x128xbf16, #tpu.memory_space<vmem>>, %arg7: memref<1x128xf32, #tpu.memory_space<vmem>>, %arg8: memref<32x192xbf16, #tpu.memory_space<vmem>>, %arg9: memref<64x32xbf16, #tpu.memory_space<vmem>>, %arg10: memref<64x4xbf16, #tpu.memory_space<vmem>>, %arg11: memref<4x64xbf16, #tpu.memory_space<vmem>>, %arg12: memref<4x32xbf16, #tpu.memory_space<vmem>>, %arg13: memref<8x8xf32, #tpu.memory_space<vmem>>, %arg14: memref<32x96xbf16, #tpu.memory_space<vmem>>, %arg15: memref<32x160xbf16, #tpu.memory_space<vmem>>, %arg16: memref<64x128xbf16, #tpu.memory_space<vmem>>, %arg17: memref<1x128xf32, #tpu.memory_space<vmem>>, %arg18: memref<32x96xbf16, #tpu.memory_space<vmem>>, %arg19: memref<32x32xbf16, #tpu.memory_space<vmem>>, %arg20: memref<32x2xbf16, #tpu.memory_space<vmem>>, %arg21: memref<2x64xbf16, #tpu.memory_space<vmem>>, %arg22: memref<2x32xbf16, #tpu.memory_space<vmem>>, %arg23: memref<4x4xf32, #tpu.memory_space<vmem>>, %arg24: memref<8x128xf32, #tpu.memory_space<vmem>>, %arg25: memref<8x32xf32, #tpu.memory_space<vmem>>, %arg26: memref<8x32xf32, #tpu.memory_space<vmem>>, %arg27: memref<8x32xf32, #tpu.memory_space<vmem>>, %arg28: memref<8x32xf32, #tpu.memory_space<vmem>>) attributes {dimension_semantics = [#tpu.dimension_semantics<parallel>, #tpu.dimension_semantics<arbitrary>], iteration_bounds = array<i64: 1, 1>, scalar_prefetch = 0 : i64, scratch_operands = 4 : i64, tpu.core_type = #tpu.core_type<tc>, window_params = [{transform_indices = @transform_0, window_bounds = array<i64: 1, 8, 16>}, {transform_indices = @transform_1, window_bounds = array<i64: 8, 128>}, {pipeline_mode = #tpu.pipeline_mode<synchronous>, transform_indices = @transform_2, window_bounds = array<i64: 16, 128>}, {pipeline_mode = #tpu.pipeline_mode<synchronous>, transform_indices = @transform_3, window_bounds = array<i64: 32, 192>}, {pipeline_mode = #tpu.pipeline_mode<synchronous>, transform_indices = @transform_4, window_bounds = array<i64: 64, 128>}, {pipeline_mode = #tpu.pipeline_mode<synchronous>, transform_indices = @transform_5, window_bounds = array<i64: 1, 128>}, {pipeline_mode = #tpu.pipeline_mode<synchronous>, transform_indices = @transform_6, window_bounds = array<i64: 32, 192>}, {pipeline_mode = #tpu.pipeline_mode<synchronous>, transform_indices = @transform_7, window_bounds = array<i64: 64, 32>}, {pipeline_mode = #tpu.pipeline_mode<synchronous>, transform_indices = @transform_8, window_bounds = array<i64: 64, 4>}, {pipeline_mode = #tpu.pipeline_mode<synchronous>, transform_indices = @transform_9, window_bounds = array<i64: 4, 64>}, {pipeline_mode = #tpu.pipeline_mode<synchronous>, transform_indices = @transform_10, window_bounds = array<i64: 4, 32>}, {pipeline_mode = #tpu.pipeline_mode<synchronous>, transform_indices = @transform_11, window_bounds = array<i64: 8, 8>}, {pipeline_mode = #tpu.pipeline_mode<synchronous>, transform_indices = @transform_12, window_bounds = array<i64: 32, 96>}, {pipeline_mode = #tpu.pipeline_mode<synchronous>, transform_indices = @transform_13, window_bounds = array<i64: 32, 160>}, {pipeline_mode = #tpu.pipeline_mode<synchronous>, transform_indices = @transform_14, window_bounds = array<i64: 64, 128>}, {pipeline_mode = #tpu.pipeline_mode<synchronous>, transform_indices = @transform_15, window_bounds = array<i64: 1, 128>}, {pipeline_mode = #tpu.pipeline_mode<synchronous>, transform_indices = @transform_16, window_bounds = array<i64: 32, 96>}, {pipeline_mode = #tpu.pipeline_mode<synchronous>, transform_indices = @transform_17, window_bounds = array<i64: 32, 32>}, {pipeline_mode = #tpu.pipeline_mode<synchronous>, transform_indices = @transform_18, window_bounds = array<i64: 32, 2>}, {pipeline_mode = #tpu.pipeline_mode<synchronous>, transform_indices = @transform_19, window_bounds = array<i64: 2, 64>}, {pipeline_mode = #tpu.pipeline_mode<synchronous>, transform_indices = @transform_20, window_bounds = array<i64: 2, 32>}, {pipeline_mode = #tpu.pipeline_mode<synchronous>, transform_indices = @transform_21, window_bounds = array<i64: 4, 4>}, {transform_indices = @transform_22, window_bounds = array<i64: 8, 128>}]} {
    %c0_i32 = arith.constant 0 : i32
    %0 = arith.cmpi eq, %arg1, %c0_i32 : i32
    %1 = arith.extui %0 : i1 to i32
    %c0_i32_0 = arith.constant 0 : i32
    %2 = arith.cmpi ne, %1, %c0_i32_0 : i32
    scf.if %2 {
      %c0_111 = arith.constant 0 : index
      %c0_112 = arith.constant 0 : index
      %275 = vector.load %arg3[%c0_111, %c0_112] : memref<8x128xf32, #tpu.memory_space<vmem>>, vector<8x32xf32>
      %c0_113 = arith.constant 0 : index
      %c0_114 = arith.constant 0 : index
      %276 = vector.load %arg25[%c0_113, %c0_114] : memref<8x32xf32, #tpu.memory_space<vmem>>, vector<8x32xf32>
      tpu.vector_store %arg25[%c0_113, %c0_114], %275 {strides = array<i32>} : memref<8x32xf32, #tpu.memory_space<vmem>>, vector<8x32xf32>,
      %c0_115 = arith.constant 0 : index
      %c32 = arith.constant 32 : index
      %277 = vector.load %arg3[%c0_115, %c32] : memref<8x128xf32, #tpu.memory_space<vmem>>, vector<8x32xf32>
      %c0_116 = arith.constant 0 : index
      %c0_117 = arith.constant 0 : index
      %278 = vector.load %arg26[%c0_116, %c0_117] : memref<8x32xf32, #tpu.memory_space<vmem>>, vector<8x32xf32>
      tpu.vector_store %arg26[%c0_116, %c0_117], %277 {strides = array<i32>} : memref<8x32xf32, #tpu.memory_space<vmem>>, vector<8x32xf32>,
      %c0_118 = arith.constant 0 : index
      %c64 = arith.constant 64 : index
      %279 = vector.load %arg3[%c0_118, %c64] : memref<8x128xf32, #tpu.memory_space<vmem>>, vector<8x32xf32>
      %c0_119 = arith.constant 0 : index
      %c0_120 = arith.constant 0 : index
      %280 = vector.load %arg27[%c0_119, %c0_120] : memref<8x32xf32, #tpu.memory_space<vmem>>, vector<8x32xf32>
      tpu.vector_store %arg27[%c0_119, %c0_120], %279 {strides = array<i32>} : memref<8x32xf32, #tpu.memory_space<vmem>>, vector<8x32xf32>,
      %c0_121 = arith.constant 0 : index
      %c96 = arith.constant 96 : index
      %281 = vector.load %arg3[%c0_121, %c96] : memref<8x128xf32, #tpu.memory_space<vmem>>, vector<8x32xf32>
      %c0_122 = arith.constant 0 : index
      %c0_123 = arith.constant 0 : index
      %282 = vector.load %arg28[%c0_122, %c0_123] : memref<8x32xf32, #tpu.memory_space<vmem>>, vector<8x32xf32>
      tpu.vector_store %arg28[%c0_122, %c0_123], %281 {strides = array<i32>} : memref<8x32xf32, #tpu.memory_space<vmem>>, vector<8x32xf32>,
    } else {
    }
    %c0 = arith.constant 0 : index
    %c0_1 = arith.constant 0 : index
    %c0_2 = arith.constant 0 : index
    %3 = vector.load %arg2[%c0, %c0_1, %c0_2] : memref<1x8x16xf32, #tpu.memory_space<vmem>>, vector<1x8x16xf32>
    %4 = vector.shape_cast %3 : vector<1x8x16xf32> to vector<8x16xf32>
    %c0_3 = arith.constant 0 : index
    %c0_4 = arith.constant 0 : index
    %5 = vector.load %arg4[%c0_3, %c0_4] : memref<16x128xbf16, #tpu.memory_space<vmem>>, vector<16x128xbf16>
    %c0_5 = arith.constant 0 : index
    %c0_6 = arith.constant 0 : index
    %6 = vector.load %arg5[%c0_5, %c0_6] : memref<32x192xbf16, #tpu.memory_space<vmem>>, vector<32x192xbf16>
    %c0_7 = arith.constant 0 : index
    %c0_8 = arith.constant 0 : index
    %7 = vector.load %arg6[%c0_7, %c0_8] : memref<64x128xbf16, #tpu.memory_space<vmem>>, vector<64x128xbf16>
    %c0_9 = arith.constant 0 : index
    %c0_10 = arith.constant 0 : index
    %8 = vector.load %arg7[%c0_9, %c0_10] : memref<1x128xf32, #tpu.memory_space<vmem>>, vector<1x128xf32>
    %c0_11 = arith.constant 0 : index
    %c0_12 = arith.constant 0 : index
    %9 = vector.load %arg8[%c0_11, %c0_12] : memref<32x192xbf16, #tpu.memory_space<vmem>>, vector<32x192xbf16>
    %c0_13 = arith.constant 0 : index
    %c0_14 = arith.constant 0 : index
    %10 = vector.load %arg9[%c0_13, %c0_14] : memref<64x32xbf16, #tpu.memory_space<vmem>>, vector<64x32xbf16>
    %c0_15 = arith.constant 0 : index
    %c0_16 = arith.constant 0 : index
    %11 = vector.load %arg10[%c0_15, %c0_16] : memref<64x4xbf16, #tpu.memory_space<vmem>>, vector<64x4xbf16>
    %c0_17 = arith.constant 0 : index
    %c0_18 = arith.constant 0 : index
    %12 = vector.load %arg11[%c0_17, %c0_18] : memref<4x64xbf16, #tpu.memory_space<vmem>>, vector<4x64xbf16>
    %c0_19 = arith.constant 0 : index
    %c0_20 = arith.constant 0 : index
    %13 = vector.load %arg12[%c0_19, %c0_20] : memref<4x32xbf16, #tpu.memory_space<vmem>>, vector<4x32xbf16>
    %c0_21 = arith.constant 0 : index
    %c0_22 = arith.constant 0 : index
    %14 = vector.load %arg13[%c0_21, %c0_22] : memref<8x8xf32, #tpu.memory_space<vmem>>, vector<8x8xf32>
    %c0_23 = arith.constant 0 : index
    %c0_24 = arith.constant 0 : index
    %15 = vector.load %arg25[%c0_23, %c0_24] : memref<8x32xf32, #tpu.memory_space<vmem>>, vector<8x32xf32>
    %c0_25 = arith.constant 0 : index
    %c0_26 = arith.constant 0 : index
    %16 = vector.load %arg26[%c0_25, %c0_26] : memref<8x32xf32, #tpu.memory_space<vmem>>, vector<8x32xf32>
    %17 = arith.truncf %4 : vector<8x16xf32> to vector<8x16xbf16>
    %cst = arith.constant dense<0.000000e+00> : vector<8x128xf32>
    %18 = tpu.matmul %17, %5, %cst {dimension_numbers = #tpu.dot_dimension_numbers<[1], [0], [0], [1], [0, 0, 1, 1], [], []>} : vector<8x16xbf16>, vector<16x128xbf16>, vector<8x128xf32> -> vector<8x128xf32>
    %19 = vector.extract_strided_slice %18 {offsets = [0, 0], sizes = [8, 64], strides = [1, 1]} : vector<8x128xf32> to vector<8x64xf32>
    %20 = vector.extract_strided_slice %18 {offsets = [0, 64], sizes = [8, 64], strides = [1, 1]} : vector<8x128xf32> to vector<8x64xf32>
    %21 = arith.truncf %15 : vector<8x32xf32> to vector<8x32xbf16>
    %cst_27 = arith.constant dense<0.000000e+00> : vector<8x192xf32>
    %22 = tpu.matmul %21, %6, %cst_27 {dimension_numbers = #tpu.dot_dimension_numbers<[1], [0], [0], [1], [0, 0, 1, 1], [], []>} : vector<8x32xbf16>, vector<32x192xbf16>, vector<8x192xf32> -> vector<8x192xf32>
    %23 = vector.extract_strided_slice %22 {offsets = [0, 0], sizes = [8, 64], strides = [1, 1]} : vector<8x192xf32> to vector<8x64xf32>
    %24 = vector.extract_strided_slice %22 {offsets = [0, 64], sizes = [8, 128], strides = [1, 1]} : vector<8x192xf32> to vector<8x128xf32>
    %25 = arith.mulf %23, %19 : vector<8x64xf32>
    %26 = arith.truncf %25 : vector<8x64xf32> to vector<8x64xbf16>
    %cst_28 = arith.constant dense<0.000000e+00> : vector<8x4xf32>
    %27 = tpu.matmul %26, %11, %cst_28 {dimension_numbers = #tpu.dot_dimension_numbers<[1], [0], [0], [1], [0, 0, 1, 1], [], []>} : vector<8x64xbf16>, vector<64x4xbf16>, vector<8x4xf32> -> vector<8x4xf32>
    %cst_29 = arith.constant 2.500000e-01 : f32
    %28 = vector.broadcast %cst_29 : f32 to vector<8x4xf32>
    %29 = arith.mulf %27, %28 : vector<8x4xf32>
    %30 = arith.negf %29 : vector<8x4xf32>
    %31 = math.exp %30 : vector<8x4xf32>
    %cst_30 = arith.constant 1.000000e+00 : f32
    %32 = vector.broadcast %cst_30 : f32 to vector<8x4xf32>
    %33 = arith.addf %32, %31 : vector<8x4xf32>
    %34 = arith.divf %32, %33 : vector<8x4xf32>
    %cst_31 = arith.constant 0.000000e+00 : f32
    %35 = vector.broadcast %cst_31 : f32 to vector<8x4xf32>
    %36 = tpu.iota {dimensions = array<i32: 1>} : vector<8x4xi32>
    %cst_32 = arith.constant dense<0xFF800000> : vector<8xf32>
    %37 = vector.multi_reduction <maximumf>, %29, %cst_32 [1] : vector<8x4xf32> to vector<8xf32>
    %38 = vector.shape_cast %37 : vector<8xf32> to vector<8x1xf32>
    %39 = vector.broadcast %38 : vector<8x1xf32> to vector<8x4xf32>
    %40 = arith.cmpf oge, %29, %39 : vector<8x4xf32>
    %c4_i32 = arith.constant 4 : i32
    %41 = vector.broadcast %c4_i32 : i32 to vector<8x4xi32>
    %42 = arith.select %40, %36, %41 : vector<8x4xi1>, vector<8x4xi32>
    %cst_33 = arith.constant dense<2147483647> : vector<8xi32>
    %43 = vector.multi_reduction <minsi>, %42, %cst_33 [1] : vector<8x4xi32> to vector<8xi32>
    %44 = vector.shape_cast %43 : vector<8xi32> to vector<8x1xi32>
    %45 = vector.broadcast %44 : vector<8x1xi32> to vector<8x4xi32>
    %46 = arith.cmpi eq, %36, %45 : vector<8x4xi32>
    %47 = arith.extui %46 : vector<8x4xi1> to vector<8x4xi32>
    %48 = arith.sitofp %47 : vector<8x4xi32> to vector<8x4xf32>
    %49 = arith.addf %35, %48 : vector<8x4xf32>
    %cst_34 = arith.constant 0.000000e+00 : f32
    %50 = vector.broadcast %cst_34 : f32 to vector<8x4xf32>
    %51 = arith.cmpf ogt, %48, %50 : vector<8x4xf32>
    %cst_35 = arith.constant -1.000000e+30 : f32
    %52 = vector.broadcast %cst_35 : f32 to vector<8x4xf32>
    %53 = arith.select %51, %52, %29 : vector<8x4xi1>, vector<8x4xf32>
    %cst_36 = arith.constant dense<0xFF800000> : vector<8xf32>
    %54 = vector.multi_reduction <maximumf>, %53, %cst_36 [1] : vector<8x4xf32> to vector<8xf32>
    %55 = vector.shape_cast %54 : vector<8xf32> to vector<8x1xf32>
    %56 = vector.broadcast %55 : vector<8x1xf32> to vector<8x4xf32>
    %57 = arith.cmpf oge, %53, %56 : vector<8x4xf32>
    %c4_i32_37 = arith.constant 4 : i32
    %58 = vector.broadcast %c4_i32_37 : i32 to vector<8x4xi32>
    %59 = arith.select %57, %36, %58 : vector<8x4xi1>, vector<8x4xi32>
    %cst_38 = arith.constant dense<2147483647> : vector<8xi32>
    %60 = vector.multi_reduction <minsi>, %59, %cst_38 [1] : vector<8x4xi32> to vector<8xi32>
    %61 = vector.shape_cast %60 : vector<8xi32> to vector<8x1xi32>
    %62 = vector.broadcast %61 : vector<8x1xi32> to vector<8x4xi32>
    %63 = arith.cmpi eq, %36, %62 : vector<8x4xi32>
    %64 = arith.extui %63 : vector<8x4xi1> to vector<8x4xi32>
    %65 = arith.sitofp %64 : vector<8x4xi32> to vector<8x4xf32>
    %66 = arith.addf %49, %65 : vector<8x4xf32>
    %67 = arith.truncf %34 : vector<8x4xf32> to vector<8x4xbf16>
    %cst_39 = arith.constant dense<0.000000e+00> : vector<8x64xf32>
    %68 = tpu.matmul %67, %12, %cst_39 {dimension_numbers = #tpu.dot_dimension_numbers<[1], [0], [0], [1], [0, 0, 1, 1], [], []>} : vector<8x4xbf16>, vector<4x64xbf16>, vector<8x64xf32> -> vector<8x64xf32>
    %69 = arith.mulf %68, %20 : vector<8x64xf32>
    %70 = arith.truncf %69 : vector<8x64xf32> to vector<8x64xbf16>
    %cst_40 = arith.constant dense<0.000000e+00> : vector<8x128xf32>
    %71 = tpu.matmul %70, %7, %cst_40 {dimension_numbers = #tpu.dot_dimension_numbers<[1], [0], [0], [1], [0, 0, 1, 1], [], []>} : vector<8x64xbf16>, vector<64x128xbf16>, vector<8x128xf32> -> vector<8x128xf32>
    %72 = arith.addf %71, %24 : vector<8x128xf32>
    %73 = vector.broadcast %8 : vector<1x128xf32> to vector<8x128xf32>
    %74 = arith.addf %72, %73 : vector<8x128xf32>
    %75 = vector.extract_strided_slice %74 {offsets = [0, 0], sizes = [8, 32], strides = [1, 1]} : vector<8x128xf32> to vector<8x32xf32>
    %76 = arith.negf %75 : vector<8x32xf32>
    %77 = math.exp %76 : vector<8x32xf32>
    %cst_41 = arith.constant 1.000000e+00 : f32
    %78 = vector.broadcast %cst_41 : f32 to vector<8x32xf32>
    %79 = arith.addf %78, %77 : vector<8x32xf32>
    %80 = arith.divf %78, %79 : vector<8x32xf32>
    %81 = vector.extract_strided_slice %74 {offsets = [0, 32], sizes = [8, 32], strides = [1, 1]} : vector<8x128xf32> to vector<8x32xf32>
    %82 = arith.negf %81 : vector<8x32xf32>
    %83 = math.exp %82 : vector<8x32xf32>
    %cst_42 = arith.constant 1.000000e+00 : f32
    %84 = vector.broadcast %cst_42 : f32 to vector<8x32xf32>
    %85 = arith.addf %84, %83 : vector<8x32xf32>
    %86 = arith.divf %84, %85 : vector<8x32xf32>
    %87 = vector.extract_strided_slice %74 {offsets = [0, 64], sizes = [8, 32], strides = [1, 1]} : vector<8x128xf32> to vector<8x32xf32>
    %88 = math.tanh %87 : vector<8x32xf32>
    %89 = vector.extract_strided_slice %74 {offsets = [0, 96], sizes = [8, 32], strides = [1, 1]} : vector<8x128xf32> to vector<8x32xf32>
    %90 = arith.negf %89 : vector<8x32xf32>
    %91 = math.exp %90 : vector<8x32xf32>
    %cst_43 = arith.constant 1.000000e+00 : f32
    %92 = vector.broadcast %cst_43 : f32 to vector<8x32xf32>
    %93 = arith.addf %92, %91 : vector<8x32xf32>
    %94 = arith.divf %92, %93 : vector<8x32xf32>
    %95 = arith.mulf %86, %16 : vector<8x32xf32>
    %96 = arith.mulf %80, %88 : vector<8x32xf32>
    %97 = arith.addf %95, %96 : vector<8x32xf32>
    %98 = math.tanh %97 : vector<8x32xf32>
    %99 = arith.mulf %94, %98 : vector<8x32xf32>
    %100 = arith.truncf %99 : vector<8x32xf32> to vector<8x32xbf16>
    %cst_44 = arith.constant dense<0.000000e+00> : vector<8x192xf32>
    %101 = tpu.matmul %100, %9, %cst_44 {dimension_numbers = #tpu.dot_dimension_numbers<[1], [0], [0], [1], [0, 0, 1, 1], [], []>} : vector<8x32xbf16>, vector<32x192xbf16>, vector<8x192xf32> -> vector<8x192xf32>
    %102 = vector.extract_strided_slice %101 {offsets = [0, 0], sizes = [8, 64], strides = [1, 1]} : vector<8x192xf32> to vector<8x64xf32>
    %103 = vector.shape_cast %102 : vector<8x64xf32> to vector<8x8x8xf32>
    %104 = arith.truncf %103 : vector<8x8x8xf32> to vector<8x8x8xbf16>
    %105 = vector.extract_strided_slice %101 {offsets = [0, 64], sizes = [8, 64], strides = [1, 1]} : vector<8x192xf32> to vector<8x64xf32>
    %106 = vector.shape_cast %105 : vector<8x64xf32> to vector<8x8x8xf32>
    %107 = arith.truncf %106 : vector<8x8x8xf32> to vector<8x8x8xbf16>
    %108 = vector.extract_strided_slice %101 {offsets = [0, 128], sizes = [8, 64], strides = [1, 1]} : vector<8x192xf32> to vector<8x64xf32>
    %109 = vector.shape_cast %108 : vector<8x64xf32> to vector<8x8x8xf32>
    %110 = arith.truncf %109 : vector<8x8x8xf32> to vector<8x8x8xbf16>
    "tpu.trace_start"() <{level = 10 : i32, message = "bid,bjd->bij"}> : () -> ()
    %cst_45 = arith.constant dense<0.000000e+00> : vector<8x8x8xf32>
    %111 = tpu.matmul %104, %107, %cst_45 {dimension_numbers = #tpu.dot_dimension_numbers<[2], [2], [1], [1], [0, 0, 0, 1, 1, 1], [0], [0]>} : vector<8x8x8xbf16>, vector<8x8x8xbf16>, vector<8x8x8xf32> -> vector<8x8x8xf32>
    "tpu.trace_stop"() : () -> ()
    %cst_46 = arith.constant 0.353553385 : f32
    %112 = vector.broadcast %cst_46 : f32 to vector<8x8x8xf32>
    %113 = arith.mulf %111, %112 : vector<8x8x8xf32>
    %114 = vector.shape_cast %14 : vector<8x8xf32> to vector<1x8x8xf32>
    %115 = vector.broadcast %114 : vector<1x8x8xf32> to vector<8x8x8xf32>
    %116 = arith.addf %113, %115 : vector<8x8x8xf32>
    %cst_47 = arith.constant dense<0xFF800000> : vector<8x8xf32>
    %117 = vector.multi_reduction <maximumf>, %116, %cst_47 [2] : vector<8x8x8xf32> to vector<8x8xf32>
    %118 = vector.shape_cast %117 : vector<8x8xf32> to vector<8x8x1xf32>
    %119 = vector.broadcast %118 : vector<8x8x1xf32> to vector<8x8x8xf32>
    %120 = arith.subf %116, %119 : vector<8x8x8xf32>
    %121 = math.exp %120 : vector<8x8x8xf32>
    %cst_48 = arith.constant dense<0.000000e+00> : vector<8x8xf32>
    %122 = vector.multi_reduction <add>, %121, %cst_48 [2] : vector<8x8x8xf32> to vector<8x8xf32>
    %123 = vector.shape_cast %122 : vector<8x8xf32> to vector<8x8x1xf32>
    %124 = tpu.reciprocal %123 {approx = true} : vector<8x8x1xf32> -> vector<8x8x1xf32>
    %125 = vector.broadcast %124 : vector<8x8x1xf32> to vector<8x8x8xf32>
    %126 = arith.mulf %121, %125 : vector<8x8x8xf32>
    %127 = arith.truncf %126 : vector<8x8x8xf32> to vector<8x8x8xbf16>
    "tpu.trace_start"() <{level = 10 : i32, message = "bij,bjd->bid"}> : () -> ()
    %cst_49 = arith.constant dense<0.000000e+00> : vector<8x8x8xf32>
    %128 = tpu.matmul %127, %110, %cst_49 {dimension_numbers = #tpu.dot_dimension_numbers<[2], [1], [1], [2], [0, 0, 0, 1, 1, 2], [0], [0]>} : vector<8x8x8xbf16>, vector<8x8x8xbf16>, vector<8x8x8xf32> -> vector<8x8x8xf32>
    "tpu.trace_stop"() : () -> ()
    %129 = vector.shape_cast %128 : vector<8x8x8xf32> to vector<8x64xf32>
    %130 = arith.truncf %129 : vector<8x64xf32> to vector<8x64xbf16>
    %cst_50 = arith.constant dense<0.000000e+00> : vector<8x32xf32>
    %131 = tpu.matmul %130, %10, %cst_50 {dimension_numbers = #tpu.dot_dimension_numbers<[1], [0], [0], [1], [0, 0, 1, 1], [], []>} : vector<8x64xbf16>, vector<64x32xbf16>, vector<8x32xf32> -> vector<8x32xf32>
    %132 = arith.addf %99, %131 : vector<8x32xf32>
    %133 = arith.truncf %66 : vector<8x4xf32> to vector<8x4xbf16>
    %cst_51 = arith.constant dense<0.000000e+00> : vector<8x32xf32>
    %134 = tpu.matmul %133, %13, %cst_51 {dimension_numbers = #tpu.dot_dimension_numbers<[1], [0], [0], [1], [0, 0, 1, 1], [], []>} : vector<8x4xbf16>, vector<4x32xbf16>, vector<8x32xf32> -> vector<8x32xf32>
    %135 = arith.mulf %134, %132 : vector<8x32xf32>
    %cst_52 = arith.constant 1.000000e+00 : f32
    %136 = vector.broadcast %cst_52 : f32 to vector<8x32xf32>
    %137 = arith.subf %136, %134 : vector<8x32xf32>
    %138 = arith.mulf %137, %15 : vector<8x32xf32>
    %139 = arith.addf %135, %138 : vector<8x32xf32>
    %140 = arith.mulf %134, %97 : vector<8x32xf32>
    %cst_53 = arith.constant 1.000000e+00 : f32
    %141 = vector.broadcast %cst_53 : f32 to vector<8x32xf32>
    %142 = arith.subf %141, %134 : vector<8x32xf32>
    %143 = arith.mulf %142, %16 : vector<8x32xf32>
    %144 = arith.addf %140, %143 : vector<8x32xf32>
    %c0_54 = arith.constant 0 : index
    %c0_55 = arith.constant 0 : index
    %145 = vector.load %arg25[%c0_54, %c0_55] : memref<8x32xf32, #tpu.memory_space<vmem>>, vector<8x32xf32>
    tpu.vector_store %arg25[%c0_54, %c0_55], %139 {strides = array<i32>} : memref<8x32xf32, #tpu.memory_space<vmem>>, vector<8x32xf32>,
    %c0_56 = arith.constant 0 : index
    %c0_57 = arith.constant 0 : index
    %146 = vector.load %arg26[%c0_56, %c0_57] : memref<8x32xf32, #tpu.memory_space<vmem>>, vector<8x32xf32>
    tpu.vector_store %arg26[%c0_56, %c0_57], %144 {strides = array<i32>} : memref<8x32xf32, #tpu.memory_space<vmem>>, vector<8x32xf32>,
    %c0_58 = arith.constant 0 : index
    %c0_59 = arith.constant 0 : index
    %147 = vector.load %arg14[%c0_58, %c0_59] : memref<32x96xbf16, #tpu.memory_space<vmem>>, vector<32x96xbf16>
    %c0_60 = arith.constant 0 : index
    %c0_61 = arith.constant 0 : index
    %148 = vector.load %arg15[%c0_60, %c0_61] : memref<32x160xbf16, #tpu.memory_space<vmem>>, vector<32x160xbf16>
    %c0_62 = arith.constant 0 : index
    %c0_63 = arith.constant 0 : index
    %149 = vector.load %arg16[%c0_62, %c0_63] : memref<64x128xbf16, #tpu.memory_space<vmem>>, vector<64x128xbf16>
    %c0_64 = arith.constant 0 : index
    %c0_65 = arith.constant 0 : index
    %150 = vector.load %arg17[%c0_64, %c0_65] : memref<1x128xf32, #tpu.memory_space<vmem>>, vector<1x128xf32>
    %c0_66 = arith.constant 0 : index
    %c0_67 = arith.constant 0 : index
    %151 = vector.load %arg18[%c0_66, %c0_67] : memref<32x96xbf16, #tpu.memory_space<vmem>>, vector<32x96xbf16>
    %c0_68 = arith.constant 0 : index
    %c0_69 = arith.constant 0 : index
    %152 = vector.load %arg19[%c0_68, %c0_69] : memref<32x32xbf16, #tpu.memory_space<vmem>>, vector<32x32xbf16>
    %c0_70 = arith.constant 0 : index
    %c0_71 = arith.constant 0 : index
    %153 = vector.load %arg20[%c0_70, %c0_71] : memref<32x2xbf16, #tpu.memory_space<vmem>>, vector<32x2xbf16>
    %c0_72 = arith.constant 0 : index
    %c0_73 = arith.constant 0 : index
    %154 = vector.load %arg21[%c0_72, %c0_73] : memref<2x64xbf16, #tpu.memory_space<vmem>>, vector<2x64xbf16>
    %c0_74 = arith.constant 0 : index
    %c0_75 = arith.constant 0 : index
    %155 = vector.load %arg22[%c0_74, %c0_75] : memref<2x32xbf16, #tpu.memory_space<vmem>>, vector<2x32xbf16>
    %c0_76 = arith.constant 0 : index
    %c0_77 = arith.constant 0 : index
    %156 = vector.load %arg23[%c0_76, %c0_77] : memref<4x4xf32, #tpu.memory_space<vmem>>, vector<4x4xf32>
    %c0_78 = arith.constant 0 : index
    %c0_79 = arith.constant 0 : index
    %157 = vector.load %arg27[%c0_78, %c0_79] : memref<8x32xf32, #tpu.memory_space<vmem>>, vector<8x32xf32>
    %c0_80 = arith.constant 0 : index
    %c0_81 = arith.constant 0 : index
    %158 = vector.load %arg28[%c0_80, %c0_81] : memref<8x32xf32, #tpu.memory_space<vmem>>, vector<8x32xf32>
    %159 = arith.truncf %139 : vector<8x32xf32> to vector<8x32xbf16>
    %cst_82 = arith.constant dense<0.000000e+00> : vector<8x96xf32>
    %160 = tpu.matmul %159, %147, %cst_82 {dimension_numbers = #tpu.dot_dimension_numbers<[1], [0], [0], [1], [0, 0, 1, 1], [], []>} : vector<8x32xbf16>, vector<32x96xbf16>, vector<8x96xf32> -> vector<8x96xf32>
    %161 = vector.extract_strided_slice %160 {offsets = [0, 0], sizes = [8, 32], strides = [1, 1]} : vector<8x96xf32> to vector<8x32xf32>
    %162 = vector.extract_strided_slice %160 {offsets = [0, 32], sizes = [8, 64], strides = [1, 1]} : vector<8x96xf32> to vector<8x64xf32>
    %163 = arith.truncf %157 : vector<8x32xf32> to vector<8x32xbf16>
    %cst_83 = arith.constant dense<0.000000e+00> : vector<8x160xf32>
    %164 = tpu.matmul %163, %148, %cst_83 {dimension_numbers = #tpu.dot_dimension_numbers<[1], [0], [0], [1], [0, 0, 1, 1], [], []>} : vector<8x32xbf16>, vector<32x160xbf16>, vector<8x160xf32> -> vector<8x160xf32>
    %165 = vector.extract_strided_slice %164 {offsets = [0, 0], sizes = [8, 32], strides = [1, 1]} : vector<8x160xf32> to vector<8x32xf32>
    %166 = vector.extract_strided_slice %164 {offsets = [0, 32], sizes = [8, 128], strides = [1, 1]} : vector<8x160xf32> to vector<8x128xf32>
    %167 = arith.mulf %165, %161 : vector<8x32xf32>
    %168 = arith.truncf %167 : vector<8x32xf32> to vector<8x32xbf16>
    %cst_84 = arith.constant dense<0.000000e+00> : vector<8x2xf32>
    %169 = tpu.matmul %168, %153, %cst_84 {dimension_numbers = #tpu.dot_dimension_numbers<[1], [0], [0], [1], [0, 0, 1, 1], [], []>} : vector<8x32xbf16>, vector<32x2xbf16>, vector<8x2xf32> -> vector<8x2xf32>
    %cst_85 = arith.constant 2.500000e-01 : f32
    %170 = vector.broadcast %cst_85 : f32 to vector<8x2xf32>
    %171 = arith.mulf %169, %170 : vector<8x2xf32>
    %172 = arith.negf %171 : vector<8x2xf32>
    %173 = math.exp %172 : vector<8x2xf32>
    %cst_86 = arith.constant 1.000000e+00 : f32
    %174 = vector.broadcast %cst_86 : f32 to vector<8x2xf32>
    %175 = arith.addf %174, %173 : vector<8x2xf32>
    %176 = arith.divf %174, %175 : vector<8x2xf32>
    %cst_87 = arith.constant 0.000000e+00 : f32
    %177 = vector.broadcast %cst_87 : f32 to vector<8x2xf32>
    %178 = tpu.iota {dimensions = array<i32: 1>} : vector<8x2xi32>
    %cst_88 = arith.constant dense<0xFF800000> : vector<8xf32>
    %179 = vector.multi_reduction <maximumf>, %171, %cst_88 [1] : vector<8x2xf32> to vector<8xf32>
    %180 = vector.shape_cast %179 : vector<8xf32> to vector<8x1xf32>
    %181 = vector.broadcast %180 : vector<8x1xf32> to vector<8x2xf32>
    %182 = arith.cmpf oge, %171, %181 : vector<8x2xf32>
    %c2_i32 = arith.constant 2 : i32
    %183 = vector.broadcast %c2_i32 : i32 to vector<8x2xi32>
    %184 = arith.select %182, %178, %183 : vector<8x2xi1>, vector<8x2xi32>
    %cst_89 = arith.constant dense<2147483647> : vector<8xi32>
    %185 = vector.multi_reduction <minsi>, %184, %cst_89 [1] : vector<8x2xi32> to vector<8xi32>
    %186 = vector.shape_cast %185 : vector<8xi32> to vector<8x1xi32>
    %187 = vector.broadcast %186 : vector<8x1xi32> to vector<8x2xi32>
    %188 = arith.cmpi eq, %178, %187 : vector<8x2xi32>
    %189 = arith.extui %188 : vector<8x2xi1> to vector<8x2xi32>
    %190 = arith.sitofp %189 : vector<8x2xi32> to vector<8x2xf32>
    %191 = arith.addf %177, %190 : vector<8x2xf32>
    %192 = arith.truncf %176 : vector<8x2xf32> to vector<8x2xbf16>
    %cst_90 = arith.constant dense<0.000000e+00> : vector<8x64xf32>
    %193 = tpu.matmul %192, %154, %cst_90 {dimension_numbers = #tpu.dot_dimension_numbers<[1], [0], [0], [1], [0, 0, 1, 1], [], []>} : vector<8x2xbf16>, vector<2x64xbf16>, vector<8x64xf32> -> vector<8x64xf32>
    %194 = arith.mulf %193, %162 : vector<8x64xf32>
    %195 = arith.truncf %194 : vector<8x64xf32> to vector<8x64xbf16>
    %cst_91 = arith.constant dense<0.000000e+00> : vector<8x128xf32>
    %196 = tpu.matmul %195, %149, %cst_91 {dimension_numbers = #tpu.dot_dimension_numbers<[1], [0], [0], [1], [0, 0, 1, 1], [], []>} : vector<8x64xbf16>, vector<64x128xbf16>, vector<8x128xf32> -> vector<8x128xf32>
    %197 = arith.addf %196, %166 : vector<8x128xf32>
    %198 = vector.broadcast %150 : vector<1x128xf32> to vector<8x128xf32>
    %199 = arith.addf %197, %198 : vector<8x128xf32>
    %200 = vector.extract_strided_slice %199 {offsets = [0, 0], sizes = [8, 32], strides = [1, 1]} : vector<8x128xf32> to vector<8x32xf32>
    %201 = arith.negf %200 : vector<8x32xf32>
    %202 = math.exp %201 : vector<8x32xf32>
    %cst_92 = arith.constant 1.000000e+00 : f32
    %203 = vector.broadcast %cst_92 : f32 to vector<8x32xf32>
    %204 = arith.addf %203, %202 : vector<8x32xf32>
    %205 = arith.divf %203, %204 : vector<8x32xf32>
    %206 = vector.extract_strided_slice %199 {offsets = [0, 32], sizes = [8, 32], strides = [1, 1]} : vector<8x128xf32> to vector<8x32xf32>
    %207 = arith.negf %206 : vector<8x32xf32>
    %208 = math.exp %207 : vector<8x32xf32>
    %cst_93 = arith.constant 1.000000e+00 : f32
    %209 = vector.broadcast %cst_93 : f32 to vector<8x32xf32>
    %210 = arith.addf %209, %208 : vector<8x32xf32>
    %211 = arith.divf %209, %210 : vector<8x32xf32>
    %212 = vector.extract_strided_slice %199 {offsets = [0, 64], sizes = [8, 32], strides = [1, 1]} : vector<8x128xf32> to vector<8x32xf32>
    %213 = math.tanh %212 : vector<8x32xf32>
    %214 = vector.extract_strided_slice %199 {offsets = [0, 96], sizes = [8, 32], strides = [1, 1]} : vector<8x128xf32> to vector<8x32xf32>
    %215 = arith.negf %214 : vector<8x32xf32>
    %216 = math.exp %215 : vector<8x32xf32>
    %cst_94 = arith.constant 1.000000e+00 : f32
    %217 = vector.broadcast %cst_94 : f32 to vector<8x32xf32>
    %218 = arith.addf %217, %216 : vector<8x32xf32>
    %219 = arith.divf %217, %218 : vector<8x32xf32>
    %220 = arith.mulf %211, %158 : vector<8x32xf32>
    %221 = arith.mulf %205, %213 : vector<8x32xf32>
    %222 = arith.addf %220, %221 : vector<8x32xf32>
    %223 = math.tanh %222 : vector<8x32xf32>
    %224 = arith.mulf %219, %223 : vector<8x32xf32>
    %225 = arith.truncf %224 : vector<8x32xf32> to vector<8x32xbf16>
    %cst_95 = arith.constant dense<0.000000e+00> : vector<8x96xf32>
    %226 = tpu.matmul %225, %151, %cst_95 {dimension_numbers = #tpu.dot_dimension_numbers<[1], [0], [0], [1], [0, 0, 1, 1], [], []>} : vector<8x32xbf16>, vector<32x96xbf16>, vector<8x96xf32> -> vector<8x96xf32>
    %227 = vector.extract_strided_slice %226 {offsets = [0, 0], sizes = [8, 32], strides = [1, 1]} : vector<8x96xf32> to vector<8x32xf32>
    %228 = vector.shape_cast %227 : vector<8x32xf32> to vector<8x4x8xf32>
    %229 = arith.truncf %228 : vector<8x4x8xf32> to vector<8x4x8xbf16>
    %230 = vector.extract_strided_slice %226 {offsets = [0, 32], sizes = [8, 32], strides = [1, 1]} : vector<8x96xf32> to vector<8x32xf32>
    %231 = vector.shape_cast %230 : vector<8x32xf32> to vector<8x4x8xf32>
    %232 = arith.truncf %231 : vector<8x4x8xf32> to vector<8x4x8xbf16>
    %233 = vector.extract_strided_slice %226 {offsets = [0, 64], sizes = [8, 32], strides = [1, 1]} : vector<8x96xf32> to vector<8x32xf32>
    %234 = vector.shape_cast %233 : vector<8x32xf32> to vector<8x4x8xf32>
    %235 = arith.truncf %234 : vector<8x4x8xf32> to vector<8x4x8xbf16>
    "tpu.trace_start"() <{level = 10 : i32, message = "bid,bjd->bij"}> : () -> ()
    %cst_96 = arith.constant dense<0.000000e+00> : vector<8x4x4xf32>
    %236 = tpu.matmul %229, %232, %cst_96 {dimension_numbers = #tpu.dot_dimension_numbers<[2], [2], [1], [1], [0, 0, 0, 1, 1, 1], [0], [0]>} : vector<8x4x8xbf16>, vector<8x4x8xbf16>, vector<8x4x4xf32> -> vector<8x4x4xf32>
    "tpu.trace_stop"() : () -> ()
    %cst_97 = arith.constant 0.353553385 : f32
    %237 = vector.broadcast %cst_97 : f32 to vector<8x4x4xf32>
    %238 = arith.mulf %236, %237 : vector<8x4x4xf32>
    %239 = vector.shape_cast %156 : vector<4x4xf32> to vector<1x4x4xf32>
    %240 = vector.broadcast %239 : vector<1x4x4xf32> to vector<8x4x4xf32>
    %241 = arith.addf %238, %240 : vector<8x4x4xf32>
    %cst_98 = arith.constant dense<0xFF800000> : vector<8x4xf32>
    %242 = vector.multi_reduction <maximumf>, %241, %cst_98 [2] : vector<8x4x4xf32> to vector<8x4xf32>
    %243 = vector.shape_cast %242 : vector<8x4xf32> to vector<8x4x1xf32>
    %244 = vector.broadcast %243 : vector<8x4x1xf32> to vector<8x4x4xf32>
    %245 = arith.subf %241, %244 : vector<8x4x4xf32>
    %246 = math.exp %245 : vector<8x4x4xf32>
    %cst_99 = arith.constant dense<0.000000e+00> : vector<8x4xf32>
    %247 = vector.multi_reduction <add>, %246, %cst_99 [2] : vector<8x4x4xf32> to vector<8x4xf32>
    %248 = vector.shape_cast %247 : vector<8x4xf32> to vector<8x4x1xf32>
    %249 = tpu.reciprocal %248 {approx = true} : vector<8x4x1xf32> -> vector<8x4x1xf32>
    %250 = vector.broadcast %249 : vector<8x4x1xf32> to vector<8x4x4xf32>
    %251 = arith.mulf %246, %250 : vector<8x4x4xf32>
    %252 = arith.truncf %251 : vector<8x4x4xf32> to vector<8x4x4xbf16>
    "tpu.trace_start"() <{level = 10 : i32, message = "bij,bjd->bid"}> : () -> ()
    %cst_100 = arith.constant dense<0.000000e+00> : vector<8x4x8xf32>
    %253 = tpu.matmul %252, %235, %cst_100 {dimension_numbers = #tpu.dot_dimension_numbers<[2], [1], [1], [2], [0, 0, 0, 1, 1, 2], [0], [0]>} : vector<8x4x4xbf16>, vector<8x4x8xbf16>, vector<8x4x8xf32> -> vector<8x4x8xf32>
    "tpu.trace_stop"() : () -> ()
    %254 = vector.shape_cast %253 : vector<8x4x8xf32> to vector<8x32xf32>
    %255 = arith.truncf %254 : vector<8x32xf32> to vector<8x32xbf16>
    %cst_101 = arith.constant dense<0.000000e+00> : vector<8x32xf32>
    %256 = tpu.matmul %255, %152, %cst_101 {dimension_numbers = #tpu.dot_dimension_numbers<[1], [0], [0], [1], [0, 0, 1, 1], [], []>} : vector<8x32xbf16>, vector<32x32xbf16>, vector<8x32xf32> -> vector<8x32xf32>
    %257 = arith.addf %224, %256 : vector<8x32xf32>
    %258 = arith.truncf %191 : vector<8x2xf32> to vector<8x2xbf16>
    %cst_102 = arith.constant dense<0.000000e+00> : vector<8x32xf32>
    %259 = tpu.matmul %258, %155, %cst_102 {dimension_numbers = #tpu.dot_dimension_numbers<[1], [0], [0], [1], [0, 0, 1, 1], [], []>} : vector<8x2xbf16>, vector<2x32xbf16>, vector<8x32xf32> -> vector<8x32xf32>
    %260 = arith.mulf %259, %257 : vector<8x32xf32>
    %cst_103 = arith.constant 1.000000e+00 : f32
    %261 = vector.broadcast %cst_103 : f32 to vector<8x32xf32>
    %262 = arith.subf %261, %259 : vector<8x32xf32>
    %263 = arith.mulf %262, %157 : vector<8x32xf32>
    %264 = arith.addf %260, %263 : vector<8x32xf32>
    %265 = arith.mulf %259, %222 : vector<8x32xf32>
    %cst_104 = arith.constant 1.000000e+00 : f32
    %266 = vector.broadcast %cst_104 : f32 to vector<8x32xf32>
    %267 = arith.subf %266, %259 : vector<8x32xf32>
    %268 = arith.mulf %267, %158 : vector<8x32xf32>
    %269 = arith.addf %265, %268 : vector<8x32xf32>
    %c0_105 = arith.constant 0 : index
    %c0_106 = arith.constant 0 : index
    %270 = vector.load %arg27[%c0_105, %c0_106] : memref<8x32xf32, #tpu.memory_space<vmem>>, vector<8x32xf32>
    tpu.vector_store %arg27[%c0_105, %c0_106], %264 {strides = array<i32>} : memref<8x32xf32, #tpu.memory_space<vmem>>, vector<8x32xf32>,
    %c0_107 = arith.constant 0 : index
    %c0_108 = arith.constant 0 : index
    %271 = vector.load %arg28[%c0_107, %c0_108] : memref<8x32xf32, #tpu.memory_space<vmem>>, vector<8x32xf32>
    tpu.vector_store %arg28[%c0_107, %c0_108], %269 {strides = array<i32>} : memref<8x32xf32, #tpu.memory_space<vmem>>, vector<8x32xf32>,
    %c0_i32_109 = arith.constant 0 : i32
    %272 = arith.cmpi eq, %arg1, %c0_i32_109 : i32
    %273 = arith.extui %272 : i1 to i32
    %c0_i32_110 = arith.constant 0 : i32
    %274 = arith.cmpi ne, %273, %c0_i32_110 : i32
    scf.if %274 {
      %c0_111 = arith.constant 0 : index
      %c0_112 = arith.constant 0 : index
      %275 = vector.load %arg25[%c0_111, %c0_112] : memref<8x32xf32, #tpu.memory_space<vmem>>, vector<8x32xf32>
      %c0_113 = arith.constant 0 : index
      %c0_114 = arith.constant 0 : index
      %276 = vector.load %arg26[%c0_113, %c0_114] : memref<8x32xf32, #tpu.memory_space<vmem>>, vector<8x32xf32>
      %c0_115 = arith.constant 0 : index
      %c0_116 = arith.constant 0 : index
      %277 = vector.load %arg27[%c0_115, %c0_116] : memref<8x32xf32, #tpu.memory_space<vmem>>, vector<8x32xf32>
      %c0_117 = arith.constant 0 : index
      %c0_118 = arith.constant 0 : index
      %278 = vector.load %arg28[%c0_117, %c0_118] : memref<8x32xf32, #tpu.memory_space<vmem>>, vector<8x32xf32>
      %279 = tpu.concatenate %275, %276, %277, %278 in 1 : vector<8x32xf32>, vector<8x32xf32>, vector<8x32xf32>, vector<8x32xf32> -> vector<8x128xf32>
      %c0_119 = arith.constant 0 : index
      %c0_120 = arith.constant 0 : index
      %280 = vector.load %arg24[%c0_119, %c0_120] : memref<8x128xf32, #tpu.memory_space<vmem>>, vector<8x128xf32>
      tpu.vector_store %arg24[%c0_119, %c0_120], %279 {strides = array<i32>} : memref<8x128xf32, #tpu.memory_space<vmem>>, vector<8x128xf32>,
    } else {
    }
    return
  }
  func.func @transform_0(%arg0: i32, %arg1: i32) -> (i32, i32, i32) {
    %c0_i32 = arith.constant 0 : i32
    %c0_i32_0 = arith.constant 0 : i32
    return %arg1, %arg0, %c0_i32 : i32, i32, i32
  }
  func.func @transform_1(%arg0: i32, %arg1: i32) -> (i32, i32) {
    %c0_i32 = arith.constant 0 : i32
    %c0_i32_0 = arith.constant 0 : i32
    return %arg0, %c0_i32 : i32, i32
  }
  func.func @transform_2(%arg0: i32, %arg1: i32) -> (i32, i32) {
    %c0_i32 = arith.constant 0 : i32
    %c0_i32_0 = arith.constant 0 : i32
    %c0_i32_1 = arith.constant 0 : i32
    return %c0_i32, %c0_i32_0 : i32, i32
  }
  func.func @transform_3(%arg0: i32, %arg1: i32) -> (i32, i32) {
    %c0_i32 = arith.constant 0 : i32
    %c0_i32_0 = arith.constant 0 : i32
    %c0_i32_1 = arith.constant 0 : i32
    return %c0_i32, %c0_i32_0 : i32, i32
  }
  func.func @transform_4(%arg0: i32, %arg1: i32) -> (i32, i32) {
    %c0_i32 = arith.constant 0 : i32
    %c0_i32_0 = arith.constant 0 : i32
    %c0_i32_1 = arith.constant 0 : i32
    return %c0_i32, %c0_i32_0 : i32, i32
  }
  func.func @transform_5(%arg0: i32, %arg1: i32) -> (i32, i32) {
    %c0_i32 = arith.constant 0 : i32
    %c0_i32_0 = arith.constant 0 : i32
    %c0_i32_1 = arith.constant 0 : i32
    return %c0_i32, %c0_i32_0 : i32, i32
  }
  func.func @transform_6(%arg0: i32, %arg1: i32) -> (i32, i32) {
    %c0_i32 = arith.constant 0 : i32
    %c0_i32_0 = arith.constant 0 : i32
    %c0_i32_1 = arith.constant 0 : i32
    return %c0_i32, %c0_i32_0 : i32, i32
  }
  func.func @transform_7(%arg0: i32, %arg1: i32) -> (i32, i32) {
    %c0_i32 = arith.constant 0 : i32
    %c0_i32_0 = arith.constant 0 : i32
    %c0_i32_1 = arith.constant 0 : i32
    return %c0_i32, %c0_i32_0 : i32, i32
  }
  func.func @transform_8(%arg0: i32, %arg1: i32) -> (i32, i32) {
    %c0_i32 = arith.constant 0 : i32
    %c0_i32_0 = arith.constant 0 : i32
    %c0_i32_1 = arith.constant 0 : i32
    return %c0_i32, %c0_i32_0 : i32, i32
  }
  func.func @transform_9(%arg0: i32, %arg1: i32) -> (i32, i32) {
    %c0_i32 = arith.constant 0 : i32
    %c0_i32_0 = arith.constant 0 : i32
    %c0_i32_1 = arith.constant 0 : i32
    return %c0_i32, %c0_i32_0 : i32, i32
  }
  func.func @transform_10(%arg0: i32, %arg1: i32) -> (i32, i32) {
    %c0_i32 = arith.constant 0 : i32
    %c0_i32_0 = arith.constant 0 : i32
    %c0_i32_1 = arith.constant 0 : i32
    return %c0_i32, %c0_i32_0 : i32, i32
  }
  func.func @transform_11(%arg0: i32, %arg1: i32) -> (i32, i32) {
    %c0_i32 = arith.constant 0 : i32
    %c0_i32_0 = arith.constant 0 : i32
    %c0_i32_1 = arith.constant 0 : i32
    return %c0_i32, %c0_i32_0 : i32, i32
  }
  func.func @transform_12(%arg0: i32, %arg1: i32) -> (i32, i32) {
    %c0_i32 = arith.constant 0 : i32
    %c0_i32_0 = arith.constant 0 : i32
    %c0_i32_1 = arith.constant 0 : i32
    return %c0_i32, %c0_i32_0 : i32, i32
  }
  func.func @transform_13(%arg0: i32, %arg1: i32) -> (i32, i32) {
    %c0_i32 = arith.constant 0 : i32
    %c0_i32_0 = arith.constant 0 : i32
    %c0_i32_1 = arith.constant 0 : i32
    return %c0_i32, %c0_i32_0 : i32, i32
  }
  func.func @transform_14(%arg0: i32, %arg1: i32) -> (i32, i32) {
    %c0_i32 = arith.constant 0 : i32
    %c0_i32_0 = arith.constant 0 : i32
    %c0_i32_1 = arith.constant 0 : i32
    return %c0_i32, %c0_i32_0 : i32, i32
  }
  func.func @transform_15(%arg0: i32, %arg1: i32) -> (i32, i32) {
    %c0_i32 = arith.constant 0 : i32
    %c0_i32_0 = arith.constant 0 : i32
    %c0_i32_1 = arith.constant 0 : i32
    return %c0_i32, %c0_i32_0 : i32, i32
  }
  func.func @transform_16(%arg0: i32, %arg1: i32) -> (i32, i32) {
    %c0_i32 = arith.constant 0 : i32
    %c0_i32_0 = arith.constant 0 : i32
    %c0_i32_1 = arith.constant 0 : i32
    return %c0_i32, %c0_i32_0 : i32, i32
  }
  func.func @transform_17(%arg0: i32, %arg1: i32) -> (i32, i32) {
    %c0_i32 = arith.constant 0 : i32
    %c0_i32_0 = arith.constant 0 : i32
    %c0_i32_1 = arith.constant 0 : i32
    return %c0_i32, %c0_i32_0 : i32, i32
  }
  func.func @transform_18(%arg0: i32, %arg1: i32) -> (i32, i32) {
    %c0_i32 = arith.constant 0 : i32
    %c0_i32_0 = arith.constant 0 : i32
    %c0_i32_1 = arith.constant 0 : i32
    return %c0_i32, %c0_i32_0 : i32, i32
  }
  func.func @transform_19(%arg0: i32, %arg1: i32) -> (i32, i32) {
    %c0_i32 = arith.constant 0 : i32
    %c0_i32_0 = arith.constant 0 : i32
    %c0_i32_1 = arith.constant 0 : i32
    return %c0_i32, %c0_i32_0 : i32, i32
  }
  func.func @transform_20(%arg0: i32, %arg1: i32) -> (i32, i32) {
    %c0_i32 = arith.constant 0 : i32
    %c0_i32_0 = arith.constant 0 : i32
    %c0_i32_1 = arith.constant 0 : i32
    return %c0_i32, %c0_i32_0 : i32, i32
  }
  func.func @transform_21(%arg0: i32, %arg1: i32) -> (i32, i32) {
    %c0_i32 = arith.constant 0 : i32
    %c0_i32_0 = arith.constant 0 : i32
    %c0_i32_1 = arith.constant 0 : i32
    return %c0_i32, %c0_i32_0 : i32, i32
  }
  func.func @transform_22(%arg0: i32, %arg1: i32) -> (i32, i32) {
    %c0_i32 = arith.constant 0 : i32
    %c0_i32_0 = arith.constant 0 : i32
    return %arg0, %c0_i32 : i32, i32
  }
}

</mosaic_0001>

<llo_original>
// kernel: tpu_custom_call.1
$region0: #{tpu_custom_call.1}
  #allocation0 [shape = 'u32[]', space=smem, size = 0x4, offset = 0x4, fixed_abs, tag = 'smem constant byte address 0x4 - core index']
  #allocation1 [shape = 'u32[144,128]{1,0:T(1,128)}', space=vmem, size = 0x12000, scoped, tag = 'internal scratch']
  #allocation2 [shape = 'f32[8,32]{1,0:T(8,128)}', space=vmem, size = 0x1000, scoped, tag = 'scratch operand']
  #allocation3 [shape = 'f32[8,32]{1,0:T(8,128)}', space=vmem, size = 0x1000, scoped, tag = 'scratch operand']
  #allocation4 [shape = 'f32[8,32]{1,0:T(8,128)}', space=vmem, size = 0x1000, scoped, tag = 'scratch operand']
  #allocation5 [shape = 'f32[8,32]{1,0:T(8,128)}', space=vmem, size = 0x1000, scoped, tag = 'scratch operand']
  %s0 = inlined_call_operand.hbm [shape: f32[1,8,16], index: 0, kind: input, shape index: {}]
  %s1 = inlined_call_operand.hbm [shape: f32[8,128], index: 1, kind: input, shape index: {}]
  %s2 = inlined_call_operand.hbm [shape: bf16[16,128], index: 2, kind: input, shape index: {}]
  %s3 = inlined_call_operand.vmem [shape: bf16[32,192], index: 3, kind: input, shape index: {}]
  %s4 = inlined_call_operand.vmem [shape: bf16[64,128], index: 4, kind: input, shape index: {}]
  %s5 = inlined_call_operand.hbm [shape: f32[1,128], index: 5, kind: input, shape index: {}]
  %s6 = inlined_call_operand.vmem [shape: bf16[32,192], index: 6, kind: input, shape index: {}]
  %s7 = inlined_call_operand.vmem [shape: bf16[64,32], index: 7, kind: input, shape index: {}]
  %s8 = inlined_call_operand.vmem [shape: bf16[64,4], index: 8, kind: input, shape index: {}]
  %s9 = inlined_call_operand.hbm [shape: bf16[4,64], index: 9, kind: input, shape index: {}]
  %s10 = inlined_call_operand.hbm [shape: bf16[4,32], index: 10, kind: input, shape index: {}]
  %s11 = inlined_call_operand.hbm [shape: f32[8,8], index: 11, kind: input, shape index: {}]
  %s12 = inlined_call_operand.vmem [shape: bf16[32,96], index: 12, kind: input, shape index: {}]
  %s13 = inlined_call_operand.hbm [shape: bf16[32,160], index: 13, kind: input, shape index: {}]
  %s14 = inlined_call_operand.hbm [shape: bf16[64,128], index: 14, kind: input, shape index: {}]
  %s15 = inlined_call_operand.hbm [shape: f32[1,128], index: 15, kind: input, shape index: {}]
  %s16 = inlined_call_operand.vmem [shape: bf16[32,96], index: 16, kind: input, shape index: {}]
  %s17 = inlined_call_operand.hbm [shape: bf16[32,32], index: 17, kind: input, shape index: {}]
  %s18 = inlined_call_operand.vmem [shape: bf16[32,2], index: 18, kind: input, shape index: {}]
  %s19 = inlined_call_operand.hbm [shape: bf16[2,64], index: 19, kind: input, shape index: {}]
  %s20 = inlined_call_operand.vmem [shape: bf16[2,32], index: 20, kind: input, shape index: {}]
  %s21 = inlined_call_operand.vmem [shape: f32[4,4], index: 21, kind: input, shape index: {}]
  %s22 = inlined_call_operand.hbm [shape: f32[8,128], index: 22, kind: output, shape index: {}]
  %s23 = sld [smem:[#allocation0]]
  $region154: #{tpu_custom_call.1} parent=0
    _
  %s25 = ssub.s32 1, %s23
  %s26 = scalar_select 0, %s25, %s23
  $region1: #{tpu_custom_call.1} parent=0
    #allocation6 [shape = 'u8[4096]{0}', space=vmem, size = 0x1000, scoped, tag = 'input window, operand 0, single buffered']
    #allocation7 [shape = 's32[1]{0}', space=sflag, size = 0x4, scoped, tag = 'scoped memory for tpu_custom_call.1']
    #allocation8 [shape = 's32[1]{0}', space=sflag, size = 0x4, scoped, tag = 'scoped memory for tpu_custom_call.1']
    #allocation9 [shape = 'u8[4096]{0}', space=vmem, size = 0x1000, scoped, tag = 'input window, operand 1, single buffered']
    #allocation10 [shape = 's32[1]{0}', space=sflag, size = 0x4, scoped, tag = 'scoped memory for tpu_custom_call.1']
    #allocation11 [shape = 'u8[4096]{0}', space=vmem, size = 0x1000, scoped, tag = 'input window, operand 2, single buffered']
    #allocation12 [shape = 'u8[512]{0}', space=vmem, size = 0x400, scoped, tag = 'input window, operand 5, single buffered']
    #allocation13 [shape = 's32[1]{0}', space=sflag, size = 0x4, scoped, tag = 'scoped memory for tpu_custom_call.1']
    #allocation14 [shape = 'u8[1024]{0}', space=vmem, size = 0x400, scoped, tag = 'input window, operand 9, single buffered']
    #allocation15 [shape = 'u8[1024]{0}', space=vmem, size = 0x400, scoped, tag = 'input window, operand 10, single buffered']
    #allocation16 [shape = 's32[1]{0}', space=sflag, size = 0x4, scoped, tag = 'scoped memory for tpu_custom_call.1']
    #allocation17 [shape = 'u8[4096]{0}', space=vmem, size = 0x1000, scoped, tag = 'input window, operand 11, single buffered']
    #allocation18 [shape = 'u8[16384]{0}', space=vmem, size = 0x4000, scoped, tag = 'input window, operand 13, single buffered']
    #allocation19 [shape = 's32[1]{0}', space=sflag, size = 0x4, scoped, tag = 'scoped memory for tpu_custom_call.1']
    #allocation20 [shape = 'u8[16384]{0}', space=vmem, size = 0x4000, scoped, tag = 'input window, operand 14, single buffered']
    #allocation21 [shape = 'u8[512]{0}', space=vmem, size = 0x400, scoped, tag = 'input window, operand 15, single buffered']
    #allocation22 [shape = 's32[1]{0}', space=sflag, size = 0x4, scoped, tag = 'scoped memory for tpu_custom_call.1']
    #allocation23 [shape = 'u8[8192]{0}', space=vmem, size = 0x2000, scoped, tag = 'input window, operand 17, single buffered']
    #allocation24 [shape = 'u8[512]{0}', space=vmem, size = 0x400, scoped, tag = 'input window, operand 19, single buffered']
    #allocation25 [shape = 's32[1]{0}', space=sflag, size = 0x4, scoped, tag = 'scoped memory for tpu_custom_call.1']
    #allocation26 [shape = 'u8[4096]{0}', space=vmem, size = 0x1000, scoped, tag = 'output window, operand 0, single buffered']
    %27 = vsyncpa [#allocation7], 0
    %28 = vsyncpa [#allocation10], 0
    %29 = vsyncpa [#allocation13], 0
    %30 = vsyncpa [#allocation16], 0
    %31 = vsyncpa [#allocation19], 0
    %32 = vsyncpa [#allocation22], 0
    %33 = vsyncpa [#allocation25], 0
    %34 = vsyncpa [#allocation8], 0
    // Predicated region
    $region2: #{tpu_custom_call.1} parent=1 // pred_check
      _
    $region3: #{tpu_custom_call.1} parent=1 // pred_check_branch
      %36 = sbr.rel (0) target = $region5
    $region4: #{tpu_custom_call.1} parent=1 // pred_region
      %s38 = ssub.s32 128, 128
      %39 = vsyncadd [#allocation7], %s38
      %s41 = sshll.u32 [#allocation6], 4
      %s42 = int_to_ptr.vmem [resolvable:$true] %s41
      %44 = dma.hbm_to_vmem [thread:$0]  %s0, 128, %s42, [#allocation7]
    $region5: #{tpu_custom_call.1} parent=1 // pred_fallthru
      _
    // Predicated region
    $region6: #{tpu_custom_call.1} parent=1 // pred_check
      _
    $region7: #{tpu_custom_call.1} parent=1 // pred_check_branch
      %46 = sbr.rel (0) target = $region9
    $region8: #{tpu_custom_call.1} parent=1 // pred_region
      %s48 = ssub.s32 128, 128
      %49 = vsyncadd [#allocation10], %s48
      %s51 = sshll.u32 [#allocation9], 4
      %s52 = int_to_ptr.vmem [resolvable:$true] %s51
      %54 = dma.hbm_to_vmem [thread:$0]  %s1, 128, %s52, [#allocation10]
    $region9: #{tpu_custom_call.1} parent=1 // pred_fallthru
      _
    // Predicated region
    $region10: #{tpu_custom_call.1} parent=1 // pred_check
      _
    $region11: #{tpu_custom_call.1} parent=1 // pred_check_branch
      %56 = sbr.rel (0) target = $region13
    $region12: #{tpu_custom_call.1} parent=1 // pred_region
      %s58 = ssub.s32 128, 128
      %59 = vsyncadd [#allocation10], %s58
      %s60 = sshll.u32 [#allocation11], 4
      %s61 = int_to_ptr.vmem [resolvable:$true] %s60
      %66 = dma.hbm_to_vmem [thread:$0]  %s2, 128, %s61, [#allocation10], 64, 64, 4
    $region13: #{tpu_custom_call.1} parent=1 // pred_fallthru
      _
    // Predicated region
    $region14: #{tpu_custom_call.1} parent=1 // pred_check
      _
    $region15: #{tpu_custom_call.1} parent=1 // pred_check_branch
      %68 = sbr.rel (0) target = $region17
    $region16: #{tpu_custom_call.1} parent=1 // pred_region
      _
    $region17: #{tpu_custom_call.1} parent=1 // pred_fallthru
      _
    // Predicated region
    $region18: #{tpu_custom_call.1} parent=1 // pred_check
      _
    $region19: #{tpu_custom_call.1} parent=1 // pred_check_branch
      %70 = sbr.rel (0) target = $region21
    $region20: #{tpu_custom_call.1} parent=1 // pred_region
      _
    $region21: #{tpu_custom_call.1} parent=1 // pred_fallthru
      _
    // Predicated region
    $region22: #{tpu_custom_call.1} parent=1 // pred_check
      _
    $region23: #{tpu_custom_call.1} parent=1 // pred_check_branch
      %72 = sbr.rel (0) target = $region25
    $region24: #{tpu_custom_call.1} parent=1 // pred_region
      %s74 = ssub.s32 16, 16
      %75 = vsyncadd [#allocation13], %s74
      %s77 = sshll.u32 [#allocation12], 4
      %s78 = int_to_ptr.vmem [resolvable:$true] %s77
      %80 = dma.hbm_to_vmem [thread:$0]  %s5, 16, %s78, [#allocation13]
    $region25: #{tpu_custom_call.1} parent=1 // pred_fallthru
      _
    // Predicated region
    $region26: #{tpu_custom_call.1} parent=1 // pred_check
      _
    $region27: #{tpu_custom_call.1} parent=1 // pred_check_branch
      %82 = sbr.rel (0) target = $region29
    $region28: #{tpu_custom_call.1} parent=1 // pred_region
      _
    $region29: #{tpu_custom_call.1} parent=1 // pred_fallthru
      _
    // Predicated region
    $region30: #{tpu_custom_call.1} parent=1 // pred_check
      _
    $region31: #{tpu_custom_call.1} parent=1 // pred_check_branch
      %84 = sbr.rel (0) target = $region33
    $region32: #{tpu_custom_call.1} parent=1 // pred_region
      _
    $region33: #{tpu_custom_call.1} parent=1 // pred_fallthru
      _
    // Predicated region
    $region34: #{tpu_custom_call.1} parent=1 // pred_check
      _
    $region35: #{tpu_custom_call.1} parent=1 // pred_check_branch
      %86 = sbr.rel (0) target = $region37
    $region36: #{tpu_custom_call.1} parent=1 // pred_region
      _
    $region37: #{tpu_custom_call.1} parent=1 // pred_fallthru
      _
    // Predicated region
    $region38: #{tpu_custom_call.1} parent=1 // pred_check
      _
    $region39: #{tpu_custom_call.1} parent=1 // pred_check_branch
      %88 = sbr.rel (0) target = $region41
    $region40: #{tpu_custom_call.1} parent=1 // pred_region
      %s90 = ssub.s32 32, 32
      %91 = vsyncadd [#allocation13], %s90
      %s93 = sshll.u32 [#allocation14], 4
      %s94 = int_to_ptr.vmem [resolvable:$true] %s93
      %96 = dma.hbm_to_vmem [thread:$0]  %s9, 32, %s94, [#allocation13]
    $region41: #{tpu_custom_call.1} parent=1 // pred_fallthru
      _
    // Predicated region
    $region42: #{tpu_custom_call.1} parent=1 // pred_check
      _
    $region43: #{tpu_custom_call.1} parent=1 // pred_check_branch
      %98 = sbr.rel (0) target = $region45
    $region44: #{tpu_custom_call.1} parent=1 // pred_region
      %s100 = ssub.s32 32, 32
      %101 = vsyncadd [#allocation16], %s100
      %s103 = sshll.u32 [#allocation15], 4
      %s104 = int_to_ptr.vmem [resolvable:$true] %s103
      %106 = dma.hbm_to_vmem [thread:$0]  %s10, 32, %s104, [#allocation16]
    $region45: #{tpu_custom_call.1} parent=1 // pred_fallthru
      _
    // Predicated region
    $region46: #{tpu_custom_call.1} parent=1 // pred_check
      _
    $region47: #{tpu_custom_call.1} parent=1 // pred_check_branch
      %108 = sbr.rel (0) target = $region49
    $region48: #{tpu_custom_call.1} parent=1 // pred_region
      %s110 = ssub.s32 128, 128
      %111 = vsyncadd [#allocation16], %s110
      %s113 = sshll.u32 [#allocation17], 4
      %s114 = int_to_ptr.vmem [resolvable:$true] %s113
      %116 = dma.hbm_to_vmem [thread:$0]  %s11, 128, %s114, [#allocation16]
    $region49: #{tpu_custom_call.1} parent=1 // pred_fallthru
      _
    // Predicated region
    $region50: #{tpu_custom_call.1} parent=1 // pred_check
      _
    $region51: #{tpu_custom_call.1} parent=1 // pred_check_branch
      %118 = sbr.rel (0) target = $region53
    $region52: #{tpu_custom_call.1} parent=1 // pred_region
      _
    $region53: #{tpu_custom_call.1} parent=1 // pred_fallthru
      _
    // Predicated region
    $region54: #{tpu_custom_call.1} parent=1 // pred_check
      _
    $region55: #{tpu_custom_call.1} parent=1 // pred_check_branch
      %120 = sbr.rel (0) target = $region57
    $region56: #{tpu_custom_call.1} parent=1 // pred_region
      %s122 = ssub.s32 512, 512
      %123 = vsyncadd [#allocation19], %s122
      %s124 = sshll.u32 [#allocation18], 4
      %s125 = int_to_ptr.vmem [resolvable:$true] %s124
      %130 = dma.hbm_to_vmem [thread:$0]  %s13, 512, %s125, [#allocation19], 128, 128, 8
    $region57: #{tpu_custom_call.1} parent=1 // pred_fallthru
      _
    // Predicated region
    $region58: #{tpu_custom_call.1} parent=1 // pred_check
      _
    $region59: #{tpu_custom_call.1} parent=1 // pred_check_branch
      %132 = sbr.rel (0) target = $region61
    $region60: #{tpu_custom_call.1} parent=1 // pred_region
      %s134 = ssub.s32 512, 512
      %135 = vsyncadd [#allocation19], %s134
      %s136 = sshll.u32 [#allocation20], 4
      %s137 = int_to_ptr.vmem [resolvable:$true] %s136
      %142 = dma.hbm_to_vmem [thread:$0]  %s14, 512, %s137, [#allocation19], 64, 64, 4
    $region61: #{tpu_custom_call.1} parent=1 // pred_fallthru
      _
    // Predicated region
    $region62: #{tpu_custom_call.1} parent=1 // pred_check
      _
    $region63: #{tpu_custom_call.1} parent=1 // pred_check_branch
      %144 = sbr.rel (0) target = $region65
    $region64: #{tpu_custom_call.1} parent=1 // pred_region
      %s146 = ssub.s32 16, 16
      %147 = vsyncadd [#allocation22], %s146
      %s149 = sshll.u32 [#allocation21], 4
      %s150 = int_to_ptr.vmem [resolvable:$true] %s149
      %152 = dma.hbm_to_vmem [thread:$0]  %s15, 16, %s150, [#allocation22]
    $region65: #{tpu_custom_call.1} parent=1 // pred_fallthru
      _
    // Predicated region
    $region66: #{tpu_custom_call.1} parent=1 // pred_check
      _
    $region67: #{tpu_custom_call.1} parent=1 // pred_check_branch
      %154 = sbr.rel (0) target = $region69
    $region68: #{tpu_custom_call.1} parent=1 // pred_region
      _
    $region69: #{tpu_custom_call.1} parent=1 // pred_fallthru
      _
    // Predicated region
    $region70: #{tpu_custom_call.1} parent=1 // pred_check
      _
    $region71: #{tpu_custom_call.1} parent=1 // pred_check_branch
      %156 = sbr.rel (0) target = $region73
    $region72: #{tpu_custom_call.1} parent=1 // pred_region
      %s158 = ssub.s32 256, 256
      %159 = vsyncadd [#allocation22], %s158
      %s160 = sshll.u32 [#allocation23], 4
      %s161 = int_to_ptr.vmem [resolvable:$true] %s160
      %166 = dma.hbm_to_vmem [thread:$0]  %s17, 256, %s161, [#allocation22], 64, 64, 4
    $region73: #{tpu_custom_call.1} parent=1 // pred_fallthru
      _
    // Predicated region
    $region74: #{tpu_custom_call.1} parent=1 // pred_check
      _
    $region75: #{tpu_custom_call.1} parent=1 // pred_check_branch
      %168 = sbr.rel (0) target = $region77
    $region76: #{tpu_custom_call.1} parent=1 // pred_region
      _
    $region77: #{tpu_custom_call.1} parent=1 // pred_fallthru
      _
    // Predicated region
    $region78: #{tpu_custom_call.1} parent=1 // pred_check
      _
    $region79: #{tpu_custom_call.1} parent=1 // pred_check_branch
      %170 = sbr.rel (0) target = $region81
    $region80: #{tpu_custom_call.1} parent=1 // pred_region
      %s172 = ssub.s32 16, 16
      %173 = vsyncadd [#allocation25], %s172
      %s175 = sshll.u32 [#allocation24], 4
      %s176 = int_to_ptr.vmem [resolvable:$true] %s175
      %178 = dma.hbm_to_vmem [thread:$0]  %s19, 16, %s176, [#allocation25]
    $region81: #{tpu_custom_call.1} parent=1 // pred_fallthru
      _
    // Predicated region
    $region82: #{tpu_custom_call.1} parent=1 // pred_check
      _
    $region83: #{tpu_custom_call.1} parent=1 // pred_check_branch
      %180 = sbr.rel (0) target = $region85
    $region84: #{tpu_custom_call.1} parent=1 // pred_region
      _
    $region85: #{tpu_custom_call.1} parent=1 // pred_fallthru
      _
    // Predicated region
    $region86: #{tpu_custom_call.1} parent=1 // pred_check
      _
    $region87: #{tpu_custom_call.1} parent=1 // pred_check_branch
      %182 = sbr.rel (0) target = $region89
    $region88: #{tpu_custom_call.1} parent=1 // pred_region
      _
    $region89: #{tpu_custom_call.1} parent=1 // pred_fallthru
      _
    // Predicated region
    $region90: #{tpu_custom_call.1} parent=1 // pred_check
      _
    $region91: #{tpu_custom_call.1} parent=1 // pred_check_branch
      %184 = sbr.rel (0) target = $region93
    $region92: #{tpu_custom_call.1} parent=1 // pred_region
      %185 = dma.done [#allocation7], 128
    $region93: #{tpu_custom_call.1} parent=1 // pred_fallthru
      _
    // Predicated region
    $region94: #{tpu_custom_call.1} parent=1 // pred_check
      _
    $region95: #{tpu_custom_call.1} parent=1 // pred_check_branch
      %187 = sbr.rel (0) target = $region97
    $region96: #{tpu_custom_call.1} parent=1 // pred_region
      %188 = dma.done [#allocation10], 128
    $region97: #{tpu_custom_call.1} parent=1 // pred_fallthru
      _
    // Predicated region
    $region98: #{tpu_custom_call.1} parent=1 // pred_check
      _
    $region99: #{tpu_custom_call.1} parent=1 // pred_check_branch
      %190 = sbr.rel (0) target = $region101
    $region100: #{tpu_custom_call.1} parent=1 // pred_region
      %191 = dma.done [#allocation10], 128
    $region101: #{tpu_custom_call.1} parent=1 // pred_fallthru
      _
    // Predicated region
    $region102: #{tpu_custom_call.1} parent=1 // pred_check
      _
    $region103: #{tpu_custom_call.1} parent=1 // pred_check_branch
      %193 = sbr.rel (0) target = $region105
    $region104: #{tpu_custom_call.1} parent=1 // pred_region
      %194 = dma.done [#allocation13], 16
    $region105: #{tpu_custom_call.1} parent=1 // pred_fallthru
      _
    // Predicated region
    $region106: #{tpu_custom_call.1} parent=1 // pred_check
      _
    $region107: #{tpu_custom_call.1} parent=1 // pred_check_branch
      %196 = sbr.rel (0) target = $region109
    $region108: #{tpu_custom_call.1} parent=1 // pred_region
      %197 = dma.done [#allocation13], 32
    $region109: #{tpu_custom_call.1} parent=1 // pred_fallthru
      _
    // Predicated region
    $region110: #{tpu_custom_call.1} parent=1 // pred_check
      _
    $region111: #{tpu_custom_call.1} parent=1 // pred_check_branch
      %199 = sbr.rel (0) target = $region113
    $region112: #{tpu_custom_call.1} parent=1 // pred_region
      %200 = dma.done [#allocation16], 32
    $region113: #{tpu_custom_call.1} parent=1 // pred_fallthru
      _
    // Predicated region
    $region114: #{tpu_custom_call.1} parent=1 // pred_check
      _
    $region115: #{tpu_custom_call.1} parent=1 // pred_check_branch
      %202 = sbr.rel (0) target = $region117
    $region116: #{tpu_custom_call.1} parent=1 // pred_region
      %203 = dma.done [#allocation16], 128
    $region117: #{tpu_custom_call.1} parent=1 // pred_fallthru
      _
    // Predicated region
    $region118: #{tpu_custom_call.1} parent=1 // pred_check
      _
    $region119: #{tpu_custom_call.1} parent=1 // pred_check_branch
      %205 = sbr.rel (0) target = $region121
    $region120: #{tpu_custom_call.1} parent=1 // pred_region
      %206 = dma.done [#allocation19], 512
    $region121: #{tpu_custom_call.1} parent=1 // pred_fallthru
      _
    // Predicated region
    $region122: #{tpu_custom_call.1} parent=1 // pred_check
      _
    $region123: #{tpu_custom_call.1} parent=1 // pred_check_branch
      %208 = sbr.rel (0) target = $region125
    $region124: #{tpu_custom_call.1} parent=1 // pred_region
      %209 = dma.done [#allocation19], 512
    $region125: #{tpu_custom_call.1} parent=1 // pred_fallthru
      _
    // Predicated region
    $region126: #{tpu_custom_call.1} parent=1 // pred_check
      _
    $region127: #{tpu_custom_call.1} parent=1 // pred_check_branch
      %211 = sbr.rel (0) target = $region129
    $region128: #{tpu_custom_call.1} parent=1 // pred_region
      %212 = dma.done [#allocation22], 16
    $region129: #{tpu_custom_call.1} parent=1 // pred_fallthru
      _
    // Predicated region
    $region130: #{tpu_custom_call.1} parent=1 // pred_check
      _
    $region131: #{tpu_custom_call.1} parent=1 // pred_check_branch
      %214 = sbr.rel (0) target = $region133
    $region132: #{tpu_custom_call.1} parent=1 // pred_region
      %215 = dma.done [#allocation22], 256
    $region133: #{tpu_custom_call.1} parent=1 // pred_fallthru
      _
    // Predicated region
    $region134: #{tpu_custom_call.1} parent=1 // pred_check
      _
    $region135: #{tpu_custom_call.1} parent=1 // pred_check_branch
      %217 = sbr.rel (0) target = $region137
    $region136: #{tpu_custom_call.1} parent=1 // pred_region
      %218 = dma.done [#allocation25], 16
    $region137: #{tpu_custom_call.1} parent=1 // pred_fallthru
      _
    %p220 = scmp.eq.s32.totalorder 0, 0
    // Predicated region
    $region138: #{tpu_custom_call.1} parent=1 // pred_check
      %p221 = pneg %p220
    $region139: #{tpu_custom_call.1} parent=1 // pred_check_branch
      %223 = sbr.rel (%p221) target = $region141
    $region140: #{tpu_custom_call.1} parent=1 // pred_region
      %v224 = vld [vmem:[#allocation9] sm:$0xff]
      %vm225 = vcmask 261120
      %226 = vst.msk [vmem:[#allocation2] sm:$0xff] %vm225, %v224
      %v227 = vld [vmem:[#allocation9] sm:$0xff]
      %229 = vrot.lane.b32.xlu0 %v227, 96
      %v230 = vpop.permute.xlu0 %229
      %232 = vst.msk [vmem:[#allocation3] sm:$0xff] %vm225, %v230
      %v233 = vld [vmem:[#allocation9] sm:$0xff]
      %235 = vrot.lane.b32.xlu0 %v233, 64
      %v236 = vpop.permute.xlu0 %235
      %238 = vst.msk [vmem:[#allocation4] sm:$0xff] %vm225, %v236
      %v239 = vld [vmem:[#allocation9] sm:$0xff]
      %241 = vrot.lane.b32.xlu0 %v239, 32
      %v242 = vpop.permute.xlu0 %241
      %244 = vst.msk [vmem:[#allocation5] sm:$0xff] %vm225, %v242
    $region141: #{tpu_custom_call.1} parent=1 // pred_fallthru
      _
    %v245 = vld [vmem:[#allocation6] sm:$0xff]
    %v246 = vld [vmem:[#allocation11] sm:$0xf]
    %v247 = vld [vmem:[#allocation11 + $0x4] sm:$0xf]
    %v248 = vld [vmem:[%s3] sm:$0xff]
    %v249 = vld [vmem:[%s3 + $0x8] sm:$0xff]
    %v250 = vld [vmem:[%s3 + $0x10] sm:$0xff]
    %v251 = vld [vmem:[%s3 + $0x18] sm:$0xff]
    %v252 = vld [vmem:[%s4] sm:$0xf]
    %v253 = vld [vmem:[%s4 + $0x4] sm:$0xf]
    %v254 = vld [vmem:[%s4 + $0x8] sm:$0xf]
    %v255 = vld [vmem:[%s4 + $0xc] sm:$0xf]
    %v256 = vld [vmem:[%s4 + $0x10] sm:$0xf]
    %v257 = vld [vmem:[%s4 + $0x14] sm:$0xf]
    %v258 = vld [vmem:[%s4 + $0x18] sm:$0xf]
    %v259 = vld [vmem:[%s4 + $0x1c] sm:$0xf]
    %v260 = vld [vmem:[#allocation12] sm:$0x1]
    %v261 = vld [vmem:[%s6] sm:$0xff]
    %v262 = vld [vmem:[%s6 + $0x8] sm:$0xff]
    %v263 = vld [vmem:[%s6 + $0x10] sm:$0xff]
    %v264 = vld [vmem:[%s6 + $0x18] sm:$0xff]
    %v265 = vld [vmem:[%s7] sm:$0xf]
    %v266 = vld [vmem:[%s7 + $0x4] sm:$0xf]
    %v267 = vld [vmem:[%s7 + $0x8] sm:$0xf]
    %v268 = vld [vmem:[%s7 + $0xc] sm:$0xf]
    %v269 = vld [vmem:[%s7 + $0x10] sm:$0xf]
    %v270 = vld [vmem:[%s7 + $0x14] sm:$0xf]
    %v271 = vld [vmem:[%s7 + $0x18] sm:$0xf]
    %v272 = vld [vmem:[%s7 + $0x1c] sm:$0xf]
    %v273 = vld [vmem:[%s8] sm:$0xf]
    %v274 = vld [vmem:[%s8 + $0x4] sm:$0xf]
    %v275 = vld [vmem:[%s8 + $0x8] sm:$0xf]
    %v276 = vld [vmem:[%s8 + $0xc] sm:$0xf]
    %v277 = vld [vmem:[%s8 + $0x10] sm:$0xf]
    %v278 = vld [vmem:[%s8 + $0x14] sm:$0xf]
    %v279 = vld [vmem:[%s8 + $0x18] sm:$0xf]
    %v280 = vld [vmem:[%s8 + $0x1c] sm:$0xf]
    %v281 = vld [vmem:[#allocation14] sm:$0x3]
    %v282 = vld [vmem:[#allocation15] sm:$0x3]
    %v283 = vld [vmem:[#allocation17] sm:$0xff]
    %v284 = vld [vmem:[#allocation2] sm:$0xff]
    %v285 = vld [vmem:[#allocation3] sm:$0xff]
    %v286 = vpack.c.bf16 %v245, %v245
    %v289 = vunpack.c.l.b16 %v246
    %v290 = vunpack.c.l.b16 %v247
    %v291 = vpack.c.b16 %v290, %v289
    %vm293 = vcmask 130048
    %v295 = vsel %vm293, %v286, 0
    %297 = vmatprep.subr.bf16.mxu0 0
    %298 = vmatpush1.bf16.msra.mxu0 0
    %299 = vmatprep.subr.bf16.mxu0 0
    %300 = vmatpush1.bf16.msra.mxu0 0
    %301 = vmatprep.subr.bf16.mxu0 0
    %302 = vmatpush1.bf16.msra.mxu0 0
    %303 = vmatprep.subr.bf16.mxu0 0
    %304 = vmatpush1.bf16.msra.mxu0 0
    %305 = vmatprep.subr.bf16.mxu0 0
    %306 = vmatpush1.bf16.msra.mxu0 0
    %307 = vmatprep.subr.bf16.mxu0 0
    %308 = vmatpush1.bf16.msra.mxu0 0
    %309 = vmatprep.subr.bf16.mxu0 0
    %310 = vmatpush1.bf16.msra.mxu0 0
    %311 = vmatprep.subr.bf16.mxu0 0
    %312 = vmatpush1.bf16.msra.mxu0 %v291
    %313 = vmatprep.subr.bf16.mxu0 0
    %314 = vmatpush2.bf16.msra.mxu0 0
    %315 = vmatprep.subr.bf16.mxu0 0
    %316 = vmatpush2.bf16.msra.mxu0 0
    %317 = vmatprep.subr.bf16.mxu0 0
    %318 = vmatpush2.bf16.msra.mxu0 0
    %319 = vmatprep.subr.bf16.mxu0 0
    %320 = vmatpush2.bf16.msra.mxu0 0
    %321 = vmatprep.subr.bf16.mxu0 0
    %322 = vmatpush2.bf16.msra.mxu0 0
    %323 = vmatprep.subr.bf16.mxu0 0
    %324 = vmatpush2.bf16.msra.mxu0 0
    %325 = vmatprep.subr.bf16.mxu0 0
    %326 = vmatpush2.bf16.msra.mxu0 0
    %327 = vmatprep.subr.bf16.mxu0 0
    %328 = vmatpush2.bf16.msra.mxu0 0
    %329 = vmatprep.mubr.bf16.mxu0 0
    %330 = vmatmul.mubr.bf16.gmra.mxu0 %v295
    %v331 = vpop.f32.mrf.mxu0
    %v332 = vadd.f32 0.0, %v331
    %v333 = vpop.f32.mrf.mxu0
    %v334 = vpop.f32.mrf.mxu0
    %v335 = vpop.f32.mrf.mxu0
    %336 = vdwg.mxu0
    %v337 = vpack.c.bf16 %v284, %v284
    %v342 = vunpack.c.l.b16 %v248
    %v343 = vunpack.c.h.b16 %v248
    %v344 = vunpack.c.l.b16 %v249
    %v345 = vunpack.c.h.b16 %v249
    %v346 = vunpack.c.l.b16 %v250
    %v347 = vunpack.c.h.b16 %v250
    %v348 = vunpack.c.l.b16 %v251
    %v349 = vunpack.c.h.b16 %v251
    %v350 = vpack.c.b16 %v344, %v342
    %v351 = vpack.c.b16 %v345, %v343
    %v352 = vpack.c.b16 %v348, %v346
    %v353 = vpack.c.b16 %v349, %v347
    %vm358 = vcmask 261120
    %v360 = vsel %vm358, %v337, 0
    %362 = vmatprep.subr.bf16.mxu0 0
    %363 = vmatpush1.bf16.msra.mxu0 0
    %364 = vmatprep.subr.bf16.mxu0 0
    %365 = vmatpush1.bf16.msra.mxu0 0
    %366 = vmatprep.subr.bf16.mxu0 0
    %367 = vmatpush1.bf16.msra.mxu0 0
    %368 = vmatprep.subr.bf16.mxu0 0
    %369 = vmatpush1.bf16.msra.mxu0 0
    %370 = vmatprep.subr.bf16.mxu0 0
    %371 = vmatpush1.bf16.msra.mxu0 0
    %372 = vmatprep.subr.bf16.mxu0 0
    %373 = vmatpush1.bf16.msra.mxu0 0
    %374 = vmatprep.subr.bf16.mxu0 %v353
    %375 = vmatpush1.bf16.msra.mxu0 %v352
    %376 = vmatprep.subr.bf16.mxu0 %v351
    %377 = vmatpush1.bf16.msra.mxu0 %v350
    %378 = vmatprep.subr.bf16.mxu0 0
    %379 = vmatpush2.bf16.msra.mxu0 0
    %380 = vmatprep.subr.bf16.mxu0 0
    %381 = vmatpush2.bf16.msra.mxu0 0
    %382 = vmatprep.subr.bf16.mxu0 0
    %383 = vmatpush2.bf16.msra.mxu0 0
    %384 = vmatprep.subr.bf16.mxu0 0
    %385 = vmatpush2.bf16.msra.mxu0 0
    %386 = vmatprep.subr.bf16.mxu0 0
    %387 = vmatpush2.bf16.msra.mxu0 0
    %388 = vmatprep.subr.bf16.mxu0 0
    %389 = vmatpush2.bf16.msra.mxu0 0
    %390 = vmatprep.subr.bf16.mxu0 0
    %391 = vmatpush2.bf16.msra.mxu0 0
    %392 = vmatprep.subr.bf16.mxu0 0
    %393 = vmatpush2.bf16.msra.mxu0 0
    %394 = vmatprep.mubr.bf16.mxu0 0
    %395 = vmatmul.mubr.bf16.gmra.mxu0 %v360
    %v396 = vpop.f32.mrf.mxu0
    %v397 = vadd.f32 0.0, %v396
    %v398 = vpop.f32.mrf.mxu0
    %v399 = vadd.f32 0.0, %v398
    %v400 = vpop.f32.mrf.mxu0
    %v401 = vpop.f32.mrf.mxu0
    %402 = vdwg.mxu0
    %v403 = vmul.f32 %v397, %v332
    %v404 = vpack.c.bf16 %v403, %v403
    %v413 = vunpack.c.l.b16 %v273
    %v414 = vunpack.c.l.b16 %v274
    %v415 = vunpack.c.l.b16 %v275
    %v416 = vunpack.c.l.b16 %v276
    %v417 = vunpack.c.l.b16 %v277
    %v418 = vunpack.c.l.b16 %v278
    %v419 = vunpack.c.l.b16 %v279
    %v420 = vunpack.c.l.b16 %v280
    %v421 = vpack.c.b16 %v414, %v413
    %v422 = vpack.c.b16 %v416, %v415
    %v423 = vpack.c.b16 %v418, %v417
    %v424 = vpack.c.b16 %v420, %v419
    %vm429 = vcmask 523264
    %v431 = vsel %vm429, %v404, 0
    %433 = vmatprep.subr.bf16.mxu0 0
    %434 = vmatpush1.bf16.msra.mxu0 0
    %435 = vmatprep.subr.bf16.mxu0 0
    %436 = vmatpush1.bf16.msra.mxu0 0
    %437 = vmatprep.subr.bf16.mxu0 0
    %438 = vmatpush1.bf16.msra.mxu0 0
    %439 = vmatprep.subr.bf16.mxu0 0
    %440 = vmatpush1.bf16.msra.mxu0 0
    %441 = vmatprep.subr.bf16.mxu0 0
    %442 = vmatpush1.bf16.msra.mxu0 %v424
    %443 = vmatprep.subr.bf16.mxu0 0
    %444 = vmatpush1.bf16.msra.mxu0 %v423
    %445 = vmatprep.subr.bf16.mxu0 0
    %446 = vmatpush1.bf16.msra.mxu0 %v422
    %447 = vmatprep.subr.bf16.mxu0 0
    %448 = vmatpush1.bf16.msra.mxu0 %v421
    %449 = vmatprep.subr.bf16.mxu0 0
    %450 = vmatpush2.bf16.msra.mxu0 0
    %451 = vmatprep.subr.bf16.mxu0 0
    %452 = vmatpush2.bf16.msra.mxu0 0
    %453 = vmatprep.subr.bf16.mxu0 0
    %454 = vmatpush2.bf16.msra.mxu0 0
    %455 = vmatprep.subr.bf16.mxu0 0
    %456 = vmatpush2.bf16.msra.mxu0 0
    %457 = vmatprep.subr.bf16.mxu0 0
    %458 = vmatpush2.bf16.msra.mxu0 0
    %459 = vmatprep.subr.bf16.mxu0 0
    %460 = vmatpush2.bf16.msra.mxu0 0
    %461 = vmatprep.subr.bf16.mxu0 0
    %462 = vmatpush2.bf16.msra.mxu0 0
    %463 = vmatprep.subr.bf16.mxu0 0
    %464 = vmatpush2.bf16.msra.mxu0 0
    %465 = vmatprep.mubr.bf16.mxu0 0
    %466 = vmatmul.mubr.bf16.gmra.mxu0 %v431
    %v467 = vpop.f32.mrf.mxu0
    %v468 = vadd.f32 0.0, %v467
    %v469 = vpop.f32.mrf.mxu0
    %v470 = vpop.f32.mrf.mxu0
    %v471 = vpop.f32.mrf.mxu0
    %472 = vdwg.mxu0
    %v473 = vmul.f32 %v468, 0.25
    %v474 = vxor.u32 %v473, 2147483648
    %v475 = vmul.f32 %v474, 1.442695
    %v476 = vpow.pop %v475
    %v477 = vadd.f32 %v476, 1.0
    %v478 = vrcp.pop %v477
    %v479 = vmul.f32 1.0, %v478
    %v480 = vlaneseq
    %v481 = vand.u32 %v480, 127
    %vm482 = vcmask 31744
    %v483 = vsel %vm482, %v473, -inf
    %484 = vmax.xlane.f32.xlu0 %v483
    %v485 = vpop.xlane.xlu0 %484
    %vm486 = vcmp.ge.f32.partialorder %v473, %v485
    %v487 = vsel %vm486, %v481, 4
    %v488 = vsel %vm482, %v487, 2147483647
    %v489 = vand.u32 %v488, 65535
    %v490 = vshra.s32 %v488, 16
    %v491 = vcvt.s32.f32 %v489
    %v492 = vcvt.s32.f32 %v490
    %493 = vmin.xlane.f32.xlu0 %v492
    %v494 = vpop.xlane.xlu0 %493
    %vm495 = vcmp.eq.f32.partialorder %v492, %v494
    %v496 = vsel %vm495, %v491, inf
    %497 = vmin.xlane.f32.xlu0 %v496
    %v498 = vpop.xlane.xlu0 %497
    %v499 = vcvt.f32.s32 %v498
    %v500 = vcvt.f32.s32 %v494
    %v501 = vshll.u32 %v500, 16
    %v502 = vadd.s32 %v501, %v499
    %vm503 = vcmp.eq.s32.totalorder %v481, %v502
    %v504 = vsel %vm503, 1, 0
    %v505 = vcvt.s32.f32 %v504
    %v506 = vadd.f32 %v505, 0.0
    %vm507 = vcmp.gt.f32.partialorder %v505, 0.0
    %v508 = vsel %vm507, -1e+30, %v473
    %v509 = vsel %vm482, %v508, -inf
    %510 = vmax.xlane.f32.xlu0 %v509
    %v511 = vpop.xlane.xlu0 %510
    %vm512 = vcmp.ge.f32.partialorder %v508, %v511
    %v513 = vsel %vm512, %v481, 4
    %v514 = vsel %vm482, %v513, 2147483647
    %v515 = vand.u32 %v514, 65535
    %v516 = vshra.s32 %v514, 16
    %v517 = vcvt.s32.f32 %v515
    %v518 = vcvt.s32.f32 %v516
    %519 = vmin.xlane.f32.xlu0 %v518
    %v520 = vpop.xlane.xlu0 %519
    %vm521 = vcmp.eq.f32.partialorder %v518, %v520
    %v522 = vsel %vm521, %v517, inf
    %523 = vmin.xlane.f32.xlu0 %v522
    %v524 = vpop.xlane.xlu0 %523
    %v525 = vcvt.f32.s32 %v524
    %v526 = vcvt.f32.s32 %v520
    %v527 = vshll.u32 %v526, 16
    %v528 = vadd.s32 %v527, %v525
    %vm529 = vcmp.eq.s32.totalorder %v481, %v528
    %v530 = vsel %vm529, 1, 0
    %v531 = vcvt.s32.f32 %v530
    %v532 = vadd.f32 %v506, %v531
    %v533 = vpack.c.bf16 %v479, %v479
    %v535 = vsel %vm482, %v533, 0
    %vm537 = vcmask 1041408
    %v539 = vsel %vm537, %v281, 0
    %541 = vmatprep.subr.bf16.mxu0 0
    %542 = vmatpush1.bf16.msra.mxu0 0
    %543 = vmatprep.subr.bf16.mxu0 0
    %544 = vmatpush1.bf16.msra.mxu0 0
    %545 = vmatprep.subr.bf16.mxu0 0
    %546 = vmatpush1.bf16.msra.mxu0 0
    %547 = vmatprep.subr.bf16.mxu0 0
    %548 = vmatpush1.bf16.msra.mxu0 0
    %549 = vmatprep.subr.bf16.mxu0 0
    %550 = vmatpush1.bf16.msra.mxu0 0
    %551 = vmatprep.subr.bf16.mxu0 0
    %552 = vmatpush1.bf16.msra.mxu0 0
    %553 = vmatprep.subr.bf16.mxu0 0
    %554 = vmatpush1.bf16.msra.mxu0 0
    %555 = vmatprep.subr.bf16.mxu0 0
    %556 = vmatpush1.bf16.msra.mxu0 %v539
    %557 = vmatprep.subr.bf16.mxu0 0
    %558 = vmatpush2.bf16.msra.mxu0 0
    %559 = vmatprep.subr.bf16.mxu0 0
    %560 = vmatpush2.bf16.msra.mxu0 0
    %561 = vmatprep.subr.bf16.mxu0 0
    %562 = vmatpush2.bf16.msra.mxu0 0
    %563 = vmatprep.subr.bf16.mxu0 0
    %564 = vmatpush2.bf16.msra.mxu0 0
    %565 = vmatprep.subr.bf16.mxu0 0
    %566 = vmatpush2.bf16.msra.mxu0 0
    %567 = vmatprep.subr.bf16.mxu0 0
    %568 = vmatpush2.bf16.msra.mxu0 0
    %569 = vmatprep.subr.bf16.mxu0 0
    %570 = vmatpush2.bf16.msra.mxu0 0
    %571 = vmatprep.subr.bf16.mxu0 0
    %572 = vmatpush2.bf16.msra.mxu0 0
    %573 = vmatprep.mubr.bf16.mxu0 0
    %574 = vmatmul.mubr.bf16.gmra.mxu0 %v535
    %v575 = vpop.f32.mrf.mxu0
    %v576 = vadd.f32 0.0, %v575
    %v577 = vpop.f32.mrf.mxu0
    %v578 = vpop.f32.mrf.mxu0
    %v579 = vpop.f32.mrf.mxu0
    %580 = vdwg.mxu0
    %582 = vrot.lane.b32.xlu0 %v332, 64
    %v583 = vpop.permute.xlu0 %582
    %v585 = vmul.f32 %v576, %v583
    %v586 = vpack.c.bf16 %v585, %v585
    %v595 = vunpack.c.l.b16 %v252
    %v596 = vunpack.c.l.b16 %v253
    %v597 = vunpack.c.l.b16 %v254
    %v598 = vunpack.c.l.b16 %v255
    %v599 = vunpack.c.l.b16 %v256
    %v600 = vunpack.c.l.b16 %v257
    %v601 = vunpack.c.l.b16 %v258
    %v602 = vunpack.c.l.b16 %v259
    %v603 = vpack.c.b16 %v596, %v595
    %v604 = vpack.c.b16 %v598, %v597
    %v605 = vpack.c.b16 %v600, %v599
    %v606 = vpack.c.b16 %v602, %v601
    %613 = vrot.lane.b32.xlu0 %v397, 64
    %v614 = vpop.permute.xlu0 %613
    %615 = vrot.lane.b32.xlu0 %v399, 64
    %v616 = vpop.permute.xlu0 %615
    %v617 = vsel %vm429, %v614, %v616
    %v620 = vsel %vm429, %v586, 0
    %622 = vmatprep.subr.bf16.mxu0 0
    %623 = vmatpush1.bf16.msra.mxu0 0
    %624 = vmatprep.subr.bf16.mxu0 0
    %625 = vmatpush1.bf16.msra.mxu0 0
    %626 = vmatprep.subr.bf16.mxu0 0
    %627 = vmatpush1.bf16.msra.mxu0 0
    %628 = vmatprep.subr.bf16.mxu0 0
    %629 = vmatpush1.bf16.msra.mxu0 0
    %630 = vmatprep.subr.bf16.mxu0 0
    %631 = vmatpush1.bf16.msra.mxu0 %v606
    %632 = vmatprep.subr.bf16.mxu0 0
    %633 = vmatpush1.bf16.msra.mxu0 %v605
    %634 = vmatprep.subr.bf16.mxu0 0
    %635 = vmatpush1.bf16.msra.mxu0 %v604
    %636 = vmatprep.subr.bf16.mxu0 0
    %637 = vmatpush1.bf16.msra.mxu0 %v603
    %638 = vmatprep.subr.bf16.mxu0 0
    %639 = vmatpush2.bf16.msra.mxu0 0
    %640 = vmatprep.subr.bf16.mxu0 0
    %641 = vmatpush2.bf16.msra.mxu0 0
    %642 = vmatprep.subr.bf16.mxu0 0
    %643 = vmatpush2.bf16.msra.mxu0 0
    %644 = vmatprep.subr.bf16.mxu0 0
    %645 = vmatpush2.bf16.msra.mxu0 0
    %646 = vmatprep.subr.bf16.mxu0 0
    %647 = vmatpush2.bf16.msra.mxu0 0
    %648 = vmatprep.subr.bf16.mxu0 0
    %649 = vmatpush2.bf16.msra.mxu0 0
    %650 = vmatprep.subr.bf16.mxu0 0
    %651 = vmatpush2.bf16.msra.mxu0 0
    %652 = vmatprep.subr.bf16.mxu0 0
    %653 = vmatpush2.bf16.msra.mxu0 0
    %654 = vmatprep.mubr.bf16.mxu0 0
    %655 = vmatmul.mubr.bf16.gmra.mxu0 %v620
    %v656 = vpop.f32.mrf.mxu0
    %v657 = vadd.f32 %v617, %v656
    %v658 = vpop.f32.mrf.mxu0
    %v659 = vpop.f32.mrf.mxu0
    %v660 = vpop.f32.mrf.mxu0
    %661 = vdwg.mxu0
    %v663 = vlaneseq
    %v664 = vshrl.u32 %v663, 7
    %v665 = vsub.s32 0, %v664
    %v666 = vrot.slane %v260, %v665
    %v668 = vadd.f32 %v657, %v666
    %v669 = vxor.u32 %v668, 2147483648
    %v670 = vmul.f32 %v669, 1.442695
    %v671 = vpow.pop %v670
    %v672 = vadd.f32 %v671, 1.0
    %v673 = vrcp.pop %v672
    %v674 = vmul.f32 1.0, %v673
    %v675 = vtanh.pop %v668
    %677 = vrot.lane.b32.xlu0 %v285, 32
    %v678 = vpop.permute.xlu0 %677
    %v680 = vmul.f32 %v674, %v678
    %682 = vrot.lane.b32.xlu0 %v675, 64
    %v683 = vpop.permute.xlu0 %682
    %v685 = vmul.f32 %v674, %v683
    %687 = vrot.lane.b32.xlu0 %v685, 32
    %v688 = vpop.permute.xlu0 %687
    %v690 = vadd.f32 %v680, %v688
    %v691 = vtanh.pop %v690
    %693 = vrot.lane.b32.xlu0 %v691, 64
    %v694 = vpop.permute.xlu0 %693
    %v696 = vmul.f32 %v674, %v694
    %v697 = vpack.c.bf16 %v696, %v696
    %699 = vrot.lane.b32.xlu0 %v697, 32
    %v700 = vpop.permute.xlu0 %699
    %v705 = vunpack.c.l.b16 %v261
    %v706 = vunpack.c.h.b16 %v261
    %v707 = vunpack.c.l.b16 %v262
    %v708 = vunpack.c.h.b16 %v262
    %v709 = vunpack.c.l.b16 %v263
    %v710 = vunpack.c.h.b16 %v263
    %v711 = vunpack.c.l.b16 %v264
    %v712 = vunpack.c.h.b16 %v264
    %v713 = vpack.c.b16 %v707, %v705
    %v714 = vpack.c.b16 %v708, %v706
    %v715 = vpack.c.b16 %v711, %v709
    %v716 = vpack.c.b16 %v712, %v710
    %v722 = vsel %vm358, %v700, 0
    %724 = vmatprep.subr.bf16.mxu0 0
    %725 = vmatpush1.bf16.msra.mxu0 0
    %726 = vmatprep.subr.bf16.mxu0 0
    %727 = vmatpush1.bf16.msra.mxu0 0
    %728 = vmatprep.subr.bf16.mxu0 0
    %729 = vmatpush1.bf16.msra.mxu0 0
    %730 = vmatprep.subr.bf16.mxu0 0
    %731 = vmatpush1.bf16.msra.mxu0 0
    %732 = vmatprep.subr.bf16.mxu0 0
    %733 = vmatpush1.bf16.msra.mxu0 0
    %734 = vmatprep.subr.bf16.mxu0 0
    %735 = vmatpush1.bf16.msra.mxu0 0
    %736 = vmatprep.subr.bf16.mxu0 %v716
    %737 = vmatpush1.bf16.msra.mxu0 %v715
    %738 = vmatprep.subr.bf16.mxu0 %v714
    %739 = vmatpush1.bf16.msra.mxu0 %v713
    %740 = vmatprep.subr.bf16.mxu0 0
    %741 = vmatpush2.bf16.msra.mxu0 0
    %742 = vmatprep.subr.bf16.mxu0 0
    %743 = vmatpush2.bf16.msra.mxu0 0
    %744 = vmatprep.subr.bf16.mxu0 0
    %745 = vmatpush2.bf16.msra.mxu0 0
    %746 = vmatprep.subr.bf16.mxu0 0
    %747 = vmatpush2.bf16.msra.mxu0 0
    %748 = vmatprep.subr.bf16.mxu0 0
    %749 = vmatpush2.bf16.msra.mxu0 0
    %750 = vmatprep.subr.bf16.mxu0 0
    %751 = vmatpush2.bf16.msra.mxu0 0
    %752 = vmatprep.subr.bf16.mxu0 0
    %753 = vmatpush2.bf16.msra.mxu0 0
    %754 = vmatprep.subr.bf16.mxu0 0
    %755 = vmatpush2.bf16.msra.mxu0 0
    %756 = vmatprep.mubr.bf16.mxu0 0
    %757 = vmatmul.mubr.bf16.gmra.mxu0 %v722
    %v758 = vpop.f32.mrf.mxu0
    %v759 = vadd.f32 0.0, %v758
    %v760 = vpop.f32.mrf.mxu0
    %v761 = vadd.f32 0.0, %v760
    %v762 = vpop.f32.mrf.mxu0
    %v763 = vpop.f32.mrf.mxu0
    %764 = vdwg.mxu0
    %766 = vrot.lane.b32.xlu0 %v759, 120
    %v767 = vpop.permute.xlu0 %766
    %769 = vrot.lane.b32.xlu0 %v759, 112
    %v770 = vpop.permute.xlu0 %769
    %772 = vrot.lane.b32.xlu0 %v759, 104
    %v773 = vpop.permute.xlu0 %772
    %775 = vrot.lane.b32.xlu0 %v759, 96
    %v776 = vpop.permute.xlu0 %775
    %778 = vrot.lane.b32.xlu0 %v759, 88
    %v779 = vpop.permute.xlu0 %778
    %781 = vrot.lane.b32.xlu0 %v759, 80
    %v782 = vpop.permute.xlu0 %781
    %784 = vrot.lane.b32.xlu0 %v759, 72
    %v785 = vpop.permute.xlu0 %784
    %v787 = vcombine.low %v759, %v770
    %v788 = vcombine.high %v759, %v770
    %v790 = vunpack.c.l.s4 1983009808
    %v791 = vunpack.c.0.s8 %v790
    %v792 = vlaneseq
    %v793 = vshrl.u32 %v792, 7
    %v794 = vsub.s32 %v791, %v793
    %v795 = vrot.slane %v787, %v794
    %v797 = vunpack.c.l.s4 1983009808
    %v798 = vunpack.c.0.s8 %v797
    %v799 = vlaneseq
    %v800 = vshrl.u32 %v799, 7
    %v801 = vsub.s32 %v798, %v800
    %v802 = vrot.slane %v788, %v801
    %v803 = vcombine.low %v767, %v773
    %v804 = vcombine.high %v767, %v773
    %v806 = vunpack.c.l.s4 1983009808
    %v807 = vunpack.c.0.s8 %v806
    %v808 = vlaneseq
    %v809 = vshrl.u32 %v808, 7
    %v810 = vsub.s32 %v807, %v809
    %v811 = vrot.slane %v803, %v810
    %v813 = vunpack.c.l.s4 1983009808
    %v814 = vunpack.c.0.s8 %v813
    %v815 = vlaneseq
    %v816 = vshrl.u32 %v815, 7
    %v817 = vsub.s32 %v814, %v816
    %v818 = vrot.slane %v804, %v817
    %v819 = vcombine.low %v776, %v782
    %v820 = vcombine.high %v776, %v782
    %v822 = vunpack.c.l.s4 1983009808
    %v823 = vunpack.c.0.s8 %v822
    %v824 = vlaneseq
    %v825 = vshrl.u32 %v824, 7
    %v826 = vsub.s32 %v823, %v825
    %v827 = vrot.slane %v819, %v826
    %v829 = vunpack.c.l.s4 1983009808
    %v830 = vunpack.c.0.s8 %v829
    %v831 = vlaneseq
    %v832 = vshrl.u32 %v831, 7
    %v833 = vsub.s32 %v830, %v832
    %v834 = vrot.slane %v820, %v833
    %v835 = vcombine.low %v779, %v785
    %v836 = vcombine.high %v779, %v785
    %v838 = vunpack.c.l.s4 1983009808
    %v839 = vunpack.c.0.s8 %v838
    %v840 = vlaneseq
    %v841 = vshrl.u32 %v840, 7
    %v842 = vsub.s32 %v839, %v841
    %v843 = vrot.slane %v835, %v842
    %v845 = vunpack.c.l.s4 1983009808
    %v846 = vunpack.c.0.s8 %v845
    %v847 = vlaneseq
    %v848 = vshrl.u32 %v847, 7
    %v849 = vsub.s32 %v846, %v848
    %v850 = vrot.slane %v836, %v849
    %v851 = vcombine.low %v795, %v811
    %v852 = vcombine.high %v795, %v811
    %v854 = vunpack.c.l.s4 1934713408
    %v855 = vunpack.c.0.s8 %v854
    %v856 = vlaneseq
    %v857 = vshrl.u32 %v856, 7
    %v858 = vsub.s32 %v855, %v857
    %v859 = vrot.slane %v851, %v858
    %v861 = vunpack.c.l.s4 1934713408
    %v862 = vunpack.c.0.s8 %v861
    %v863 = vlaneseq
    %v864 = vshrl.u32 %v863, 7
    %v865 = vsub.s32 %v862, %v864
    %v866 = vrot.slane %v852, %v865
    %v867 = vcombine.low %v802, %v818
    %v868 = vcombine.high %v802, %v818
    %v870 = vunpack.c.l.s4 1934713408
    %v871 = vunpack.c.0.s8 %v870
    %v872 = vlaneseq
    %v873 = vshrl.u32 %v872, 7
    %v874 = vsub.s32 %v871, %v873
    %v875 = vrot.slane %v867, %v874
    %v877 = vunpack.c.l.s4 1934713408
    %v878 = vunpack.c.0.s8 %v877
    %v879 = vlaneseq
    %v880 = vshrl.u32 %v879, 7
    %v881 = vsub.s32 %v878, %v880
    %v882 = vrot.slane %v868, %v881
    %v883 = vcombine.low %v827, %v843
    %v884 = vcombine.high %v827, %v843
    %v886 = vunpack.c.l.s4 1934713408
    %v887 = vunpack.c.0.s8 %v886
    %v888 = vlaneseq
    %v889 = vshrl.u32 %v888, 7
    %v890 = vsub.s32 %v887, %v889
    %v891 = vrot.slane %v883, %v890
    %v893 = vunpack.c.l.s4 1934713408
    %v894 = vunpack.c.0.s8 %v893
    %v895 = vlaneseq
    %v896 = vshrl.u32 %v895, 7
    %v897 = vsub.s32 %v894, %v896
    %v898 = vrot.slane %v884, %v897
    %v899 = vcombine.low %v834, %v850
    %v900 = vcombine.high %v834, %v850
    %v902 = vunpack.c.l.s4 1934713408
    %v903 = vunpack.c.0.s8 %v902
    %v904 = vlaneseq
    %v905 = vshrl.u32 %v904, 7
    %v906 = vsub.s32 %v903, %v905
    %v907 = vrot.slane %v899, %v906
    %v909 = vunpack.c.l.s4 1934713408
    %v910 = vunpack.c.0.s8 %v909
    %v911 = vlaneseq
    %v912 = vshrl.u32 %v911, 7
    %v913 = vsub.s32 %v910, %v912
    %v914 = vrot.slane %v900, %v913
    %v915 = vcombine.low %v859, %v891
    %v916 = vcombine.high %v859, %v891
    %v917 = vcombine.low %v866, %v898
    %v918 = vcombine.high %v866, %v898
    %v919 = vcombine.low %v875, %v907
    %v920 = vcombine.high %v875, %v907
    %v921 = vcombine.low %v882, %v914
    %v922 = vcombine.high %v882, %v914
    %v923 = vpack.c.bf16 %v915, %v915
    %v924 = vpack.c.bf16 %v916, %v916
    %v925 = vpack.c.bf16 %v917, %v917
    %v926 = vpack.c.bf16 %v918, %v918
    %v927 = vpack.c.bf16 %v919, %v919
    %v928 = vpack.c.bf16 %v920, %v920
    %v929 = vpack.c.bf16 %v921, %v921
    %v930 = vpack.c.bf16 %v922, %v922
    %931 = vrot.lane.b32.xlu0 %v759, 64
    %v932 = vpop.permute.xlu0 %931
    %933 = vrot.lane.b32.xlu0 %v767, 64
    %v934 = vpop.permute.xlu0 %933
    %935 = vrot.lane.b32.xlu0 %v770, 64
    %v936 = vpop.permute.xlu0 %935
    %937 = vrot.lane.b32.xlu0 %v773, 64
    %v938 = vpop.permute.xlu0 %937
    %939 = vrot.lane.b32.xlu0 %v776, 64
    %v940 = vpop.permute.xlu0 %939
    %941 = vrot.lane.b32.xlu0 %v779, 64
    %v942 = vpop.permute.xlu0 %941
    %943 = vrot.lane.b32.xlu0 %v782, 64
    %v944 = vpop.permute.xlu0 %943
    %945 = vrot.lane.b32.xlu0 %v785, 64
    %v946 = vpop.permute.xlu0 %945
    %v955 = vcombine.low %v932, %v936
    %v956 = vcombine.high %v932, %v936
    %v958 = vunpack.c.l.s4 1983009808
    %v959 = vunpack.c.0.s8 %v958
    %v960 = vlaneseq
    %v961 = vshrl.u32 %v960, 7
    %v962 = vsub.s32 %v959, %v961
    %v963 = vrot.slane %v955, %v962
    %v965 = vunpack.c.l.s4 1983009808
    %v966 = vunpack.c.0.s8 %v965
    %v967 = vlaneseq
    %v968 = vshrl.u32 %v967, 7
    %v969 = vsub.s32 %v966, %v968
    %v970 = vrot.slane %v956, %v969
    %v971 = vcombine.low %v934, %v938
    %v972 = vcombine.high %v934, %v938
    %v974 = vunpack.c.l.s4 1983009808
    %v975 = vunpack.c.0.s8 %v974
    %v976 = vlaneseq
    %v977 = vshrl.u32 %v976, 7
    %v978 = vsub.s32 %v975, %v977
    %v979 = vrot.slane %v971, %v978
    %v981 = vunpack.c.l.s4 1983009808
    %v982 = vunpack.c.0.s8 %v981
    %v983 = vlaneseq
    %v984 = vshrl.u32 %v983, 7
    %v985 = vsub.s32 %v982, %v984
    %v986 = vrot.slane %v972, %v985
    %v987 = vcombine.low %v940, %v944
    %v988 = vcombine.high %v940, %v944
    %v990 = vunpack.c.l.s4 1983009808
    %v991 = vunpack.c.0.s8 %v990
    %v992 = vlaneseq
    %v993 = vshrl.u32 %v992, 7
    %v994 = vsub.s32 %v991, %v993
    %v995 = vrot.slane %v987, %v994
    %v997 = vunpack.c.l.s4 1983009808
    %v998 = vunpack.c.0.s8 %v997
    %v999 = vlaneseq
    %v1000 = vshrl.u32 %v999, 7
    %v1001 = vsub.s32 %v998, %v1000
    %v1002 = vrot.slane %v988, %v1001
    %v1003 = vcombine.low %v942, %v946
    %v1004 = vcombine.high %v942, %v946
    %v1006 = vunpack.c.l.s4 1983009808
    %v1007 = vunpack.c.0.s8 %v1006
    %v1008 = vlaneseq
    %v1009 = vshrl.u32 %v1008, 7
    %v1010 = vsub.s32 %v1007, %v1009
    %v1011 = vrot.slane %v1003, %v1010
    %v1013 = vunpack.c.l.s4 1983009808
    %v1014 = vunpack.c.0.s8 %v1013
    %v1015 = vlaneseq
    %v1016 = vshrl.u32 %v1015, 7
    %v1017 = vsub.s32 %v1014, %v1016
    %v1018 = vrot.slane %v1004, %v1017
    %v1019 = vcombine.low %v963, %v979
    %v1020 = vcombine.high %v963, %v979
    %v1022 = vunpack.c.l.s4 1934713408
    %v1023 = vunpack.c.0.s8 %v1022
    %v1024 = vlaneseq
    %v1025 = vshrl.u32 %v1024, 7
    %v1026 = vsub.s32 %v1023, %v1025
    %v1027 = vrot.slane %v1019, %v1026
    %v1029 = vunpack.c.l.s4 1934713408
    %v1030 = vunpack.c.0.s8 %v1029
    %v1031 = vlaneseq
    %v1032 = vshrl.u32 %v1031, 7
    %v1033 = vsub.s32 %v1030, %v1032
    %v1034 = vrot.slane %v1020, %v1033
    %v1035 = vcombine.low %v970, %v986
    %v1036 = vcombine.high %v970, %v986
    %v1038 = vunpack.c.l.s4 1934713408
    %v1039 = vunpack.c.0.s8 %v1038
    %v1040 = vlaneseq
    %v1041 = vshrl.u32 %v1040, 7
    %v1042 = vsub.s32 %v1039, %v1041
    %v1043 = vrot.slane %v1035, %v1042
    %v1045 = vunpack.c.l.s4 1934713408
    %v1046 = vunpack.c.0.s8 %v1045
    %v1047 = vlaneseq
    %v1048 = vshrl.u32 %v1047, 7
    %v1049 = vsub.s32 %v1046, %v1048
    %v1050 = vrot.slane %v1036, %v1049
    %v1051 = vcombine.low %v995, %v1011
    %v1052 = vcombine.high %v995, %v1011
    %v1054 = vunpack.c.l.s4 1934713408
    %v1055 = vunpack.c.0.s8 %v1054
    %v1056 = vlaneseq
    %v1057 = vshrl.u32 %v1056, 7
    %v1058 = vsub.s32 %v1055, %v1057
    %v1059 = vrot.slane %v1051, %v1058
    %v1061 = vunpack.c.l.s4 1934713408
    %v1062 = vunpack.c.0.s8 %v1061
    %v1063 = vlaneseq
    %v1064 = vshrl.u32 %v1063, 7
    %v1065 = vsub.s32 %v1062, %v1064
    %v1066 = vrot.slane %v1052, %v1065
    %v1067 = vcombine.low %v1002, %v1018
    %v1068 = vcombine.high %v1002, %v1018
    %v1070 = vunpack.c.l.s4 1934713408
    %v1071 = vunpack.c.0.s8 %v1070
    %v1072 = vlaneseq
    %v1073 = vshrl.u32 %v1072, 7
    %v1074 = vsub.s32 %v1071, %v1073
    %v1075 = vrot.slane %v1067, %v1074
    %v1077 = vunpack.c.l.s4 1934713408
    %v1078 = vunpack.c.0.s8 %v1077
    %v1079 = vlaneseq
    %v1080 = vshrl.u32 %v1079, 7
    %v1081 = vsub.s32 %v1078, %v1080
    %v1082 = vrot.slane %v1068, %v1081
    %v1083 = vcombine.low %v1027, %v1059
    %v1084 = vcombine.high %v1027, %v1059
    %v1085 = vcombine.low %v1034, %v1066
    %v1086 = vcombine.high %v1034, %v1066
    %v1087 = vcombine.low %v1043, %v1075
    %v1088 = vcombine.high %v1043, %v1075
    %v1089 = vcombine.low %v1050, %v1082
    %v1090 = vcombine.high %v1050, %v1082
    %v1091 = vpack.c.bf16 %v1083, %v1083
    %v1092 = vpack.c.bf16 %v1084, %v1084
    %v1093 = vpack.c.bf16 %v1085, %v1085
    %v1094 = vpack.c.bf16 %v1086, %v1086
    %v1095 = vpack.c.bf16 %v1087, %v1087
    %v1096 = vpack.c.bf16 %v1088, %v1088
    %v1097 = vpack.c.bf16 %v1089, %v1089
    %v1098 = vpack.c.bf16 %v1090, %v1090
    %1100 = vrot.lane.b32.xlu0 %v761, 120
    %v1101 = vpop.permute.xlu0 %1100
    %1103 = vrot.lane.b32.xlu0 %v761, 112
    %v1104 = vpop.permute.xlu0 %1103
    %1106 = vrot.lane.b32.xlu0 %v761, 104
    %v1107 = vpop.permute.xlu0 %1106
    %1109 = vrot.lane.b32.xlu0 %v761, 96
    %v1110 = vpop.permute.xlu0 %1109
    %1112 = vrot.lane.b32.xlu0 %v761, 88
    %v1113 = vpop.permute.xlu0 %1112
    %1115 = vrot.lane.b32.xlu0 %v761, 80
    %v1116 = vpop.permute.xlu0 %1115
    %1118 = vrot.lane.b32.xlu0 %v761, 72
    %v1119 = vpop.permute.xlu0 %1118
    %v1121 = vcombine.low %v761, %v1104
    %v1122 = vcombine.high %v761, %v1104
    %v1124 = vunpack.c.l.s4 1983009808
    %v1125 = vunpack.c.0.s8 %v1124
    %v1126 = vlaneseq
    %v1127 = vshrl.u32 %v1126, 7
    %v1128 = vsub.s32 %v1125, %v1127
    %v1129 = vrot.slane %v1121, %v1128
    %v1131 = vunpack.c.l.s4 1983009808
    %v1132 = vunpack.c.0.s8 %v1131
    %v1133 = vlaneseq
    %v1134 = vshrl.u32 %v1133, 7
    %v1135 = vsub.s32 %v1132, %v1134
    %v1136 = vrot.slane %v1122, %v1135
    %v1137 = vcombine.low %v1101, %v1107
    %v1138 = vcombine.high %v1101, %v1107
    %v1140 = vunpack.c.l.s4 1983009808
    %v1141 = vunpack.c.0.s8 %v1140
    %v1142 = vlaneseq
    %v1143 = vshrl.u32 %v1142, 7
    %v1144 = vsub.s32 %v1141, %v1143
    %v1145 = vrot.slane %v1137, %v1144
    %v1147 = vunpack.c.l.s4 1983009808
    %v1148 = vunpack.c.0.s8 %v1147
    %v1149 = vlaneseq
    %v1150 = vshrl.u32 %v1149, 7
    %v1151 = vsub.s32 %v1148, %v1150
    %v1152 = vrot.slane %v1138, %v1151
    %v1153 = vcombine.low %v1110, %v1116
    %v1154 = vcombine.high %v1110, %v1116
    %v1156 = vunpack.c.l.s4 1983009808
    %v1157 = vunpack.c.0.s8 %v1156
    %v1158 = vlaneseq
    %v1159 = vshrl.u32 %v1158, 7
    %v1160 = vsub.s32 %v1157, %v1159
    %v1161 = vrot.slane %v1153, %v1160
    %v1163 = vunpack.c.l.s4 1983009808
    %v1164 = vunpack.c.0.s8 %v1163
    %v1165 = vlaneseq
    %v1166 = vshrl.u32 %v1165, 7
    %v1167 = vsub.s32 %v1164, %v1166
    %v1168 = vrot.slane %v1154, %v1167
    %v1169 = vcombine.low %v1113, %v1119
    %v1170 = vcombine.high %v1113, %v1119
    %v1172 = vunpack.c.l.s4 1983009808
    %v1173 = vunpack.c.0.s8 %v1172
    %v1174 = vlaneseq
    %v1175 = vshrl.u32 %v1174, 7
    %v1176 = vsub.s32 %v1173, %v1175
    %v1177 = vrot.slane %v1169, %v1176
    %v1179 = vunpack.c.l.s4 1983009808
    %v1180 = vunpack.c.0.s8 %v1179
    %v1181 = vlaneseq
    %v1182 = vshrl.u32 %v1181, 7
    %v1183 = vsub.s32 %v1180, %v1182
    %v1184 = vrot.slane %v1170, %v1183
    %v1185 = vcombine.low %v1129, %v1145
    %v1186 = vcombine.high %v1129, %v1145
    %v1188 = vunpack.c.l.s4 1934713408
    %v1189 = vunpack.c.0.s8 %v1188
    %v1190 = vlaneseq
    %v1191 = vshrl.u32 %v1190, 7
    %v1192 = vsub.s32 %v1189, %v1191
    %v1193 = vrot.slane %v1185, %v1192
    %v1195 = vunpack.c.l.s4 1934713408
    %v1196 = vunpack.c.0.s8 %v1195
    %v1197 = vlaneseq
    %v1198 = vshrl.u32 %v1197, 7
    %v1199 = vsub.s32 %v1196, %v1198
    %v1200 = vrot.slane %v1186, %v1199
    %v1201 = vcombine.low %v1136, %v1152
    %v1202 = vcombine.high %v1136, %v1152
    %v1204 = vunpack.c.l.s4 1934713408
    %v1205 = vunpack.c.0.s8 %v1204
    %v1206 = vlaneseq
    %v1207 = vshrl.u32 %v1206, 7
    %v1208 = vsub.s32 %v1205, %v1207
    %v1209 = vrot.slane %v1201, %v1208
    %v1211 = vunpack.c.l.s4 1934713408
    %v1212 = vunpack.c.0.s8 %v1211
    %v1213 = vlaneseq
    %v1214 = vshrl.u32 %v1213, 7
    %v1215 = vsub.s32 %v1212, %v1214
    %v1216 = vrot.slane %v1202, %v1215
    %v1217 = vcombine.low %v1161, %v1177
    %v1218 = vcombine.high %v1161, %v1177
    %v1220 = vunpack.c.l.s4 1934713408
    %v1221 = vunpack.c.0.s8 %v1220
    %v1222 = vlaneseq
    %v1223 = vshrl.u32 %v1222, 7
    %v1224 = vsub.s32 %v1221, %v1223
    %v1225 = vrot.slane %v1217, %v1224
    %v1227 = vunpack.c.l.s4 1934713408
    %v1228 = vunpack.c.0.s8 %v1227
    %v1229 = vlaneseq
    %v1230 = vshrl.u32 %v1229, 7
    %v1231 = vsub.s32 %v1228, %v1230
    %v1232 = vrot.slane %v1218, %v1231
    %v1233 = vcombine.low %v1168, %v1184
    %v1234 = vcombine.high %v1168, %v1184
    %v1236 = vunpack.c.l.s4 1934713408
    %v1237 = vunpack.c.0.s8 %v1236
    %v1238 = vlaneseq
    %v1239 = vshrl.u32 %v1238, 7
    %v1240 = vsub.s32 %v1237, %v1239
    %v1241 = vrot.slane %v1233, %v1240
    %v1243 = vunpack.c.l.s4 1934713408
    %v1244 = vunpack.c.0.s8 %v1243
    %v1245 = vlaneseq
    %v1246 = vshrl.u32 %v1245, 7
    %v1247 = vsub.s32 %v1244, %v1246
    %v1248 = vrot.slane %v1234, %v1247
    %v1249 = vcombine.low %v1193, %v1225
    %v1250 = vcombine.high %v1193, %v1225
    %v1251 = vcombine.low %v1200, %v1232
    %v1252 = vcombine.high %v1200, %v1232
    %v1253 = vcombine.low %v1209, %v1241
    %v1254 = vcombine.high %v1209, %v1241
    %v1255 = vcombine.low %v1216, %v1248
    %v1256 = vcombine.high %v1216, %v1248
    %v1257 = vpack.c.bf16 %v1249, %v1249
    %v1258 = vpack.c.bf16 %v1250, %v1250
    %v1259 = vpack.c.bf16 %v1251, %v1251
    %v1260 = vpack.c.bf16 %v1252, %v1252
    %v1261 = vpack.c.bf16 %v1253, %v1253
    %v1262 = vpack.c.bf16 %v1254, %v1254
    %v1263 = vpack.c.bf16 %v1255, %v1255
    %v1264 = vpack.c.bf16 %v1256, %v1256
    %vm1265 = vcmask 64512
    %v1267 = vsel %vm1265, %v923, 0
    %v1270 = vsel %vm1265, %v1091, 0
    %1272 = vmatprep.subr.bf16.mxu0 0
    %1273 = vmatpush1.bf16.xpose.msra.mxu0 0
    %1274 = vmatprep.subr.bf16.mxu0 0
    %1275 = vmatpush1.bf16.xpose.msra.mxu0 0
    %1276 = vmatprep.subr.bf16.mxu0 0
    %1277 = vmatpush1.bf16.xpose.msra.mxu0 0
    %1278 = vmatprep.subr.bf16.mxu0 0
    %1279 = vmatpush1.bf16.xpose.msra.mxu0 0
    %1280 = vmatprep.subr.bf16.mxu0 0
    %1281 = vmatpush1.bf16.xpose.msra.mxu0 0
    %1282 = vmatprep.subr.bf16.mxu0 0
    %1283 = vmatpush1.bf16.xpose.msra.mxu0 0
    %1284 = vmatprep.subr.bf16.mxu0 0
    %1285 = vmatpush1.bf16.xpose.msra.mxu0 0
    %1286 = vmatprep.subr.bf16.mxu0 0
    %1287 = vmatpush1.bf16.xpose.msra.mxu0 %v1270
    %1288 = vmatprep.subr.bf16.mxu0 0
    %1289 = vmatpush2.bf16.xpose.msra.mxu0 0
    %1290 = vmatprep.subr.bf16.mxu0 0
    %1291 = vmatpush2.bf16.xpose.msra.mxu0 0
    %1292 = vmatprep.subr.bf16.mxu0 0
    %1293 = vmatpush2.bf16.xpose.msra.mxu0 0
    %1294 = vmatprep.subr.bf16.mxu0 0
    %1295 = vmatpush2.bf16.xpose.msra.mxu0 0
    %1296 = vmatprep.subr.bf16.mxu0 0
    %1297 = vmatpush2.bf16.xpose.msra.mxu0 0
    %1298 = vmatprep.subr.bf16.mxu0 0
    %1299 = vmatpush2.bf16.xpose.msra.mxu0 0
    %1300 = vmatprep.subr.bf16.mxu0 0
    %1301 = vmatpush2.bf16.xpose.msra.mxu0 0
    %1302 = vmatprep.subr.bf16.mxu0 0
    %1303 = vmatpush2.bf16.xpose.msra.mxu0 0
    %1304 = vmatprep.mubr.bf16.mxu0 0
    %1305 = vmatmul.mubr.bf16.gmra.mxu0 %v1267
    %v1306 = vpop.f32.mrf.mxu0
    %v1307 = vadd.f32 0.0, %v1306
    %v1308 = vpop.f32.mrf.mxu0
    %v1309 = vpop.f32.mrf.mxu0
    %v1310 = vpop.f32.mrf.mxu0
    %1311 = vdwg.mxu0
    %v1313 = vsel %vm1265, %v924, 0
    %v1316 = vsel %vm1265, %v1092, 0
    %1318 = vmatprep.subr.bf16.mxu0 0
    %1319 = vmatpush1.bf16.xpose.msra.mxu0 0
    %1320 = vmatprep.subr.bf16.mxu0 0
    %1321 = vmatpush1.bf16.xpose.msra.mxu0 0
    %1322 = vmatprep.subr.bf16.mxu0 0
    %1323 = vmatpush1.bf16.xpose.msra.mxu0 0
    %1324 = vmatprep.subr.bf16.mxu0 0
    %1325 = vmatpush1.bf16.xpose.msra.mxu0 0
    %1326 = vmatprep.subr.bf16.mxu0 0
    %1327 = vmatpush1.bf16.xpose.msra.mxu0 0
    %1328 = vmatprep.subr.bf16.mxu0 0
    %1329 = vmatpush1.bf16.xpose.msra.mxu0 0
    %1330 = vmatprep.subr.bf16.mxu0 0
    %1331 = vmatpush1.bf16.xpose.msra.mxu0 0
    %1332 = vmatprep.subr.bf16.mxu0 0
    %1333 = vmatpush1.bf16.xpose.msra.mxu0 %v1316
    %1334 = vmatprep.subr.bf16.mxu0 0
    %1335 = vmatpush2.bf16.xpose.msra.mxu0 0
    %1336 = vmatprep.subr.bf16.mxu0 0
    %1337 = vmatpush2.bf16.xpose.msra.mxu0 0
    %1338 = vmatprep.subr.bf16.mxu0 0
    %1339 = vmatpush2.bf16.xpose.msra.mxu0 0
    %1340 = vmatprep.subr.bf16.mxu0 0
    %1341 = vmatpush2.bf16.xpose.msra.mxu0 0
    %1342 = vmatprep.subr.bf16.mxu0 0
    %1343 = vmatpush2.bf16.xpose.msra.mxu0 0
    %1344 = vmatprep.subr.bf16.mxu0 0
    %1345 = vmatpush2.bf16.xpose.msra.mxu0 0
    %1346 = vmatprep.subr.bf16.mxu0 0
    %1347 = vmatpush2.bf16.xpose.msra.mxu0 0
    %1348 = vmatprep.subr.bf16.mxu0 0
    %1349 = vmatpush2.bf16.xpose.msra.mxu0 0
    %1350 = vmatprep.mubr.bf16.mxu0 0
    %1351 = vmatmul.mubr.bf16.gmra.mxu0 %v1313
    %v1352 = vpop.f32.mrf.mxu0
    %v1353 = vadd.f32 0.0, %v1352
    %v1354 = vpop.f32.mrf.mxu0
    %v1355 = vpop.f32.mrf.mxu0
    %v1356 = vpop.f32.mrf.mxu0
    %1357 = vdwg.mxu0
    %v1359 = vsel %vm1265, %v925, 0
    %v1362 = vsel %vm1265, %v1093, 0
    %1364 = vmatprep.subr.bf16.mxu0 0
    %1365 = vmatpush1.bf16.xpose.msra.mxu0 0
    %1366 = vmatprep.subr.bf16.mxu0 0
    %1367 = vmatpush1.bf16.xpose.msra.mxu0 0
    %1368 = vmatprep.subr.bf16.mxu0 0
    %1369 = vmatpush1.bf16.xpose.msra.mxu0 0
    %1370 = vmatprep.subr.bf16.mxu0 0
    %1371 = vmatpush1.bf16.xpose.msra.mxu0 0
    %1372 = vmatprep.subr.bf16.mxu0 0
    %1373 = vmatpush1.bf16.xpose.msra.mxu0 0
    %1374 = vmatprep.subr.bf16.mxu0 0
    %1375 = vmatpush1.bf16.xpose.msra.mxu0 0
    %1376 = vmatprep.subr.bf16.mxu0 0
    %1377 = vmatpush1.bf16.xpose.msra.mxu0 0
    %1378 = vmatprep.subr.bf16.mxu0 0
    %1379 = vmatpush1.bf16.xpose.msra.mxu0 %v1362
    %1380 = vmatprep.subr.bf16.mxu0 0
    %1381 = vmatpush2.bf16.xpose.msra.mxu0 0
    %1382 = vmatprep.subr.bf16.mxu0 0
    %1383 = vmatpush2.bf16.xpose.msra.mxu0 0
    %1384 = vmatprep.subr.bf16.mxu0 0
    %1385 = vmatpush2.bf16.xpose.msra.mxu0 0
    %1386 = vmatprep.subr.bf16.mxu0 0
    %1387 = vmatpush2.bf16.xpose.msra.mxu0 0
    %1388 = vmatprep.subr.bf16.mxu0 0
    %1389 = vmatpush2.bf16.xpose.msra.mxu0 0
    %1390 = vmatprep.subr.bf16.mxu0 0
    %1391 = vmatpush2.bf16.xpose.msra.mxu0 0
    %1392 = vmatprep.subr.bf16.mxu0 0
    %1393 = vmatpush2.bf16.xpose.msra.mxu0 0
    %1394 = vmatprep.subr.bf16.mxu0 0
    %1395 = vmatpush2.bf16.xpose.msra.mxu0 0
    %1396 = vmatprep.mubr.bf16.mxu0 0
    %1397 = vmatmul.mubr.bf16.gmra.mxu0 %v1359
    %v1398 = vpop.f32.mrf.mxu0
    %v1399 = vadd.f32 0.0, %v1398
    %v1400 = vpop.f32.mrf.mxu0
    %v1401 = vpop.f32.mrf.mxu0
    %v1402 = vpop.f32.mrf.mxu0
    %1403 = vdwg.mxu0
    %v1405 = vsel %vm1265, %v926, 0
    %v1408 = vsel %vm1265, %v1094, 0
    %1410 = vmatprep.subr.bf16.mxu0 0
    %1411 = vmatpush1.bf16.xpose.msra.mxu0 0
    %1412 = vmatprep.subr.bf16.mxu0 0
    %1413 = vmatpush1.bf16.xpose.msra.mxu0 0
    %1414 = vmatprep.subr.bf16.mxu0 0
    %1415 = vmatpush1.bf16.xpose.msra.mxu0 0
    %1416 = vmatprep.subr.bf16.mxu0 0
    %1417 = vmatpush1.bf16.xpose.msra.mxu0 0
    %1418 = vmatprep.subr.bf16.mxu0 0
    %1419 = vmatpush1.bf16.xpose.msra.mxu0 0
    %1420 = vmatprep.subr.bf16.mxu0 0
    %1421 = vmatpush1.bf16.xpose.msra.mxu0 0
    %1422 = vmatprep.subr.bf16.mxu0 0
    %1423 = vmatpush1.bf16.xpose.msra.mxu0 0
    %1424 = vmatprep.subr.bf16.mxu0 0
    %1425 = vmatpush1.bf16.xpose.msra.mxu0 %v1408
    %1426 = vmatprep.subr.bf16.mxu0 0
    %1427 = vmatpush2.bf16.xpose.msra.mxu0 0
    %1428 = vmatprep.subr.bf16.mxu0 0
    %1429 = vmatpush2.bf16.xpose.msra.mxu0 0
    %1430 = vmatprep.subr.bf16.mxu0 0
    %1431 = vmatpush2.bf16.xpose.msra.mxu0 0
    %1432 = vmatprep.subr.bf16.mxu0 0
    %1433 = vmatpush2.bf16.xpose.msra.mxu0 0
    %1434 = vmatprep.subr.bf16.mxu0 0
    %1435 = vmatpush2.bf16.xpose.msra.mxu0 0
    %1436 = vmatprep.subr.bf16.mxu0 0
    %1437 = vmatpush2.bf16.xpose.msra.mxu0 0
    %1438 = vmatprep.subr.bf16.mxu0 0
    %1439 = vmatpush2.bf16.xpose.msra.mxu0 0
    %1440 = vmatprep.subr.bf16.mxu0 0
    %1441 = vmatpush2.bf16.xpose.msra.mxu0 0
    %1442 = vmatprep.mubr.bf16.mxu0 0
    %1443 = vmatmul.mubr.bf16.gmra.mxu0 %v1405
    %v1444 = vpop.f32.mrf.mxu0
    %v1445 = vadd.f32 0.0, %v1444
    %v1446 = vpop.f32.mrf.mxu0
    %v1447 = vpop.f32.mrf.mxu0
    %v1448 = vpop.f32.mrf.mxu0
    %1449 = vdwg.mxu0
    %v1451 = vsel %vm1265, %v927, 0
    %v1454 = vsel %vm1265, %v1095, 0
    %1456 = vmatprep.subr.bf16.mxu0 0
    %1457 = vmatpush1.bf16.xpose.msra.mxu0 0
    %1458 = vmatprep.subr.bf16.mxu0 0
    %1459 = vmatpush1.bf16.xpose.msra.mxu0 0
    %1460 = vmatprep.subr.bf16.mxu0 0
    %1461 = vmatpush1.bf16.xpose.msra.mxu0 0
    %1462 = vmatprep.subr.bf16.mxu0 0
    %1463 = vmatpush1.bf16.xpose.msra.mxu0 0
    %1464 = vmatprep.subr.bf16.mxu0 0
    %1465 = vmatpush1.bf16.xpose.msra.mxu0 0
    %1466 = vmatprep.subr.bf16.mxu0 0
    %1467 = vmatpush1.bf16.xpose.msra.mxu0 0
    %1468 = vmatprep.subr.bf16.mxu0 0
    %1469 = vmatpush1.bf16.xpose.msra.mxu0 0
    %1470 = vmatprep.subr.bf16.mxu0 0
    %1471 = vmatpush1.bf16.xpose.msra.mxu0 %v1454
    %1472 = vmatprep.subr.bf16.mxu0 0
    %1473 = vmatpush2.bf16.xpose.msra.mxu0 0
    %1474 = vmatprep.subr.bf16.mxu0 0
    %1475 = vmatpush2.bf16.xpose.msra.mxu0 0
    %1476 = vmatprep.subr.bf16.mxu0 0
    %1477 = vmatpush2.bf16.xpose.msra.mxu0 0
    %1478 = vmatprep.subr.bf16.mxu0 0
    %1479 = vmatpush2.bf16.xpose.msra.mxu0 0
    %1480 = vmatprep.subr.bf16.mxu0 0
    %1481 = vmatpush2.bf16.xpose.msra.mxu0 0
    %1482 = vmatprep.subr.bf16.mxu0 0
    %1483 = vmatpush2.bf16.xpose.msra.mxu0 0
    %1484 = vmatprep.subr.bf16.mxu0 0
    %1485 = vmatpush2.bf16.xpose.msra.mxu0 0
    %1486 = vmatprep.subr.bf16.mxu0 0
    %1487 = vmatpush2.bf16.xpose.msra.mxu0 0
    %1488 = vmatprep.mubr.bf16.mxu0 0
    %1489 = vmatmul.mubr.bf16.gmra.mxu0 %v1451
    %v1490 = vpop.f32.mrf.mxu0
    %v1491 = vadd.f32 0.0, %v1490
    %v1492 = vpop.f32.mrf.mxu0
    %v1493 = vpop.f32.mrf.mxu0
    %v1494 = vpop.f32.mrf.mxu0
    %1495 = vdwg.mxu0
    %v1497 = vsel %vm1265, %v928, 0
    %v1500 = vsel %vm1265, %v1096, 0
    %1502 = vmatprep.subr.bf16.mxu0 0
    %1503 = vmatpush1.bf16.xpose.msra.mxu0 0
    %1504 = vmatprep.subr.bf16.mxu0 0
    %1505 = vmatpush1.bf16.xpose.msra.mxu0 0
    %1506 = vmatprep.subr.bf16.mxu0 0
    %1507 = vmatpush1.bf16.xpose.msra.mxu0 0
    %1508 = vmatprep.subr.bf16.mxu0 0
    %1509 = vmatpush1.bf16.xpose.msra.mxu0 0
    %1510 = vmatprep.subr.bf16.mxu0 0
    %1511 = vmatpush1.bf16.xpose.msra.mxu0 0
    %1512 = vmatprep.subr.bf16.mxu0 0
    %1513 = vmatpush1.bf16.xpose.msra.mxu0 0
    %1514 = vmatprep.subr.bf16.mxu0 0
    %1515 = vmatpush1.bf16.xpose.msra.mxu0 0
    %1516 = vmatprep.subr.bf16.mxu0 0
    %1517 = vmatpush1.bf16.xpose.msra.mxu0 %v1500
    %1518 = vmatprep.subr.bf16.mxu0 0
    %1519 = vmatpush2.bf16.xpose.msra.mxu0 0
    %1520 = vmatprep.subr.bf16.mxu0 0
    %1521 = vmatpush2.bf16.xpose.msra.mxu0 0
    %1522 = vmatprep.subr.bf16.mxu0 0
    %1523 = vmatpush2.bf16.xpose.msra.mxu0 0
    %1524 = vmatprep.subr.bf16.mxu0 0
    %1525 = vmatpush2.bf16.xpose.msra.mxu0 0
    %1526 = vmatprep.subr.bf16.mxu0 0
    %1527 = vmatpush2.bf16.xpose.msra.mxu0 0
    %1528 = vmatprep.subr.bf16.mxu0 0
    %1529 = vmatpush2.bf16.xpose.msra.mxu0 0
    %1530 = vmatprep.subr.bf16.mxu0 0
    %1531 = vmatpush2.bf16.xpose.msra.mxu0 0
    %1532 = vmatprep.subr.bf16.mxu0 0
    %1533 = vmatpush2.bf16.xpose.msra.mxu0 0
    %1534 = vmatprep.mubr.bf16.mxu0 0
    %1535 = vmatmul.mubr.bf16.gmra.mxu0 %v1497
    %v1536 = vpop.f32.mrf.mxu0
    %v1537 = vadd.f32 0.0, %v1536
    %v1538 = vpop.f32.mrf.mxu0
    %v1539 = vpop.f32.mrf.mxu0
    %v1540 = vpop.f32.mrf.mxu0
    %1541 = vdwg.mxu0
    %v1543 = vsel %vm1265, %v929, 0
    %v1546 = vsel %vm1265, %v1097, 0
    %1548 = vmatprep.subr.bf16.mxu0 0
    %1549 = vmatpush1.bf16.xpose.msra.mxu0 0
    %1550 = vmatprep.subr.bf16.mxu0 0
    %1551 = vmatpush1.bf16.xpose.msra.mxu0 0
    %1552 = vmatprep.subr.bf16.mxu0 0
    %1553 = vmatpush1.bf16.xpose.msra.mxu0 0
    %1554 = vmatprep.subr.bf16.mxu0 0
    %1555 = vmatpush1.bf16.xpose.msra.mxu0 0
    %1556 = vmatprep.subr.bf16.mxu0 0
    %1557 = vmatpush1.bf16.xpose.msra.mxu0 0
    %1558 = vmatprep.subr.bf16.mxu0 0
    %1559 = vmatpush1.bf16.xpose.msra.mxu0 0
    %1560 = vmatprep.subr.bf16.mxu0 0
    %1561 = vmatpush1.bf16.xpose.msra.mxu0 0
    %1562 = vmatprep.subr.bf16.mxu0 0
    %1563 = vmatpush1.bf16.xpose.msra.mxu0 %v1546
    %1564 = vmatprep.subr.bf16.mxu0 0
    %1565 = vmatpush2.bf16.xpose.msra.mxu0 0
    %1566 = vmatprep.subr.bf16.mxu0 0
    %1567 = vmatpush2.bf16.xpose.msra.mxu0 0
    %1568 = vmatprep.subr.bf16.mxu0 0
    %1569 = vmatpush2.bf16.xpose.msra.mxu0 0
    %1570 = vmatprep.subr.bf16.mxu0 0
    %1571 = vmatpush2.bf16.xpose.msra.mxu0 0
    %1572 = vmatprep.subr.bf16.mxu0 0
    %1573 = vmatpush2.bf16.xpose.msra.mxu0 0
    %1574 = vmatprep.subr.bf16.mxu0 0
    %1575 = vmatpush2.bf16.xpose.msra.mxu0 0
    %1576 = vmatprep.subr.bf16.mxu0 0
    %1577 = vmatpush2.bf16.xpose.msra.mxu0 0
    %1578 = vmatprep.subr.bf16.mxu0 0
    %1579 = vmatpush2.bf16.xpose.msra.mxu0 0
    %1580 = vmatprep.mubr.bf16.mxu0 0
    %1581 = vmatmul.mubr.bf16.gmra.mxu0 %v1543
    %v1582 = vpop.f32.mrf.mxu0
    %v1583 = vadd.f32 0.0, %v1582
    %v1584 = vpop.f32.mrf.mxu0
    %v1585 = vpop.f32.mrf.mxu0
    %v1586 = vpop.f32.mrf.mxu0
    %1587 = vdwg.mxu0
    %v1589 = vsel %vm1265, %v930, 0
    %v1592 = vsel %vm1265, %v1098, 0
    %1594 = vmatprep.subr.bf16.mxu0 0
    %1595 = vmatpush1.bf16.xpose.msra.mxu0 0
    %1596 = vmatprep.subr.bf16.mxu0 0
    %1597 = vmatpush1.bf16.xpose.msra.mxu0 0
    %1598 = vmatprep.subr.bf16.mxu0 0
    %1599 = vmatpush1.bf16.xpose.msra.mxu0 0
    %1600 = vmatprep.subr.bf16.mxu0 0
    %1601 = vmatpush1.bf16.xpose.msra.mxu0 0
    %1602 = vmatprep.subr.bf16.mxu0 0
    %1603 = vmatpush1.bf16.xpose.msra.mxu0 0
    %1604 = vmatprep.subr.bf16.mxu0 0
    %1605 = vmatpush1.bf16.xpose.msra.mxu0 0
    %1606 = vmatprep.subr.bf16.mxu0 0
    %1607 = vmatpush1.bf16.xpose.msra.mxu0 0
    %1608 = vmatprep.subr.bf16.mxu0 0
    %1609 = vmatpush1.bf16.xpose.msra.mxu0 %v1592
    %1610 = vmatprep.subr.bf16.mxu0 0
    %1611 = vmatpush2.bf16.xpose.msra.mxu0 0
    %1612 = vmatprep.subr.bf16.mxu0 0
    %1613 = vmatpush2.bf16.xpose.msra.mxu0 0
    %1614 = vmatprep.subr.bf16.mxu0 0
    %1615 = vmatpush2.bf16.xpose.msra.mxu0 0
    %1616 = vmatprep.subr.bf16.mxu0 0
    %1617 = vmatpush2.bf16.xpose.msra.mxu0 0
    %1618 = vmatprep.subr.bf16.mxu0 0
    %1619 = vmatpush2.bf16.xpose.msra.mxu0 0
    %1620 = vmatprep.subr.bf16.mxu0 0
    %1621 = vmatpush2.bf16.xpose.msra.mxu0 0
    %1622 = vmatprep.subr.bf16.mxu0 0
    %1623 = vmatpush2.bf16.xpose.msra.mxu0 0
    %1624 = vmatprep.subr.bf16.mxu0 0
    %1625 = vmatpush2.bf16.xpose.msra.mxu0 0
    %1626 = vmatprep.mubr.bf16.mxu0 0
    %1627 = vmatmul.mubr.bf16.gmra.mxu0 %v1589
    %v1628 = vpop.f32.mrf.mxu0
    %v1629 = vadd.f32 0.0, %v1628
    %v1630 = vpop.f32.mrf.mxu0
    %v1631 = vpop.f32.mrf.mxu0
    %v1632 = vpop.f32.mrf.mxu0
    %1633 = vdwg.mxu0
    %v1634 = vmul.f32 %v1307, 0.35355338
    %v1635 = vmul.f32 %v1353, 0.35355338
    %v1636 = vmul.f32 %v1399, 0.35355338
    %v1637 = vmul.f32 %v1445, 0.35355338
    %v1638 = vmul.f32 %v1491, 0.35355338
    %v1639 = vmul.f32 %v1537, 0.35355338
    %v1640 = vmul.f32 %v1583, 0.35355338
    %v1641 = vmul.f32 %v1629, 0.35355338
    %v1642 = vadd.f32 %v1634, %v283
    %v1643 = vadd.f32 %v1635, %v283
    %v1644 = vadd.f32 %v1636, %v283
    %v1645 = vadd.f32 %v1637, %v283
    %v1646 = vadd.f32 %v1638, %v283
    %v1647 = vadd.f32 %v1639, %v283
    %v1648 = vadd.f32 %v1640, %v283
    %v1649 = vadd.f32 %v1641, %v283
    %v1650 = vsel %vm1265, %v1642, -inf
    %1651 = vmax.xlane.f32.xlu0 %v1650
    %v1652 = vpop.xlane.xlu0 %1651
    %v1653 = vsel %vm1265, %v1643, -inf
    %1654 = vmax.xlane.f32.xlu0 %v1653
    %v1655 = vpop.xlane.xlu0 %1654
    %v1656 = vsel %vm1265, %v1644, -inf
    %1657 = vmax.xlane.f32.xlu0 %v1656
    %v1658 = vpop.xlane.xlu0 %1657
    %v1659 = vsel %vm1265, %v1645, -inf
    %1660 = vmax.xlane.f32.xlu0 %v1659
    %v1661 = vpop.xlane.xlu0 %1660
    %v1662 = vsel %vm1265, %v1646, -inf
    %1663 = vmax.xlane.f32.xlu0 %v1662
    %v1664 = vpop.xlane.xlu0 %1663
    %v1665 = vsel %vm1265, %v1647, -inf
    %1666 = vmax.xlane.f32.xlu0 %v1665
    %v1667 = vpop.xlane.xlu0 %1666
    %v1668 = vsel %vm1265, %v1648, -inf
    %1669 = vmax.xlane.f32.xlu0 %v1668
    %v1670 = vpop.xlane.xlu0 %1669
    %v1671 = vsel %vm1265, %v1649, -inf
    %1672 = vmax.xlane.f32.xlu0 %v1671
    %v1673 = vpop.xlane.xlu0 %1672
    %v1674 = vsub.f32 %v1642, %v1652
    %v1675 = vsub.f32 %v1643, %v1655
    %v1676 = vsub.f32 %v1644, %v1658
    %v1677 = vsub.f32 %v1645, %v1661
    %v1678 = vsub.f32 %v1646, %v1664
    %v1679 = vsub.f32 %v1647, %v1667
    %v1680 = vsub.f32 %v1648, %v1670
    %v1681 = vsub.f32 %v1649, %v1673
    %v1682 = vmul.f32 %v1674, 1.442695
    %v1683 = vpow.pop %v1682
    %v1684 = vmul.f32 %v1675, 1.442695
    %v1685 = vpow.pop %v1684
    %v1686 = vmul.f32 %v1676, 1.442695
    %v1687 = vpow.pop %v1686
    %v1688 = vmul.f32 %v1677, 1.442695
    %v1689 = vpow.pop %v1688
    %v1690 = vmul.f32 %v1678, 1.442695
    %v1691 = vpow.pop %v1690
    %v1692 = vmul.f32 %v1679, 1.442695
    %v1693 = vpow.pop %v1692
    %v1694 = vmul.f32 %v1680, 1.442695
    %v1695 = vpow.pop %v1694
    %v1696 = vmul.f32 %v1681, 1.442695
    %v1697 = vpow.pop %v1696
    %v1698 = vsel %vm1265, %v1683, 0.0
    %1699 = vadd.xlane.f32.xlu0 %v1698
    %v1700 = vpop.xlane.xlu0 %1699
    %v1701 = vsel %vm1265, %v1685, 0.0
    %1702 = vadd.xlane.f32.xlu0 %v1701
    %v1703 = vpop.xlane.xlu0 %1702
    %v1704 = vsel %vm1265, %v1687, 0.0
    %1705 = vadd.xlane.f32.xlu0 %v1704
    %v1706 = vpop.xlane.xlu0 %1705
    %v1707 = vsel %vm1265, %v1689, 0.0
    %1708 = vadd.xlane.f32.xlu0 %v1707
    %v1709 = vpop.xlane.xlu0 %1708
    %v1710 = vsel %vm1265, %v1691, 0.0
    %1711 = vadd.xlane.f32.xlu0 %v1710
    %v1712 = vpop.xlane.xlu0 %1711
    %v1713 = vsel %vm1265, %v1693, 0.0
    %1714 = vadd.xlane.f32.xlu0 %v1713
    %v1715 = vpop.xlane.xlu0 %1714
    %v1716 = vsel %vm1265, %v1695, 0.0
    %1717 = vadd.xlane.f32.xlu0 %v1716
    %v1718 = vpop.xlane.xlu0 %1717
    %v1719 = vsel %vm1265, %v1697, 0.0
    %1720 = vadd.xlane.f32.xlu0 %v1719
    %v1721 = vpop.xlane.xlu0 %1720
    %v1722 = vrcp.pop %v1700
    %v1723 = vrcp.pop %v1703
    %v1724 = vrcp.pop %v1706
    %v1725 = vrcp.pop %v1709
    %v1726 = vrcp.pop %v1712
    %v1727 = vrcp.pop %v1715
    %v1728 = vrcp.pop %v1718
    %v1729 = vrcp.pop %v1721
    %v1730 = vmul.f32 %v1683, %v1722
    %v1731 = vmul.f32 %v1685, %v1723
    %v1732 = vmul.f32 %v1687, %v1724
    %v1733 = vmul.f32 %v1689, %v1725
    %v1734 = vmul.f32 %v1691, %v1726
    %v1735 = vmul.f32 %v1693, %v1727
    %v1736 = vmul.f32 %v1695, %v1728
    %v1737 = vmul.f32 %v1697, %v1729
    %v1738 = vpack.c.bf16 %v1730, %v1730
    %v1739 = vpack.c.bf16 %v1731, %v1731
    %v1740 = vpack.c.bf16 %v1732, %v1732
    %v1741 = vpack.c.bf16 %v1733, %v1733
    %v1742 = vpack.c.bf16 %v1734, %v1734
    %v1743 = vpack.c.bf16 %v1735, %v1735
    %v1744 = vpack.c.bf16 %v1736, %v1736
    %v1745 = vpack.c.bf16 %v1737, %v1737
    %v1747 = vsel %vm1265, %v1738, 0
    %vm1749 = vcmask 1043456
    %v1751 = vsel %vm1749, %v1257, 0
    %1753 = vmatprep.subr.bf16.mxu0 0
    %1754 = vmatpush1.bf16.msra.mxu0 0
    %1755 = vmatprep.subr.bf16.mxu0 0
    %1756 = vmatpush1.bf16.msra.mxu0 0
    %1757 = vmatprep.subr.bf16.mxu0 0
    %1758 = vmatpush1.bf16.msra.mxu0 0
    %1759 = vmatprep.subr.bf16.mxu0 0
    %1760 = vmatpush1.bf16.msra.mxu0 0
    %1761 = vmatprep.subr.bf16.mxu0 0
    %1762 = vmatpush1.bf16.msra.mxu0 0
    %1763 = vmatprep.subr.bf16.mxu0 0
    %1764 = vmatpush1.bf16.msra.mxu0 0
    %1765 = vmatprep.subr.bf16.mxu0 0
    %1766 = vmatpush1.bf16.msra.mxu0 0
    %1767 = vmatprep.subr.bf16.mxu0 0
    %1768 = vmatpush1.bf16.msra.mxu0 %v1751
    %1769 = vmatprep.subr.bf16.mxu0 0
    %1770 = vmatpush2.bf16.msra.mxu0 0
    %1771 = vmatprep.subr.bf16.mxu0 0
    %1772 = vmatpush2.bf16.msra.mxu0 0
    %1773 = vmatprep.subr.bf16.mxu0 0
    %1774 = vmatpush2.bf16.msra.mxu0 0
    %1775 = vmatprep.subr.bf16.mxu0 0
    %1776 = vmatpush2.bf16.msra.mxu0 0
    %1777 = vmatprep.subr.bf16.mxu0 0
    %1778 = vmatpush2.bf16.msra.mxu0 0
    %1779 = vmatprep.subr.bf16.mxu0 0
    %1780 = vmatpush2.bf16.msra.mxu0 0
    %1781 = vmatprep.subr.bf16.mxu0 0
    %1782 = vmatpush2.bf16.msra.mxu0 0
    %1783 = vmatprep.subr.bf16.mxu0 0
    %1784 = vmatpush2.bf16.msra.mxu0 0
    %1785 = vmatprep.mubr.bf16.mxu0 0
    %1786 = vmatmul.mubr.bf16.gmra.mxu0 %v1747
    %v1787 = vpop.f32.mrf.mxu0
    %v1788 = vadd.f32 0.0, %v1787
    %v1789 = vpop.f32.mrf.mxu0
    %v1790 = vpop.f32.mrf.mxu0
    %v1791 = vpop.f32.mrf.mxu0
    %1792 = vdwg.mxu0
    %v1794 = vsel %vm1265, %v1739, 0
    %v1797 = vsel %vm1749, %v1258, 0
    %1799 = vmatprep.subr.bf16.mxu0 0
    %1800 = vmatpush1.bf16.msra.mxu0 0
    %1801 = vmatprep.subr.bf16.mxu0 0
    %1802 = vmatpush1.bf16.msra.mxu0 0
    %1803 = vmatprep.subr.bf16.mxu0 0
    %1804 = vmatpush1.bf16.msra.mxu0 0
    %1805 = vmatprep.subr.bf16.mxu0 0
    %1806 = vmatpush1.bf16.msra.mxu0 0
    %1807 = vmatprep.subr.bf16.mxu0 0
    %1808 = vmatpush1.bf16.msra.mxu0 0
    %1809 = vmatprep.subr.bf16.mxu0 0
    %1810 = vmatpush1.bf16.msra.mxu0 0
    %1811 = vmatprep.subr.bf16.mxu0 0
    %1812 = vmatpush1.bf16.msra.mxu0 0
    %1813 = vmatprep.subr.bf16.mxu0 0
    %1814 = vmatpush1.bf16.msra.mxu0 %v1797
    %1815 = vmatprep.subr.bf16.mxu0 0
    %1816 = vmatpush2.bf16.msra.mxu0 0
    %1817 = vmatprep.subr.bf16.mxu0 0
    %1818 = vmatpush2.bf16.msra.mxu0 0
    %1819 = vmatprep.subr.bf16.mxu0 0
    %1820 = vmatpush2.bf16.msra.mxu0 0
    %1821 = vmatprep.subr.bf16.mxu0 0
    %1822 = vmatpush2.bf16.msra.mxu0 0
    %1823 = vmatprep.subr.bf16.mxu0 0
    %1824 = vmatpush2.bf16.msra.mxu0 0
    %1825 = vmatprep.subr.bf16.mxu0 0
    %1826 = vmatpush2.bf16.msra.mxu0 0
    %1827 = vmatprep.subr.bf16.mxu0 0
    %1828 = vmatpush2.bf16.msra.mxu0 0
    %1829 = vmatprep.subr.bf16.mxu0 0
    %1830 = vmatpush2.bf16.msra.mxu0 0
    %1831 = vmatprep.mubr.bf16.mxu0 0
    %1832 = vmatmul.mubr.bf16.gmra.mxu0 %v1794
    %v1833 = vpop.f32.mrf.mxu0
    %v1834 = vadd.f32 0.0, %v1833
    %v1835 = vpop.f32.mrf.mxu0
    %v1836 = vpop.f32.mrf.mxu0
    %v1837 = vpop.f32.mrf.mxu0
    %1838 = vdwg.mxu0
    %v1840 = vsel %vm1265, %v1740, 0
    %v1843 = vsel %vm1749, %v1259, 0
    %1845 = vmatprep.subr.bf16.mxu0 0
    %1846 = vmatpush1.bf16.msra.mxu0 0
    %1847 = vmatprep.subr.bf16.mxu0 0
    %1848 = vmatpush1.bf16.msra.mxu0 0
    %1849 = vmatprep.subr.bf16.mxu0 0
    %1850 = vmatpush1.bf16.msra.mxu0 0
    %1851 = vmatprep.subr.bf16.mxu0 0
    %1852 = vmatpush1.bf16.msra.mxu0 0
    %1853 = vmatprep.subr.bf16.mxu0 0
    %1854 = vmatpush1.bf16.msra.mxu0 0
    %1855 = vmatprep.subr.bf16.mxu0 0
    %1856 = vmatpush1.bf16.msra.mxu0 0
    %1857 = vmatprep.subr.bf16.mxu0 0
    %1858 = vmatpush1.bf16.msra.mxu0 0
    %1859 = vmatprep.subr.bf16.mxu0 0
    %1860 = vmatpush1.bf16.msra.mxu0 %v1843
    %1861 = vmatprep.subr.bf16.mxu0 0
    %1862 = vmatpush2.bf16.msra.mxu0 0
    %1863 = vmatprep.subr.bf16.mxu0 0
    %1864 = vmatpush2.bf16.msra.mxu0 0
    %1865 = vmatprep.subr.bf16.mxu0 0
    %1866 = vmatpush2.bf16.msra.mxu0 0
    %1867 = vmatprep.subr.bf16.mxu0 0
    %1868 = vmatpush2.bf16.msra.mxu0 0
    %1869 = vmatprep.subr.bf16.mxu0 0
    %1870 = vmatpush2.bf16.msra.mxu0 0
    %1871 = vmatprep.subr.bf16.mxu0 0
    %1872 = vmatpush2.bf16.msra.mxu0 0
    %1873 = vmatprep.subr.bf16.mxu0 0
    %1874 = vmatpush2.bf16.msra.mxu0 0
    %1875 = vmatprep.subr.bf16.mxu0 0
    %1876 = vmatpush2.bf16.msra.mxu0 0
    %1877 = vmatprep.mubr.bf16.mxu0 0
    %1878 = vmatmul.mubr.bf16.gmra.mxu0 %v1840
    %v1879 = vpop.f32.mrf.mxu0
    %v1880 = vadd.f32 0.0, %v1879
    %v1881 = vpop.f32.mrf.mxu0
    %v1882 = vpop.f32.mrf.mxu0
    %v1883 = vpop.f32.mrf.mxu0
    %1884 = vdwg.mxu0
    %v1886 = vsel %vm1265, %v1741, 0
    %v1889 = vsel %vm1749, %v1260, 0
    %1891 = vmatprep.subr.bf16.mxu0 0
    %1892 = vmatpush1.bf16.msra.mxu0 0
    %1893 = vmatprep.subr.bf16.mxu0 0
    %1894 = vmatpush1.bf16.msra.mxu0 0
    %1895 = vmatprep.subr.bf16.mxu0 0
    %1896 = vmatpush1.bf16.msra.mxu0 0
    %1897 = vmatprep.subr.bf16.mxu0 0
    %1898 = vmatpush1.bf16.msra.mxu0 0
    %1899 = vmatprep.subr.bf16.mxu0 0
    %1900 = vmatpush1.bf16.msra.mxu0 0
    %1901 = vmatprep.subr.bf16.mxu0 0
    %1902 = vmatpush1.bf16.msra.mxu0 0
    %1903 = vmatprep.subr.bf16.mxu0 0
    %1904 = vmatpush1.bf16.msra.mxu0 0
    %1905 = vmatprep.subr.bf16.mxu0 0
    %1906 = vmatpush1.bf16.msra.mxu0 %v1889
    %1907 = vmatprep.subr.bf16.mxu0 0
    %1908 = vmatpush2.bf16.msra.mxu0 0
    %1909 = vmatprep.subr.bf16.mxu0 0
    %1910 = vmatpush2.bf16.msra.mxu0 0
    %1911 = vmatprep.subr.bf16.mxu0 0
    %1912 = vmatpush2.bf16.msra.mxu0 0
    %1913 = vmatprep.subr.bf16.mxu0 0
    %1914 = vmatpush2.bf16.msra.mxu0 0
    %1915 = vmatprep.subr.bf16.mxu0 0
    %1916 = vmatpush2.bf16.msra.mxu0 0
    %1917 = vmatprep.subr.bf16.mxu0 0
    %1918 = vmatpush2.bf16.msra.mxu0 0
    %1919 = vmatprep.subr.bf16.mxu0 0
    %1920 = vmatpush2.bf16.msra.mxu0 0
    %1921 = vmatprep.subr.bf16.mxu0 0
    %1922 = vmatpush2.bf16.msra.mxu0 0
    %1923 = vmatprep.mubr.bf16.mxu0 0
    %1924 = vmatmul.mubr.bf16.gmra.mxu0 %v1886
    %v1925 = vpop.f32.mrf.mxu0
    %v1926 = vadd.f32 0.0, %v1925
    %v1927 = vpop.f32.mrf.mxu0
    %v1928 = vpop.f32.mrf.mxu0
    %v1929 = vpop.f32.mrf.mxu0
    %1930 = vdwg.mxu0
    %v1932 = vsel %vm1265, %v1742, 0
    %v1935 = vsel %vm1749, %v1261, 0
    %1937 = vmatprep.subr.bf16.mxu0 0
    %1938 = vmatpush1.bf16.msra.mxu0 0
    %1939 = vmatprep.subr.bf16.mxu0 0
    %1940 = vmatpush1.bf16.msra.mxu0 0
    %1941 = vmatprep.subr.bf16.mxu0 0
    %1942 = vmatpush1.bf16.msra.mxu0 0
    %1943 = vmatprep.subr.bf16.mxu0 0
    %1944 = vmatpush1.bf16.msra.mxu0 0
    %1945 = vmatprep.subr.bf16.mxu0 0
    %1946 = vmatpush1.bf16.msra.mxu0 0
    %1947 = vmatprep.subr.bf16.mxu0 0
    %1948 = vmatpush1.bf16.msra.mxu0 0
    %1949 = vmatprep.subr.bf16.mxu0 0
    %1950 = vmatpush1.bf16.msra.mxu0 0
    %1951 = vmatprep.subr.bf16.mxu0 0
    %1952 = vmatpush1.bf16.msra.mxu0 %v1935
    %1953 = vmatprep.subr.bf16.mxu0 0
    %1954 = vmatpush2.bf16.msra.mxu0 0
    %1955 = vmatprep.subr.bf16.mxu0 0
    %1956 = vmatpush2.bf16.msra.mxu0 0
    %1957 = vmatprep.subr.bf16.mxu0 0
    %1958 = vmatpush2.bf16.msra.mxu0 0
    %1959 = vmatprep.subr.bf16.mxu0 0
    %1960 = vmatpush2.bf16.msra.mxu0 0
    %1961 = vmatprep.subr.bf16.mxu0 0
    %1962 = vmatpush2.bf16.msra.mxu0 0
    %1963 = vmatprep.subr.bf16.mxu0 0
    %1964 = vmatpush2.bf16.msra.mxu0 0
    %1965 = vmatprep.subr.bf16.mxu0 0
    %1966 = vmatpush2.bf16.msra.mxu0 0
    %1967 = vmatprep.subr.bf16.mxu0 0
    %1968 = vmatpush2.bf16.msra.mxu0 0
    %1969 = vmatprep.mubr.bf16.mxu0 0
    %1970 = vmatmul.mubr.bf16.gmra.mxu0 %v1932
    %v1971 = vpop.f32.mrf.mxu0
    %v1972 = vadd.f32 0.0, %v1971
    %v1973 = vpop.f32.mrf.mxu0
    %v1974 = vpop.f32.mrf.mxu0
    %v1975 = vpop.f32.mrf.mxu0
    %1976 = vdwg.mxu0
    %v1978 = vsel %vm1265, %v1743, 0
    %v1981 = vsel %vm1749, %v1262, 0
    %1983 = vmatprep.subr.bf16.mxu0 0
    %1984 = vmatpush1.bf16.msra.mxu0 0
    %1985 = vmatprep.subr.bf16.mxu0 0
    %1986 = vmatpush1.bf16.msra.mxu0 0
    %1987 = vmatprep.subr.bf16.mxu0 0
    %1988 = vmatpush1.bf16.msra.mxu0 0
    %1989 = vmatprep.subr.bf16.mxu0 0
    %1990 = vmatpush1.bf16.msra.mxu0 0
    %1991 = vmatprep.subr.bf16.mxu0 0
    %1992 = vmatpush1.bf16.msra.mxu0 0
    %1993 = vmatprep.subr.bf16.mxu0 0
    %1994 = vmatpush1.bf16.msra.mxu0 0
    %1995 = vmatprep.subr.bf16.mxu0 0
    %1996 = vmatpush1.bf16.msra.mxu0 0
    %1997 = vmatprep.subr.bf16.mxu0 0
    %1998 = vmatpush1.bf16.msra.mxu0 %v1981
    %1999 = vmatprep.subr.bf16.mxu0 0
    %2000 = vmatpush2.bf16.msra.mxu0 0
    %2001 = vmatprep.subr.bf16.mxu0 0
    %2002 = vmatpush2.bf16.msra.mxu0 0
    %2003 = vmatprep.subr.bf16.mxu0 0
    %2004 = vmatpush2.bf16.msra.mxu0 0
    %2005 = vmatprep.subr.bf16.mxu0 0
    %2006 = vmatpush2.bf16.msra.mxu0 0
    %2007 = vmatprep.subr.bf16.mxu0 0
    %2008 = vmatpush2.bf16.msra.mxu0 0
    %2009 = vmatprep.subr.bf16.mxu0 0
    %2010 = vmatpush2.bf16.msra.mxu0 0
    %2011 = vmatprep.subr.bf16.mxu0 0
    %2012 = vmatpush2.bf16.msra.mxu0 0
    %2013 = vmatprep.subr.bf16.mxu0 0
    %2014 = vmatpush2.bf16.msra.mxu0 0
    %2015 = vmatprep.mubr.bf16.mxu0 0
    %2016 = vmatmul.mubr.bf16.gmra.mxu0 %v1978
    %v2017 = vpop.f32.mrf.mxu0
    %v2018 = vadd.f32 0.0, %v2017
    %v2019 = vpop.f32.mrf.mxu0
    %v2020 = vpop.f32.mrf.mxu0
    %v2021 = vpop.f32.mrf.mxu0
    %2022 = vdwg.mxu0
    %v2024 = vsel %vm1265, %v1744, 0
    %v2027 = vsel %vm1749, %v1263, 0
    %2029 = vmatprep.subr.bf16.mxu0 0
    %2030 = vmatpush1.bf16.msra.mxu0 0
    %2031 = vmatprep.subr.bf16.mxu0 0
    %2032 = vmatpush1.bf16.msra.mxu0 0
    %2033 = vmatprep.subr.bf16.mxu0 0
    %2034 = vmatpush1.bf16.msra.mxu0 0
    %2035 = vmatprep.subr.bf16.mxu0 0
    %2036 = vmatpush1.bf16.msra.mxu0 0
    %2037 = vmatprep.subr.bf16.mxu0 0
    %2038 = vmatpush1.bf16.msra.mxu0 0
    %2039 = vmatprep.subr.bf16.mxu0 0
    %2040 = vmatpush1.bf16.msra.mxu0 0
    %2041 = vmatprep.subr.bf16.mxu0 0
    %2042 = vmatpush1.bf16.msra.mxu0 0
    %2043 = vmatprep.subr.bf16.mxu0 0
    %2044 = vmatpush1.bf16.msra.mxu0 %v2027
    %2045 = vmatprep.subr.bf16.mxu0 0
    %2046 = vmatpush2.bf16.msra.mxu0 0
    %2047 = vmatprep.subr.bf16.mxu0 0
    %2048 = vmatpush2.bf16.msra.mxu0 0
    %2049 = vmatprep.subr.bf16.mxu0 0
    %2050 = vmatpush2.bf16.msra.mxu0 0
    %2051 = vmatprep.subr.bf16.mxu0 0
    %2052 = vmatpush2.bf16.msra.mxu0 0
    %2053 = vmatprep.subr.bf16.mxu0 0
    %2054 = vmatpush2.bf16.msra.mxu0 0
    %2055 = vmatprep.subr.bf16.mxu0 0
    %2056 = vmatpush2.bf16.msra.mxu0 0
    %2057 = vmatprep.subr.bf16.mxu0 0
    %2058 = vmatpush2.bf16.msra.mxu0 0
    %2059 = vmatprep.subr.bf16.mxu0 0
    %2060 = vmatpush2.bf16.msra.mxu0 0
    %2061 = vmatprep.mubr.bf16.mxu0 0
    %2062 = vmatmul.mubr.bf16.gmra.mxu0 %v2024
    %v2063 = vpop.f32.mrf.mxu0
    %v2064 = vadd.f32 0.0, %v2063
    %v2065 = vpop.f32.mrf.mxu0
    %v2066 = vpop.f32.mrf.mxu0
    %v2067 = vpop.f32.mrf.mxu0
    %2068 = vdwg.mxu0
    %v2070 = vsel %vm1265, %v1745, 0
    %v2073 = vsel %vm1749, %v1264, 0
    %2075 = vmatprep.subr.bf16.mxu0 0
    %2076 = vmatpush1.bf16.msra.mxu0 0
    %2077 = vmatprep.subr.bf16.mxu0 0
    %2078 = vmatpush1.bf16.msra.mxu0 0
    %2079 = vmatprep.subr.bf16.mxu0 0
    %2080 = vmatpush1.bf16.msra.mxu0 0
    %2081 = vmatprep.subr.bf16.mxu0 0
    %2082 = vmatpush1.bf16.msra.mxu0 0
    %2083 = vmatprep.subr.bf16.mxu0 0
    %2084 = vmatpush1.bf16.msra.mxu0 0
    %2085 = vmatprep.subr.bf16.mxu0 0
    %2086 = vmatpush1.bf16.msra.mxu0 0
    %2087 = vmatprep.subr.bf16.mxu0 0
    %2088 = vmatpush1.bf16.msra.mxu0 0
    %2089 = vmatprep.subr.bf16.mxu0 0
    %2090 = vmatpush1.bf16.msra.mxu0 %v2073
    %2091 = vmatprep.subr.bf16.mxu0 0
    %2092 = vmatpush2.bf16.msra.mxu0 0
    %2093 = vmatprep.subr.bf16.mxu0 0
    %2094 = vmatpush2.bf16.msra.mxu0 0
    %2095 = vmatprep.subr.bf16.mxu0 0
    %2096 = vmatpush2.bf16.msra.mxu0 0
    %2097 = vmatprep.subr.bf16.mxu0 0
    %2098 = vmatpush2.bf16.msra.mxu0 0
    %2099 = vmatprep.subr.bf16.mxu0 0
    %2100 = vmatpush2.bf16.msra.mxu0 0
    %2101 = vmatprep.subr.bf16.mxu0 0
    %2102 = vmatpush2.bf16.msra.mxu0 0
    %2103 = vmatprep.subr.bf16.mxu0 0
    %2104 = vmatpush2.bf16.msra.mxu0 0
    %2105 = vmatprep.subr.bf16.mxu0 0
    %2106 = vmatpush2.bf16.msra.mxu0 0
    %2107 = vmatprep.mubr.bf16.mxu0 0
    %2108 = vmatmul.mubr.bf16.gmra.mxu0 %v2070
    %v2109 = vpop.f32.mrf.mxu0
    %v2110 = vadd.f32 0.0, %v2109
    %v2111 = vpop.f32.mrf.mxu0
    %v2112 = vpop.f32.mrf.mxu0
    %v2113 = vpop.f32.mrf.mxu0
    %2114 = vdwg.mxu0
    %v2115 = vcombine.low %v1788, %v1880
    %v2116 = vcombine.high %v1788, %v1880
    %v2118 = vunpack.c.l.s4 1983009808
    %v2119 = vunpack.c.0.s8 %v2118
    %v2120 = vlaneseq
    %v2121 = vshrl.u32 %v2120, 7
    %v2122 = vsub.s32 %v2119, %v2121
    %v2123 = vrot.slane %v2115, %v2122
    %v2125 = vunpack.c.l.s4 1983009808
    %v2126 = vunpack.c.0.s8 %v2125
    %v2127 = vlaneseq
    %v2128 = vshrl.u32 %v2127, 7
    %v2129 = vsub.s32 %v2126, %v2128
    %v2130 = vrot.slane %v2116, %v2129
    %v2131 = vcombine.low %v1834, %v1926
    %v2132 = vcombine.high %v1834, %v1926
    %v2134 = vunpack.c.l.s4 1983009808
    %v2135 = vunpack.c.0.s8 %v2134
    %v2136 = vlaneseq
    %v2137 = vshrl.u32 %v2136, 7
    %v2138 = vsub.s32 %v2135, %v2137
    %v2139 = vrot.slane %v2131, %v2138
    %v2141 = vunpack.c.l.s4 1983009808
    %v2142 = vunpack.c.0.s8 %v2141
    %v2143 = vlaneseq
    %v2144 = vshrl.u32 %v2143, 7
    %v2145 = vsub.s32 %v2142, %v2144
    %v2146 = vrot.slane %v2132, %v2145
    %v2147 = vcombine.low %v1972, %v2064
    %v2148 = vcombine.high %v1972, %v2064
    %v2150 = vunpack.c.l.s4 1983009808
    %v2151 = vunpack.c.0.s8 %v2150
    %v2152 = vlaneseq
    %v2153 = vshrl.u32 %v2152, 7
    %v2154 = vsub.s32 %v2151, %v2153
    %v2155 = vrot.slane %v2147, %v2154
    %v2157 = vunpack.c.l.s4 1983009808
    %v2158 = vunpack.c.0.s8 %v2157
    %v2159 = vlaneseq
    %v2160 = vshrl.u32 %v2159, 7
    %v2161 = vsub.s32 %v2158, %v2160
    %v2162 = vrot.slane %v2148, %v2161
    %v2163 = vcombine.low %v2018, %v2110
    %v2164 = vcombine.high %v2018, %v2110
    %v2166 = vunpack.c.l.s4 1983009808
    %v2167 = vunpack.c.0.s8 %v2166
    %v2168 = vlaneseq
    %v2169 = vshrl.u32 %v2168, 7
    %v2170 = vsub.s32 %v2167, %v2169
    %v2171 = vrot.slane %v2163, %v2170
    %v2173 = vunpack.c.l.s4 1983009808
    %v2174 = vunpack.c.0.s8 %v2173
    %v2175 = vlaneseq
    %v2176 = vshrl.u32 %v2175, 7
    %v2177 = vsub.s32 %v2174, %v2176
    %v2178 = vrot.slane %v2164, %v2177
    %v2179 = vcombine.low %v2123, %v2139
    %v2180 = vcombine.high %v2123, %v2139
    %v2182 = vunpack.c.l.s4 1934713408
    %v2183 = vunpack.c.0.s8 %v2182
    %v2184 = vlaneseq
    %v2185 = vshrl.u32 %v2184, 7
    %v2186 = vsub.s32 %v2183, %v2185
    %v2187 = vrot.slane %v2179, %v2186
    %v2189 = vunpack.c.l.s4 1934713408
    %v2190 = vunpack.c.0.s8 %v2189
    %v2191 = vlaneseq
    %v2192 = vshrl.u32 %v2191, 7
    %v2193 = vsub.s32 %v2190, %v2192
    %v2194 = vrot.slane %v2180, %v2193
    %v2195 = vcombine.low %v2130, %v2146
    %v2196 = vcombine.high %v2130, %v2146
    %v2198 = vunpack.c.l.s4 1934713408
    %v2199 = vunpack.c.0.s8 %v2198
    %v2200 = vlaneseq
    %v2201 = vshrl.u32 %v2200, 7
    %v2202 = vsub.s32 %v2199, %v2201
    %v2203 = vrot.slane %v2195, %v2202
    %v2205 = vunpack.c.l.s4 1934713408
    %v2206 = vunpack.c.0.s8 %v2205
    %v2207 = vlaneseq
    %v2208 = vshrl.u32 %v2207, 7
    %v2209 = vsub.s32 %v2206, %v2208
    %v2210 = vrot.slane %v2196, %v2209
    %v2211 = vcombine.low %v2155, %v2171
    %v2212 = vcombine.high %v2155, %v2171
    %v2214 = vunpack.c.l.s4 1934713408
    %v2215 = vunpack.c.0.s8 %v2214
    %v2216 = vlaneseq
    %v2217 = vshrl.u32 %v2216, 7
    %v2218 = vsub.s32 %v2215, %v2217
    %v2219 = vrot.slane %v2211, %v2218
    %v2221 = vunpack.c.l.s4 1934713408
    %v2222 = vunpack.c.0.s8 %v2221
    %v2223 = vlaneseq
    %v2224 = vshrl.u32 %v2223, 7
    %v2225 = vsub.s32 %v2222, %v2224
    %v2226 = vrot.slane %v2212, %v2225
    %v2227 = vcombine.low %v2162, %v2178
    %v2228 = vcombine.high %v2162, %v2178
    %v2230 = vunpack.c.l.s4 1934713408
    %v2231 = vunpack.c.0.s8 %v2230
    %v2232 = vlaneseq
    %v2233 = vshrl.u32 %v2232, 7
    %v2234 = vsub.s32 %v2231, %v2233
    %v2235 = vrot.slane %v2227, %v2234
    %v2237 = vunpack.c.l.s4 1934713408
    %v2238 = vunpack.c.0.s8 %v2237
    %v2239 = vlaneseq
    %v2240 = vshrl.u32 %v2239, 7
    %v2241 = vsub.s32 %v2238, %v2240
    %v2242 = vrot.slane %v2228, %v2241
    %v2243 = vcombine.low %v2187, %v2219
    %v2244 = vcombine.high %v2187, %v2219
    %v2245 = vcombine.low %v2194, %v2226
    %v2246 = vcombine.high %v2194, %v2226
    %v2247 = vcombine.low %v2203, %v2235
    %v2248 = vcombine.high %v2203, %v2235
    %v2249 = vcombine.low %v2210, %v2242
    %v2250 = vcombine.high %v2210, %v2242
    %2252 = vrot.lane.b32.xlu0 %v2244, 8
    %v2253 = vpop.permute.xlu0 %2252
    %2256 = vrot.lane.b32.xlu0 %v2245, 16
    %v2257 = vpop.permute.xlu0 %2256
    %2260 = vrot.lane.b32.xlu0 %v2246, 24
    %v2261 = vpop.permute.xlu0 %2260
    %2264 = vrot.lane.b32.xlu0 %v2247, 32
    %v2265 = vpop.permute.xlu0 %2264
    %2268 = vrot.lane.b32.xlu0 %v2248, 40
    %v2269 = vpop.permute.xlu0 %2268
    %2272 = vrot.lane.b32.xlu0 %v2249, 48
    %v2273 = vpop.permute.xlu0 %2272
    %2276 = vrot.lane.b32.xlu0 %v2250, 56
    %v2277 = vpop.permute.xlu0 %2276
    %v2279 = vsel %vm1265, %v2243, %v2253
    %v2280 = vsel %vm293, %v2279, %v2257
    %vm2281 = vcmask 195584
    %v2282 = vsel %vm2281, %v2280, %v2261
    %v2283 = vsel %vm358, %v2282, %v2265
    %vm2284 = vcmask 326656
    %v2285 = vsel %vm2284, %v2283, %v2269
    %vm2286 = vcmask 392192
    %v2287 = vsel %vm2286, %v2285, %v2273
    %vm2288 = vcmask 457728
    %v2289 = vsel %vm2288, %v2287, %v2277
    %v2290 = vpack.c.bf16 %v2289, %v2289
    %v2299 = vunpack.c.l.b16 %v265
    %v2300 = vunpack.c.l.b16 %v266
    %v2301 = vunpack.c.l.b16 %v267
    %v2302 = vunpack.c.l.b16 %v268
    %v2303 = vunpack.c.l.b16 %v269
    %v2304 = vunpack.c.l.b16 %v270
    %v2305 = vunpack.c.l.b16 %v271
    %v2306 = vunpack.c.l.b16 %v272
    %v2307 = vpack.c.b16 %v2300, %v2299
    %v2308 = vpack.c.b16 %v2302, %v2301
    %v2309 = vpack.c.b16 %v2304, %v2303
    %v2310 = vpack.c.b16 %v2306, %v2305
    %v2316 = vsel %vm429, %v2290, 0
    %2318 = vmatprep.subr.bf16.mxu0 0
    %2319 = vmatpush1.bf16.msra.mxu0 0
    %2320 = vmatprep.subr.bf16.mxu0 0
    %2321 = vmatpush1.bf16.msra.mxu0 0
    %2322 = vmatprep.subr.bf16.mxu0 0
    %2323 = vmatpush1.bf16.msra.mxu0 0
    %2324 = vmatprep.subr.bf16.mxu0 0
    %2325 = vmatpush1.bf16.msra.mxu0 0
    %2326 = vmatprep.subr.bf16.mxu0 0
    %2327 = vmatpush1.bf16.msra.mxu0 %v2310
    %2328 = vmatprep.subr.bf16.mxu0 0
    %2329 = vmatpush1.bf16.msra.mxu0 %v2309
    %2330 = vmatprep.subr.bf16.mxu0 0
    %2331 = vmatpush1.bf16.msra.mxu0 %v2308
    %2332 = vmatprep.subr.bf16.mxu0 0
    %2333 = vmatpush1.bf16.msra.mxu0 %v2307
    %2334 = vmatprep.subr.bf16.mxu0 0
    %2335 = vmatpush2.bf16.msra.mxu0 0
    %2336 = vmatprep.subr.bf16.mxu0 0
    %2337 = vmatpush2.bf16.msra.mxu0 0
    %2338 = vmatprep.subr.bf16.mxu0 0
    %2339 = vmatpush2.bf16.msra.mxu0 0
    %2340 = vmatprep.subr.bf16.mxu0 0
    %2341 = vmatpush2.bf16.msra.mxu0 0
    %2342 = vmatprep.subr.bf16.mxu0 0
    %2343 = vmatpush2.bf16.msra.mxu0 0
    %2344 = vmatprep.subr.bf16.mxu0 0
    %2345 = vmatpush2.bf16.msra.mxu0 0
    %2346 = vmatprep.subr.bf16.mxu0 0
    %2347 = vmatpush2.bf16.msra.mxu0 0
    %2348 = vmatprep.subr.bf16.mxu0 0
    %2349 = vmatpush2.bf16.msra.mxu0 0
    %2350 = vmatprep.mubr.bf16.mxu0 0
    %2351 = vmatmul.mubr.bf16.gmra.mxu0 %v2316
    %v2352 = vpop.f32.mrf.mxu0
    %v2353 = vadd.f32 0.0, %v2352
    %v2354 = vpop.f32.mrf.mxu0
    %v2355 = vpop.f32.mrf.mxu0
    %v2356 = vpop.f32.mrf.mxu0
    %2357 = vdwg.mxu0
    %2359 = vrot.lane.b32.xlu0 %v2353, 96
    %v2360 = vpop.permute.xlu0 %2359
    %v2362 = vadd.f32 %v696, %v2360
    %v2363 = vpack.c.bf16 %v532, %v532
    %v2365 = vsel %vm482, %v2363, 0
    %v2368 = vsel %vm537, %v282, 0
    %2370 = vmatprep.subr.bf16.mxu0 0
    %2371 = vmatpush1.bf16.msra.mxu0 0
    %2372 = vmatprep.subr.bf16.mxu0 0
    %2373 = vmatpush1.bf16.msra.mxu0 0
    %2374 = vmatprep.subr.bf16.mxu0 0
    %2375 = vmatpush1.bf16.msra.mxu0 0
    %2376 = vmatprep.subr.bf16.mxu0 0
    %2377 = vmatpush1.bf16.msra.mxu0 0
    %2378 = vmatprep.subr.bf16.mxu0 0
    %2379 = vmatpush1.bf16.msra.mxu0 0
    %2380 = vmatprep.subr.bf16.mxu0 0
    %2381 = vmatpush1.bf16.msra.mxu0 0
    %2382 = vmatprep.subr.bf16.mxu0 0
    %2383 = vmatpush1.bf16.msra.mxu0 0
    %2384 = vmatprep.subr.bf16.mxu0 0
    %2385 = vmatpush1.bf16.msra.mxu0 %v2368
    %2386 = vmatprep.subr.bf16.mxu0 0
    %2387 = vmatpush2.bf16.msra.mxu0 0
    %2388 = vmatprep.subr.bf16.mxu0 0
    %2389 = vmatpush2.bf16.msra.mxu0 0
    %2390 = vmatprep.subr.bf16.mxu0 0
    %2391 = vmatpush2.bf16.msra.mxu0 0
    %2392 = vmatprep.subr.bf16.mxu0 0
    %2393 = vmatpush2.bf16.msra.mxu0 0
    %2394 = vmatprep.subr.bf16.mxu0 0
    %2395 = vmatpush2.bf16.msra.mxu0 0
    %2396 = vmatprep.subr.bf16.mxu0 0
    %2397 = vmatpush2.bf16.msra.mxu0 0
    %2398 = vmatprep.subr.bf16.mxu0 0
    %2399 = vmatpush2.bf16.msra.mxu0 0
    %2400 = vmatprep.subr.bf16.mxu0 0
    %2401 = vmatpush2.bf16.msra.mxu0 0
    %2402 = vmatprep.mubr.bf16.mxu0 0
    %2403 = vmatmul.mubr.bf16.gmra.mxu0 %v2365
    %v2404 = vpop.f32.mrf.mxu0
    %v2405 = vadd.f32 0.0, %v2404
    %v2406 = vpop.f32.mrf.mxu0
    %v2407 = vpop.f32.mrf.mxu0
    %v2408 = vpop.f32.mrf.mxu0
    %2409 = vdwg.mxu0
    %2411 = vrot.lane.b32.xlu0 %v2362, 32
    %v2412 = vpop.permute.xlu0 %2411
    %v2414 = vmul.f32 %v2405, %v2412
    %v2415 = vsub.f32 1.0, %v2405
    %v2416 = vmul.f32 %v2415, %v284
    %v2417 = vadd.f32 %v2414, %v2416
    %2419 = vrot.lane.b32.xlu0 %v690, 96
    %v2420 = vpop.permute.xlu0 %2419
    %v2422 = vmul.f32 %v2405, %v2420
    %v2423 = vmul.f32 %v2415, %v285
    %v2424 = vadd.f32 %v2422, %v2423
    %2425 = vst.msk [vmem:[#allocation2] sm:$0xff] %vm358, %v2417
    %2426 = vst.msk [vmem:[#allocation3] sm:$0xff] %vm358, %v2424
    %v2427 = vld [vmem:[%s12] sm:$0xf]
    %v2428 = vld [vmem:[%s12 + $0x4] sm:$0xf]
    %v2429 = vld [vmem:[%s12 + $0x8] sm:$0xf]
    %v2430 = vld [vmem:[%s12 + $0xc] sm:$0xf]
    %v2431 = vld [vmem:[#allocation18] sm:$0xff]
    %v2432 = vld [vmem:[#allocation18 + $0x8] sm:$0xff]
    %v2433 = vld [vmem:[#allocation18 + $0x10] sm:$0xff]
    %v2434 = vld [vmem:[#allocation18 + $0x18] sm:$0xff]
    %v2435 = vld [vmem:[#allocation20] sm:$0xf]
    %v2436 = vld [vmem:[#allocation20 + $0x4] sm:$0xf]
    %v2437 = vld [vmem:[#allocation20 + $0x8] sm:$0xf]
    %v2438 = vld [vmem:[#allocation20 + $0xc] sm:$0xf]
    %v2439 = vld [vmem:[#allocation20 + $0x10] sm:$0xf]
    %v2440 = vld [vmem:[#allocation20 + $0x14] sm:$0xf]
    %v2441 = vld [vmem:[#allocation20 + $0x18] sm:$0xf]
    %v2442 = vld [vmem:[#allocation20 + $0x1c] sm:$0xf]
    %v2443 = vld [vmem:[#allocation21] sm:$0x1]
    %v2444 = vld [vmem:[%s16] sm:$0xf]
    %v2445 = vld [vmem:[%s16 + $0x4] sm:$0xf]
    %v2446 = vld [vmem:[%s16 + $0x8] sm:$0xf]
    %v2447 = vld [vmem:[%s16 + $0xc] sm:$0xf]
    %v2448 = vld [vmem:[#allocation23] sm:$0xf]
    %v2449 = vld [vmem:[#allocation23 + $0x4] sm:$0xf]
    %v2450 = vld [vmem:[#allocation23 + $0x8] sm:$0xf]
    %v2451 = vld [vmem:[#allocation23 + $0xc] sm:$0xf]
    %v2452 = vld [vmem:[%s18] sm:$0xf]
    %v2453 = vld [vmem:[%s18 + $0x4] sm:$0xf]
    %v2454 = vld [vmem:[%s18 + $0x8] sm:$0xf]
    %v2455 = vld [vmem:[%s18 + $0xc] sm:$0xf]
    %v2456 = vld [vmem:[#allocation24] sm:$0x1]
    %v2457 = vld [vmem:[%s20] sm:$0x1]
    %v2458 = vld [vmem:[%s21] sm:$0xf]
    %v2459 = vld [vmem:[#allocation4] sm:$0xff]
    %v2460 = vld [vmem:[#allocation5] sm:$0xff]
    %v2461 = vpack.c.bf16 %v2417, %v2417
    %v2466 = vunpack.c.l.b16 %v2427
    %v2467 = vunpack.c.l.b16 %v2428
    %v2468 = vunpack.c.l.b16 %v2429
    %v2469 = vunpack.c.l.b16 %v2430
    %v2470 = vpack.c.b16 %v2467, %v2466
    %v2471 = vpack.c.b16 %v2469, %v2468
    %v2475 = vsel %vm358, %v2461, 0
    %2477 = vmatprep.subr.bf16.mxu0 0
    %2478 = vmatpush1.bf16.msra.mxu0 0
    %2479 = vmatprep.subr.bf16.mxu0 0
    %2480 = vmatpush1.bf16.msra.mxu0 0
    %2481 = vmatprep.subr.bf16.mxu0 0
    %2482 = vmatpush1.bf16.msra.mxu0 0
    %2483 = vmatprep.subr.bf16.mxu0 0
    %2484 = vmatpush1.bf16.msra.mxu0 0
    %2485 = vmatprep.subr.bf16.mxu0 0
    %2486 = vmatpush1.bf16.msra.mxu0 0
    %2487 = vmatprep.subr.bf16.mxu0 0
    %2488 = vmatpush1.bf16.msra.mxu0 0
    %2489 = vmatprep.subr.bf16.mxu0 0
    %2490 = vmatpush1.bf16.msra.mxu0 %v2471
    %2491 = vmatprep.subr.bf16.mxu0 0
    %2492 = vmatpush1.bf16.msra.mxu0 %v2470
    %2493 = vmatprep.subr.bf16.mxu0 0
    %2494 = vmatpush2.bf16.msra.mxu0 0
    %2495 = vmatprep.subr.bf16.mxu0 0
    %2496 = vmatpush2.bf16.msra.mxu0 0
    %2497 = vmatprep.subr.bf16.mxu0 0
    %2498 = vmatpush2.bf16.msra.mxu0 0
    %2499 = vmatprep.subr.bf16.mxu0 0
    %2500 = vmatpush2.bf16.msra.mxu0 0
    %2501 = vmatprep.subr.bf16.mxu0 0
    %2502 = vmatpush2.bf16.msra.mxu0 0
    %2503 = vmatprep.subr.bf16.mxu0 0
    %2504 = vmatpush2.bf16.msra.mxu0 0
    %2505 = vmatprep.subr.bf16.mxu0 0
    %2506 = vmatpush2.bf16.msra.mxu0 0
    %2507 = vmatprep.subr.bf16.mxu0 0
    %2508 = vmatpush2.bf16.msra.mxu0 0
    %2509 = vmatprep.mubr.bf16.mxu0 0
    %2510 = vmatmul.mubr.bf16.gmra.mxu0 %v2475
    %v2511 = vpop.f32.mrf.mxu0
    %v2512 = vadd.f32 0.0, %v2511
    %v2513 = vpop.f32.mrf.mxu0
    %v2514 = vpop.f32.mrf.mxu0
    %v2515 = vpop.f32.mrf.mxu0
    %2516 = vdwg.mxu0
    %v2517 = vpack.c.bf16 %v2459, %v2459
    %v2522 = vunpack.c.l.b16 %v2431
    %v2523 = vunpack.c.h.b16 %v2431
    %v2524 = vunpack.c.l.b16 %v2432
    %v2525 = vunpack.c.h.b16 %v2432
    %v2526 = vunpack.c.l.b16 %v2433
    %v2527 = vunpack.c.h.b16 %v2433
    %v2528 = vunpack.c.l.b16 %v2434
    %v2529 = vunpack.c.h.b16 %v2434
    %v2530 = vpack.c.b16 %v2524, %v2522
    %v2531 = vpack.c.b16 %v2525, %v2523
    %v2532 = vpack.c.b16 %v2528, %v2526
    %v2533 = vpack.c.b16 %v2529, %v2527
    %v2539 = vsel %vm358, %v2517, 0
    %2541 = vmatprep.subr.bf16.mxu0 0
    %2542 = vmatpush1.bf16.msra.mxu0 0
    %2543 = vmatprep.subr.bf16.mxu0 0
    %2544 = vmatpush1.bf16.msra.mxu0 0
    %2545 = vmatprep.subr.bf16.mxu0 0
    %2546 = vmatpush1.bf16.msra.mxu0 0
    %2547 = vmatprep.subr.bf16.mxu0 0
    %2548 = vmatpush1.bf16.msra.mxu0 0
    %2549 = vmatprep.subr.bf16.mxu0 0
    %2550 = vmatpush1.bf16.msra.mxu0 0
    %2551 = vmatprep.subr.bf16.mxu0 0
    %2552 = vmatpush1.bf16.msra.mxu0 0
    %2553 = vmatprep.subr.bf16.mxu0 %v2533
    %2554 = vmatpush1.bf16.msra.mxu0 %v2532
    %2555 = vmatprep.subr.bf16.mxu0 %v2531
    %2556 = vmatpush1.bf16.msra.mxu0 %v2530
    %2557 = vmatprep.subr.bf16.mxu0 0
    %2558 = vmatpush2.bf16.msra.mxu0 0
    %2559 = vmatprep.subr.bf16.mxu0 0
    %2560 = vmatpush2.bf16.msra.mxu0 0
    %2561 = vmatprep.subr.bf16.mxu0 0
    %2562 = vmatpush2.bf16.msra.mxu0 0
    %2563 = vmatprep.subr.bf16.mxu0 0
    %2564 = vmatpush2.bf16.msra.mxu0 0
    %2565 = vmatprep.subr.bf16.mxu0 0
    %2566 = vmatpush2.bf16.msra.mxu0 0
    %2567 = vmatprep.subr.bf16.mxu0 0
    %2568 = vmatpush2.bf16.msra.mxu0 0
    %2569 = vmatprep.subr.bf16.mxu0 0
    %2570 = vmatpush2.bf16.msra.mxu0 0
    %2571 = vmatprep.subr.bf16.mxu0 0
    %2572 = vmatpush2.bf16.msra.mxu0 0
    %2573 = vmatprep.mubr.bf16.mxu0 0
    %2574 = vmatmul.mubr.bf16.gmra.mxu0 %v2539
    %v2575 = vpop.f32.mrf.mxu0
    %v2576 = vadd.f32 0.0, %v2575
    %v2577 = vpop.f32.mrf.mxu0
    %v2578 = vadd.f32 0.0, %v2577
    %v2579 = vpop.f32.mrf.mxu0
    %v2580 = vpop.f32.mrf.mxu0
    %2581 = vdwg.mxu0
    %v2582 = vmul.f32 %v2576, %v2512
    %v2583 = vpack.c.bf16 %v2582, %v2582
    %v2588 = vunpack.c.l.b16 %v2452
    %v2589 = vunpack.c.l.b16 %v2453
    %v2590 = vunpack.c.l.b16 %v2454
    %v2591 = vunpack.c.l.b16 %v2455
    %v2592 = vpack.c.b16 %v2589, %v2588
    %v2593 = vpack.c.b16 %v2591, %v2590
    %v2597 = vsel %vm358, %v2583, 0
    %2599 = vmatprep.subr.bf16.mxu0 0
    %2600 = vmatpush1.bf16.msra.mxu0 0
    %2601 = vmatprep.subr.bf16.mxu0 0
    %2602 = vmatpush1.bf16.msra.mxu0 0
    %2603 = vmatprep.subr.bf16.mxu0 0
    %2604 = vmatpush1.bf16.msra.mxu0 0
    %2605 = vmatprep.subr.bf16.mxu0 0
    %2606 = vmatpush1.bf16.msra.mxu0 0
    %2607 = vmatprep.subr.bf16.mxu0 0
    %2608 = vmatpush1.bf16.msra.mxu0 0
    %2609 = vmatprep.subr.bf16.mxu0 0
    %2610 = vmatpush1.bf16.msra.mxu0 0
    %2611 = vmatprep.subr.bf16.mxu0 0
    %2612 = vmatpush1.bf16.msra.mxu0 %v2593
    %2613 = vmatprep.subr.bf16.mxu0 0
    %2614 = vmatpush1.bf16.msra.mxu0 %v2592
    %2615 = vmatprep.subr.bf16.mxu0 0
    %2616 = vmatpush2.bf16.msra.mxu0 0
    %2617 = vmatprep.subr.bf16.mxu0 0
    %2618 = vmatpush2.bf16.msra.mxu0 0
    %2619 = vmatprep.subr.bf16.mxu0 0
    %2620 = vmatpush2.bf16.msra.mxu0 0
    %2621 = vmatprep.subr.bf16.mxu0 0
    %2622 = vmatpush2.bf16.msra.mxu0 0
    %2623 = vmatprep.subr.bf16.mxu0 0
    %2624 = vmatpush2.bf16.msra.mxu0 0
    %2625 = vmatprep.subr.bf16.mxu0 0
    %2626 = vmatpush2.bf16.msra.mxu0 0
    %2627 = vmatprep.subr.bf16.mxu0 0
    %2628 = vmatpush2.bf16.msra.mxu0 0
    %2629 = vmatprep.subr.bf16.mxu0 0
    %2630 = vmatpush2.bf16.msra.mxu0 0
    %2631 = vmatprep.mubr.bf16.mxu0 0
    %2632 = vmatmul.mubr.bf16.gmra.mxu0 %v2597
    %v2633 = vpop.f32.mrf.mxu0
    %v2634 = vadd.f32 0.0, %v2633
    %v2635 = vpop.f32.mrf.mxu0
    %v2636 = vpop.f32.mrf.mxu0
    %v2637 = vpop.f32.mrf.mxu0
    %2638 = vdwg.mxu0
    %v2639 = vmul.f32 %v2634, 0.25
    %v2640 = vxor.u32 %v2639, 2147483648
    %v2641 = vmul.f32 %v2640, 1.442695
    %v2642 = vpow.pop %v2641
    %v2643 = vadd.f32 %v2642, 1.0
    %v2644 = vrcp.pop %v2643
    %v2645 = vmul.f32 1.0, %v2644
    %vm2646 = vcmask 15360
    %v2647 = vsel %vm2646, %v2639, -inf
    %2648 = vmax.xlane.f32.xlu0 %v2647
    %v2649 = vpop.xlane.xlu0 %2648
    %vm2650 = vcmp.ge.f32.partialorder %v2639, %v2649
    %v2651 = vsel %vm2650, %v481, 2
    %v2652 = vsel %vm2646, %v2651, 2147483647
    %v2653 = vand.u32 %v2652, 65535
    %v2654 = vshra.s32 %v2652, 16
    %v2655 = vcvt.s32.f32 %v2653
    %v2656 = vcvt.s32.f32 %v2654
    %2657 = vmin.xlane.f32.xlu0 %v2656
    %v2658 = vpop.xlane.xlu0 %2657
    %vm2659 = vcmp.eq.f32.partialorder %v2656, %v2658
    %v2660 = vsel %vm2659, %v2655, inf
    %2661 = vmin.xlane.f32.xlu0 %v2660
    %v2662 = vpop.xlane.xlu0 %2661
    %v2663 = vcvt.f32.s32 %v2662
    %v2664 = vcvt.f32.s32 %v2658
    %v2665 = vshll.u32 %v2664, 16
    %v2666 = vadd.s32 %v2665, %v2663
    %vm2667 = vcmp.eq.s32.totalorder %v481, %v2666
    %v2668 = vsel %vm2667, 1, 0
    %v2669 = vcvt.s32.f32 %v2668
    %v2670 = vadd.f32 %v2669, 0.0
    %v2671 = vpack.c.bf16 %v2645, %v2645
    %v2673 = vsel %vm2646, %v2671, 0
    %vm2675 = vcmask 1040384
    %v2677 = vsel %vm2675, %v2456, 0
    %2679 = vmatprep.subr.bf16.mxu0 0
    %2680 = vmatpush1.bf16.msra.mxu0 0
    %2681 = vmatprep.subr.bf16.mxu0 0
    %2682 = vmatpush1.bf16.msra.mxu0 0
    %2683 = vmatprep.subr.bf16.mxu0 0
    %2684 = vmatpush1.bf16.msra.mxu0 0
    %2685 = vmatprep.subr.bf16.mxu0 0
    %2686 = vmatpush1.bf16.msra.mxu0 0
    %2687 = vmatprep.subr.bf16.mxu0 0
    %2688 = vmatpush1.bf16.msra.mxu0 0
    %2689 = vmatprep.subr.bf16.mxu0 0
    %2690 = vmatpush1.bf16.msra.mxu0 0
    %2691 = vmatprep.subr.bf16.mxu0 0
    %2692 = vmatpush1.bf16.msra.mxu0 0
    %2693 = vmatprep.subr.bf16.mxu0 0
    %2694 = vmatpush1.bf16.msra.mxu0 %v2677
    %2695 = vmatprep.subr.bf16.mxu0 0
    %2696 = vmatpush2.bf16.msra.mxu0 0
    %2697 = vmatprep.subr.bf16.mxu0 0
    %2698 = vmatpush2.bf16.msra.mxu0 0
    %2699 = vmatprep.subr.bf16.mxu0 0
    %2700 = vmatpush2.bf16.msra.mxu0 0
    %2701 = vmatprep.subr.bf16.mxu0 0
    %2702 = vmatpush2.bf16.msra.mxu0 0
    %2703 = vmatprep.subr.bf16.mxu0 0
    %2704 = vmatpush2.bf16.msra.mxu0 0
    %2705 = vmatprep.subr.bf16.mxu0 0
    %2706 = vmatpush2.bf16.msra.mxu0 0
    %2707 = vmatprep.subr.bf16.mxu0 0
    %2708 = vmatpush2.bf16.msra.mxu0 0
    %2709 = vmatprep.subr.bf16.mxu0 0
    %2710 = vmatpush2.bf16.msra.mxu0 0
    %2711 = vmatprep.mubr.bf16.mxu0 0
    %2712 = vmatmul.mubr.bf16.gmra.mxu0 %v2673
    %v2713 = vpop.f32.mrf.mxu0
    %v2714 = vadd.f32 0.0, %v2713
    %v2715 = vpop.f32.mrf.mxu0
    %v2716 = vpop.f32.mrf.mxu0
    %v2717 = vpop.f32.mrf.mxu0
    %2718 = vdwg.mxu0
    %2720 = vrot.lane.b32.xlu0 %v2512, 96
    %v2721 = vpop.permute.xlu0 %2720
    %v2723 = vmul.f32 %v2714, %v2721
    %v2724 = vpack.c.bf16 %v2723, %v2723
    %v2733 = vunpack.c.l.b16 %v2435
    %v2734 = vunpack.c.l.b16 %v2436
    %v2735 = vunpack.c.l.b16 %v2437
    %v2736 = vunpack.c.l.b16 %v2438
    %v2737 = vunpack.c.l.b16 %v2439
    %v2738 = vunpack.c.l.b16 %v2440
    %v2739 = vunpack.c.l.b16 %v2441
    %v2740 = vunpack.c.l.b16 %v2442
    %v2741 = vpack.c.b16 %v2734, %v2733
    %v2742 = vpack.c.b16 %v2736, %v2735
    %v2743 = vpack.c.b16 %v2738, %v2737
    %v2744 = vpack.c.b16 %v2740, %v2739
    %2751 = vrot.lane.b32.xlu0 %v2576, 96
    %v2752 = vpop.permute.xlu0 %2751
    %2753 = vrot.lane.b32.xlu0 %v2578, 96
    %v2754 = vpop.permute.xlu0 %2753
    %vm2755 = vcmask 785408
    %v2756 = vsel %vm2755, %v2752, %v2754
    %v2759 = vsel %vm429, %v2724, 0
    %2761 = vmatprep.subr.bf16.mxu0 0
    %2762 = vmatpush1.bf16.msra.mxu0 0
    %2763 = vmatprep.subr.bf16.mxu0 0
    %2764 = vmatpush1.bf16.msra.mxu0 0
    %2765 = vmatprep.subr.bf16.mxu0 0
    %2766 = vmatpush1.bf16.msra.mxu0 0
    %2767 = vmatprep.subr.bf16.mxu0 0
    %2768 = vmatpush1.bf16.msra.mxu0 0
    %2769 = vmatprep.subr.bf16.mxu0 0
    %2770 = vmatpush1.bf16.msra.mxu0 %v2744
    %2771 = vmatprep.subr.bf16.mxu0 0
    %2772 = vmatpush1.bf16.msra.mxu0 %v2743
    %2773 = vmatprep.subr.bf16.mxu0 0
    %2774 = vmatpush1.bf16.msra.mxu0 %v2742
    %2775 = vmatprep.subr.bf16.mxu0 0
    %2776 = vmatpush1.bf16.msra.mxu0 %v2741
    %2777 = vmatprep.subr.bf16.mxu0 0
    %2778 = vmatpush2.bf16.msra.mxu0 0
    %2779 = vmatprep.subr.bf16.mxu0 0
    %2780 = vmatpush2.bf16.msra.mxu0 0
    %2781 = vmatprep.subr.bf16.mxu0 0
    %2782 = vmatpush2.bf16.msra.mxu0 0
    %2783 = vmatprep.subr.bf16.mxu0 0
    %2784 = vmatpush2.bf16.msra.mxu0 0
    %2785 = vmatprep.subr.bf16.mxu0 0
    %2786 = vmatpush2.bf16.msra.mxu0 0
    %2787 = vmatprep.subr.bf16.mxu0 0
    %2788 = vmatpush2.bf16.msra.mxu0 0
    %2789 = vmatprep.subr.bf16.mxu0 0
    %2790 = vmatpush2.bf16.msra.mxu0 0
    %2791 = vmatprep.subr.bf16.mxu0 0
    %2792 = vmatpush2.bf16.msra.mxu0 0
    %2793 = vmatprep.mubr.bf16.mxu0 0
    %2794 = vmatmul.mubr.bf16.gmra.mxu0 %v2759
    %v2795 = vpop.f32.mrf.mxu0
    %v2796 = vadd.f32 %v2756, %v2795
    %v2797 = vpop.f32.mrf.mxu0
    %v2798 = vpop.f32.mrf.mxu0
    %v2799 = vpop.f32.mrf.mxu0
    %2800 = vdwg.mxu0
    %v2802 = vlaneseq
    %v2803 = vshrl.u32 %v2802, 7
    %v2804 = vsub.s32 0, %v2803
    %v2805 = vrot.slane %v2443, %v2804
    %v2807 = vadd.f32 %v2796, %v2805
    %v2808 = vxor.u32 %v2807, 2147483648
    %v2809 = vmul.f32 %v2808, 1.442695
    %v2810 = vpow.pop %v2809
    %v2811 = vadd.f32 %v2810, 1.0
    %v2812 = vrcp.pop %v2811
    %v2813 = vmul.f32 1.0, %v2812
    %v2814 = vtanh.pop %v2807
    %2816 = vrot.lane.b32.xlu0 %v2460, 32
    %v2817 = vpop.permute.xlu0 %2816
    %v2819 = vmul.f32 %v2813, %v2817
    %2821 = vrot.lane.b32.xlu0 %v2814, 64
    %v2822 = vpop.permute.xlu0 %2821
    %v2824 = vmul.f32 %v2813, %v2822
    %2826 = vrot.lane.b32.xlu0 %v2824, 32
    %v2827 = vpop.permute.xlu0 %2826
    %v2829 = vadd.f32 %v2819, %v2827
    %v2830 = vtanh.pop %v2829
    %2832 = vrot.lane.b32.xlu0 %v2830, 64
    %v2833 = vpop.permute.xlu0 %2832
    %v2835 = vmul.f32 %v2813, %v2833
    %v2836 = vpack.c.bf16 %v2835, %v2835
    %2838 = vrot.lane.b32.xlu0 %v2836, 32
    %v2839 = vpop.permute.xlu0 %2838
    %v2844 = vunpack.c.l.b16 %v2444
    %v2845 = vunpack.c.l.b16 %v2445
    %v2846 = vunpack.c.l.b16 %v2446
    %v2847 = vunpack.c.l.b16 %v2447
    %v2848 = vpack.c.b16 %v2845, %v2844
    %v2849 = vpack.c.b16 %v2847, %v2846
    %v2853 = vsel %vm358, %v2839, 0
    %2855 = vmatprep.subr.bf16.mxu0 0
    %2856 = vmatpush1.bf16.msra.mxu0 0
    %2857 = vmatprep.subr.bf16.mxu0 0
    %2858 = vmatpush1.bf16.msra.mxu0 0
    %2859 = vmatprep.subr.bf16.mxu0 0
    %2860 = vmatpush1.bf16.msra.mxu0 0
    %2861 = vmatprep.subr.bf16.mxu0 0
    %2862 = vmatpush1.bf16.msra.mxu0 0
    %2863 = vmatprep.subr.bf16.mxu0 0
    %2864 = vmatpush1.bf16.msra.mxu0 0
    %2865 = vmatprep.subr.bf16.mxu0 0
    %2866 = vmatpush1.bf16.msra.mxu0 0
    %2867 = vmatprep.subr.bf16.mxu0 0
    %2868 = vmatpush1.bf16.msra.mxu0 %v2849
    %2869 = vmatprep.subr.bf16.mxu0 0
    %2870 = vmatpush1.bf16.msra.mxu0 %v2848
    %2871 = vmatprep.subr.bf16.mxu0 0
    %2872 = vmatpush2.bf16.msra.mxu0 0
    %2873 = vmatprep.subr.bf16.mxu0 0
    %2874 = vmatpush2.bf16.msra.mxu0 0
    %2875 = vmatprep.subr.bf16.mxu0 0
    %2876 = vmatpush2.bf16.msra.mxu0 0
    %2877 = vmatprep.subr.bf16.mxu0 0
    %2878 = vmatpush2.bf16.msra.mxu0 0
    %2879 = vmatprep.subr.bf16.mxu0 0
    %2880 = vmatpush2.bf16.msra.mxu0 0
    %2881 = vmatprep.subr.bf16.mxu0 0
    %2882 = vmatpush2.bf16.msra.mxu0 0
    %2883 = vmatprep.subr.bf16.mxu0 0
    %2884 = vmatpush2.bf16.msra.mxu0 0
    %2885 = vmatprep.subr.bf16.mxu0 0
    %2886 = vmatpush2.bf16.msra.mxu0 0
    %2887 = vmatprep.mubr.bf16.mxu0 0
    %2888 = vmatmul.mubr.bf16.gmra.mxu0 %v2853
    %v2889 = vpop.f32.mrf.mxu0
    %v2890 = vadd.f32 0.0, %v2889
    %v2891 = vpop.f32.mrf.mxu0
    %v2892 = vpop.f32.mrf.mxu0
    %v2893 = vpop.f32.mrf.mxu0
    %2894 = vdwg.mxu0
    %2896 = vrot.lane.b32.xlu0 %v2890, 120
    %v2897 = vpop.permute.xlu0 %2896
    %2899 = vrot.lane.b32.xlu0 %v2890, 112
    %v2900 = vpop.permute.xlu0 %2899
    %2902 = vrot.lane.b32.xlu0 %v2890, 104
    %v2903 = vpop.permute.xlu0 %2902
    %v2905 = vcombine.low %v2890, %v2900
    %v2906 = vcombine.high %v2890, %v2900
    %v2908 = vunpack.c.l.s4 1983009808
    %v2909 = vunpack.c.0.s8 %v2908
    %v2910 = vlaneseq
    %v2911 = vshrl.u32 %v2910, 7
    %v2912 = vsub.s32 %v2909, %v2911
    %v2913 = vrot.slane %v2905, %v2912
    %v2915 = vunpack.c.l.s4 1983009808
    %v2916 = vunpack.c.0.s8 %v2915
    %v2917 = vlaneseq
    %v2918 = vshrl.u32 %v2917, 7
    %v2919 = vsub.s32 %v2916, %v2918
    %v2920 = vrot.slane %v2906, %v2919
    %v2921 = vcombine.low %v2897, %v2903
    %v2922 = vcombine.high %v2897, %v2903
    %v2924 = vunpack.c.l.s4 1983009808
    %v2925 = vunpack.c.0.s8 %v2924
    %v2926 = vlaneseq
    %v2927 = vshrl.u32 %v2926, 7
    %v2928 = vsub.s32 %v2925, %v2927
    %v2929 = vrot.slane %v2921, %v2928
    %v2931 = vunpack.c.l.s4 1983009808
    %v2932 = vunpack.c.0.s8 %v2931
    %v2933 = vlaneseq
    %v2934 = vshrl.u32 %v2933, 7
    %v2935 = vsub.s32 %v2932, %v2934
    %v2936 = vrot.slane %v2922, %v2935
    %v2937 = vcombine.low %v2913, %v2929
    %v2938 = vcombine.high %v2913, %v2929
    %v2940 = vunpack.c.l.s4 1934713408
    %v2941 = vunpack.c.0.s8 %v2940
    %v2942 = vlaneseq
    %v2943 = vshrl.u32 %v2942, 7
    %v2944 = vsub.s32 %v2941, %v2943
    %v2945 = vrot.slane %v2937, %v2944
    %v2947 = vunpack.c.l.s4 1934713408
    %v2948 = vunpack.c.0.s8 %v2947
    %v2949 = vlaneseq
    %v2950 = vshrl.u32 %v2949, 7
    %v2951 = vsub.s32 %v2948, %v2950
    %v2952 = vrot.slane %v2938, %v2951
    %v2953 = vcombine.low %v2920, %v2936
    %v2954 = vcombine.high %v2920, %v2936
    %v2956 = vunpack.c.l.s4 1934713408
    %v2957 = vunpack.c.0.s8 %v2956
    %v2958 = vlaneseq
    %v2959 = vshrl.u32 %v2958, 7
    %v2960 = vsub.s32 %v2957, %v2959
    %v2961 = vrot.slane %v2953, %v2960
    %v2963 = vunpack.c.l.s4 1934713408
    %v2964 = vunpack.c.0.s8 %v2963
    %v2965 = vlaneseq
    %v2966 = vshrl.u32 %v2965, 7
    %v2967 = vsub.s32 %v2964, %v2966
    %v2968 = vrot.slane %v2954, %v2967
    %v2969 = vcombine.high %v2945, 0.0
    %v2970 = vcombine.high %v2952, 0.0
    %v2971 = vcombine.high %v2961, 0.0
    %v2972 = vcombine.high %v2968, 0.0
    %v2973 = vpack.c.bf16 %v2945, %v2945
    %v2974 = vpack.c.bf16 %v2969, %v2969
    %v2975 = vpack.c.bf16 %v2952, %v2952
    %v2976 = vpack.c.bf16 %v2970, %v2970
    %v2977 = vpack.c.bf16 %v2961, %v2961
    %v2978 = vpack.c.bf16 %v2971, %v2971
    %v2979 = vpack.c.bf16 %v2968, %v2968
    %v2980 = vpack.c.bf16 %v2972, %v2972
    %2981 = vrot.lane.b32.xlu0 %v2890, 96
    %v2982 = vpop.permute.xlu0 %2981
    %2983 = vrot.lane.b32.xlu0 %v2897, 96
    %v2984 = vpop.permute.xlu0 %2983
    %2985 = vrot.lane.b32.xlu0 %v2900, 96
    %v2986 = vpop.permute.xlu0 %2985
    %2987 = vrot.lane.b32.xlu0 %v2903, 96
    %v2988 = vpop.permute.xlu0 %2987
    %v2993 = vcombine.low %v2982, %v2986
    %v2994 = vcombine.high %v2982, %v2986
    %v2996 = vunpack.c.l.s4 1983009808
    %v2997 = vunpack.c.0.s8 %v2996
    %v2998 = vlaneseq
    %v2999 = vshrl.u32 %v2998, 7
    %v3000 = vsub.s32 %v2997, %v2999
    %v3001 = vrot.slane %v2993, %v3000
    %v3003 = vunpack.c.l.s4 1983009808
    %v3004 = vunpack.c.0.s8 %v3003
    %v3005 = vlaneseq
    %v3006 = vshrl.u32 %v3005, 7
    %v3007 = vsub.s32 %v3004, %v3006
    %v3008 = vrot.slane %v2994, %v3007
    %v3009 = vcombine.low %v2984, %v2988
    %v3010 = vcombine.high %v2984, %v2988
    %v3012 = vunpack.c.l.s4 1983009808
    %v3013 = vunpack.c.0.s8 %v3012
    %v3014 = vlaneseq
    %v3015 = vshrl.u32 %v3014, 7
    %v3016 = vsub.s32 %v3013, %v3015
    %v3017 = vrot.slane %v3009, %v3016
    %v3019 = vunpack.c.l.s4 1983009808
    %v3020 = vunpack.c.0.s8 %v3019
    %v3021 = vlaneseq
    %v3022 = vshrl.u32 %v3021, 7
    %v3023 = vsub.s32 %v3020, %v3022
    %v3024 = vrot.slane %v3010, %v3023
    %v3025 = vcombine.low %v3001, %v3017
    %v3026 = vcombine.high %v3001, %v3017
    %v3028 = vunpack.c.l.s4 1934713408
    %v3029 = vunpack.c.0.s8 %v3028
    %v3030 = vlaneseq
    %v3031 = vshrl.u32 %v3030, 7
    %v3032 = vsub.s32 %v3029, %v3031
    %v3033 = vrot.slane %v3025, %v3032
    %v3035 = vunpack.c.l.s4 1934713408
    %v3036 = vunpack.c.0.s8 %v3035
    %v3037 = vlaneseq
    %v3038 = vshrl.u32 %v3037, 7
    %v3039 = vsub.s32 %v3036, %v3038
    %v3040 = vrot.slane %v3026, %v3039
    %v3041 = vcombine.low %v3008, %v3024
    %v3042 = vcombine.high %v3008, %v3024
    %v3044 = vunpack.c.l.s4 1934713408
    %v3045 = vunpack.c.0.s8 %v3044
    %v3046 = vlaneseq
    %v3047 = vshrl.u32 %v3046, 7
    %v3048 = vsub.s32 %v3045, %v3047
    %v3049 = vrot.slane %v3041, %v3048
    %v3051 = vunpack.c.l.s4 1934713408
    %v3052 = vunpack.c.0.s8 %v3051
    %v3053 = vlaneseq
    %v3054 = vshrl.u32 %v3053, 7
    %v3055 = vsub.s32 %v3052, %v3054
    %v3056 = vrot.slane %v3042, %v3055
    %v3057 = vcombine.high %v3033, 0.0
    %v3058 = vcombine.high %v3040, 0.0
    %v3059 = vcombine.high %v3049, 0.0
    %v3060 = vcombine.high %v3056, 0.0
    %v3061 = vpack.c.bf16 %v3033, %v3033
    %v3062 = vpack.c.bf16 %v3057, %v3057
    %v3063 = vpack.c.bf16 %v3040, %v3040
    %v3064 = vpack.c.bf16 %v3058, %v3058
    %v3065 = vpack.c.bf16 %v3049, %v3049
    %v3066 = vpack.c.bf16 %v3059, %v3059
    %v3067 = vpack.c.bf16 %v3056, %v3056
    %v3068 = vpack.c.bf16 %v3060, %v3060
    %3069 = vrot.lane.b32.xlu0 %v2890, 64
    %v3070 = vpop.permute.xlu0 %3069
    %3071 = vrot.lane.b32.xlu0 %v2897, 64
    %v3072 = vpop.permute.xlu0 %3071
    %3073 = vrot.lane.b32.xlu0 %v2900, 64
    %v3074 = vpop.permute.xlu0 %3073
    %3075 = vrot.lane.b32.xlu0 %v2903, 64
    %v3076 = vpop.permute.xlu0 %3075
    %v3081 = vcombine.low %v3070, %v3074
    %v3082 = vcombine.high %v3070, %v3074
    %v3084 = vunpack.c.l.s4 1983009808
    %v3085 = vunpack.c.0.s8 %v3084
    %v3086 = vlaneseq
    %v3087 = vshrl.u32 %v3086, 7
    %v3088 = vsub.s32 %v3085, %v3087
    %v3089 = vrot.slane %v3081, %v3088
    %v3091 = vunpack.c.l.s4 1983009808
    %v3092 = vunpack.c.0.s8 %v3091
    %v3093 = vlaneseq
    %v3094 = vshrl.u32 %v3093, 7
    %v3095 = vsub.s32 %v3092, %v3094
    %v3096 = vrot.slane %v3082, %v3095
    %v3097 = vcombine.low %v3072, %v3076
    %v3098 = vcombine.high %v3072, %v3076
    %v3100 = vunpack.c.l.s4 1983009808
    %v3101 = vunpack.c.0.s8 %v3100
    %v3102 = vlaneseq
    %v3103 = vshrl.u32 %v3102, 7
    %v3104 = vsub.s32 %v3101, %v3103
    %v3105 = vrot.slane %v3097, %v3104
    %v3107 = vunpack.c.l.s4 1983009808
    %v3108 = vunpack.c.0.s8 %v3107
    %v3109 = vlaneseq
    %v3110 = vshrl.u32 %v3109, 7
    %v3111 = vsub.s32 %v3108, %v3110
    %v3112 = vrot.slane %v3098, %v3111
    %v3113 = vcombine.low %v3089, %v3105
    %v3114 = vcombine.high %v3089, %v3105
    %v3116 = vunpack.c.l.s4 1934713408
    %v3117 = vunpack.c.0.s8 %v3116
    %v3118 = vlaneseq
    %v3119 = vshrl.u32 %v3118, 7
    %v3120 = vsub.s32 %v3117, %v3119
    %v3121 = vrot.slane %v3113, %v3120
    %v3123 = vunpack.c.l.s4 1934713408
    %v3124 = vunpack.c.0.s8 %v3123
    %v3125 = vlaneseq
    %v3126 = vshrl.u32 %v3125, 7
    %v3127 = vsub.s32 %v3124, %v3126
    %v3128 = vrot.slane %v3114, %v3127
    %v3129 = vcombine.low %v3096, %v3112
    %v3130 = vcombine.high %v3096, %v3112
    %v3132 = vunpack.c.l.s4 1934713408
    %v3133 = vunpack.c.0.s8 %v3132
    %v3134 = vlaneseq
    %v3135 = vshrl.u32 %v3134, 7
    %v3136 = vsub.s32 %v3133, %v3135
    %v3137 = vrot.slane %v3129, %v3136
    %v3139 = vunpack.c.l.s4 1934713408
    %v3140 = vunpack.c.0.s8 %v3139
    %v3141 = vlaneseq
    %v3142 = vshrl.u32 %v3141, 7
    %v3143 = vsub.s32 %v3140, %v3142
    %v3144 = vrot.slane %v3130, %v3143
    %v3145 = vcombine.high %v3121, 0.0
    %v3146 = vcombine.high %v3128, 0.0
    %v3147 = vcombine.high %v3137, 0.0
    %v3148 = vcombine.high %v3144, 0.0
    %v3149 = vpack.c.bf16 %v3121, %v3121
    %v3150 = vpack.c.bf16 %v3145, %v3145
    %v3151 = vpack.c.bf16 %v3128, %v3128
    %v3152 = vpack.c.bf16 %v3146, %v3146
    %v3153 = vpack.c.bf16 %v3137, %v3137
    %v3154 = vpack.c.bf16 %v3147, %v3147
    %v3155 = vpack.c.bf16 %v3144, %v3144
    %v3156 = vpack.c.bf16 %v3148, %v3148
    %v3158 = vsel %vm1265, %v2973, 0
    %v3161 = vsel %vm1265, %v3061, 0
    %3163 = vmatprep.subr.bf16.mxu0 0
    %3164 = vmatpush1.bf16.xpose.msra.mxu0 0
    %3165 = vmatprep.subr.bf16.mxu0 0
    %3166 = vmatpush1.bf16.xpose.msra.mxu0 0
    %3167 = vmatprep.subr.bf16.mxu0 0
    %3168 = vmatpush1.bf16.xpose.msra.mxu0 0
    %3169 = vmatprep.subr.bf16.mxu0 0
    %3170 = vmatpush1.bf16.xpose.msra.mxu0 0
    %3171 = vmatprep.subr.bf16.mxu0 0
    %3172 = vmatpush1.bf16.xpose.msra.mxu0 0
    %3173 = vmatprep.subr.bf16.mxu0 0
    %3174 = vmatpush1.bf16.xpose.msra.mxu0 0
    %3175 = vmatprep.subr.bf16.mxu0 0
    %3176 = vmatpush1.bf16.xpose.msra.mxu0 0
    %3177 = vmatprep.subr.bf16.mxu0 0
    %3178 = vmatpush1.bf16.xpose.msra.mxu0 %v3161
    %3179 = vmatprep.subr.bf16.mxu0 0
    %3180 = vmatpush2.bf16.xpose.msra.mxu0 0
    %3181 = vmatprep.subr.bf16.mxu0 0
    %3182 = vmatpush2.bf16.xpose.msra.mxu0 0
    %3183 = vmatprep.subr.bf16.mxu0 0
    %3184 = vmatpush2.bf16.xpose.msra.mxu0 0
    %3185 = vmatprep.subr.bf16.mxu0 0
    %3186 = vmatpush2.bf16.xpose.msra.mxu0 0
    %3187 = vmatprep.subr.bf16.mxu0 0
    %3188 = vmatpush2.bf16.xpose.msra.mxu0 0
    %3189 = vmatprep.subr.bf16.mxu0 0
    %3190 = vmatpush2.bf16.xpose.msra.mxu0 0
    %3191 = vmatprep.subr.bf16.mxu0 0
    %3192 = vmatpush2.bf16.xpose.msra.mxu0 0
    %3193 = vmatprep.subr.bf16.mxu0 0
    %3194 = vmatpush2.bf16.xpose.msra.mxu0 0
    %3195 = vmatprep.mubr.bf16.mxu0 0
    %3196 = vmatmul.mubr.bf16.gmra.mxu0 %v3158
    %v3197 = vpop.f32.mrf.mxu0
    %v3198 = vadd.f32 0.0, %v3197
    %v3199 = vpop.f32.mrf.mxu0
    %v3200 = vpop.f32.mrf.mxu0
    %v3201 = vpop.f32.mrf.mxu0
    %3202 = vdwg.mxu0
    %v3204 = vsel %vm1265, %v2974, 0
    %v3207 = vsel %vm1265, %v3062, 0
    %3209 = vmatprep.subr.bf16.mxu0 0
    %3210 = vmatpush1.bf16.xpose.msra.mxu0 0
    %3211 = vmatprep.subr.bf16.mxu0 0
    %3212 = vmatpush1.bf16.xpose.msra.mxu0 0
    %3213 = vmatprep.subr.bf16.mxu0 0
    %3214 = vmatpush1.bf16.xpose.msra.mxu0 0
    %3215 = vmatprep.subr.bf16.mxu0 0
    %3216 = vmatpush1.bf16.xpose.msra.mxu0 0
    %3217 = vmatprep.subr.bf16.mxu0 0
    %3218 = vmatpush1.bf16.xpose.msra.mxu0 0
    %3219 = vmatprep.subr.bf16.mxu0 0
    %3220 = vmatpush1.bf16.xpose.msra.mxu0 0
    %3221 = vmatprep.subr.bf16.mxu0 0
    %3222 = vmatpush1.bf16.xpose.msra.mxu0 0
    %3223 = vmatprep.subr.bf16.mxu0 0
    %3224 = vmatpush1.bf16.xpose.msra.mxu0 %v3207
    %3225 = vmatprep.subr.bf16.mxu0 0
    %3226 = vmatpush2.bf16.xpose.msra.mxu0 0
    %3227 = vmatprep.subr.bf16.mxu0 0
    %3228 = vmatpush2.bf16.xpose.msra.mxu0 0
    %3229 = vmatprep.subr.bf16.mxu0 0
    %3230 = vmatpush2.bf16.xpose.msra.mxu0 0
    %3231 = vmatprep.subr.bf16.mxu0 0
    %3232 = vmatpush2.bf16.xpose.msra.mxu0 0
    %3233 = vmatprep.subr.bf16.mxu0 0
    %3234 = vmatpush2.bf16.xpose.msra.mxu0 0
    %3235 = vmatprep.subr.bf16.mxu0 0
    %3236 = vmatpush2.bf16.xpose.msra.mxu0 0
    %3237 = vmatprep.subr.bf16.mxu0 0
    %3238 = vmatpush2.bf16.xpose.msra.mxu0 0
    %3239 = vmatprep.subr.bf16.mxu0 0
    %3240 = vmatpush2.bf16.xpose.msra.mxu0 0
    %3241 = vmatprep.mubr.bf16.mxu0 0
    %3242 = vmatmul.mubr.bf16.gmra.mxu0 %v3204
    %v3243 = vpop.f32.mrf.mxu0
    %v3244 = vadd.f32 0.0, %v3243
    %v3245 = vpop.f32.mrf.mxu0
    %v3246 = vpop.f32.mrf.mxu0
    %v3247 = vpop.f32.mrf.mxu0
    %3248 = vdwg.mxu0
    %v3250 = vsel %vm1265, %v2975, 0
    %v3253 = vsel %vm1265, %v3063, 0
    %3255 = vmatprep.subr.bf16.mxu0 0
    %3256 = vmatpush1.bf16.xpose.msra.mxu0 0
    %3257 = vmatprep.subr.bf16.mxu0 0
    %3258 = vmatpush1.bf16.xpose.msra.mxu0 0
    %3259 = vmatprep.subr.bf16.mxu0 0
    %3260 = vmatpush1.bf16.xpose.msra.mxu0 0
    %3261 = vmatprep.subr.bf16.mxu0 0
    %3262 = vmatpush1.bf16.xpose.msra.mxu0 0
    %3263 = vmatprep.subr.bf16.mxu0 0
    %3264 = vmatpush1.bf16.xpose.msra.mxu0 0
    %3265 = vmatprep.subr.bf16.mxu0 0
    %3266 = vmatpush1.bf16.xpose.msra.mxu0 0
    %3267 = vmatprep.subr.bf16.mxu0 0
    %3268 = vmatpush1.bf16.xpose.msra.mxu0 0
    %3269 = vmatprep.subr.bf16.mxu0 0
    %3270 = vmatpush1.bf16.xpose.msra.mxu0 %v3253
    %3271 = vmatprep.subr.bf16.mxu0 0
    %3272 = vmatpush2.bf16.xpose.msra.mxu0 0
    %3273 = vmatprep.subr.bf16.mxu0 0
    %3274 = vmatpush2.bf16.xpose.msra.mxu0 0
    %3275 = vmatprep.subr.bf16.mxu0 0
    %3276 = vmatpush2.bf16.xpose.msra.mxu0 0
    %3277 = vmatprep.subr.bf16.mxu0 0
    %3278 = vmatpush2.bf16.xpose.msra.mxu0 0
    %3279 = vmatprep.subr.bf16.mxu0 0
    %3280 = vmatpush2.bf16.xpose.msra.mxu0 0
    %3281 = vmatprep.subr.bf16.mxu0 0
    %3282 = vmatpush2.bf16.xpose.msra.mxu0 0
    %3283 = vmatprep.subr.bf16.mxu0 0
    %3284 = vmatpush2.bf16.xpose.msra.mxu0 0
    %3285 = vmatprep.subr.bf16.mxu0 0
    %3286 = vmatpush2.bf16.xpose.msra.mxu0 0
    %3287 = vmatprep.mubr.bf16.mxu0 0
    %3288 = vmatmul.mubr.bf16.gmra.mxu0 %v3250
    %v3289 = vpop.f32.mrf.mxu0
    %v3290 = vadd.f32 0.0, %v3289
    %v3291 = vpop.f32.mrf.mxu0
    %v3292 = vpop.f32.mrf.mxu0
    %v3293 = vpop.f32.mrf.mxu0
    %3294 = vdwg.mxu0
    %v3296 = vsel %vm1265, %v2976, 0
    %v3299 = vsel %vm1265, %v3064, 0
    %3301 = vmatprep.subr.bf16.mxu0 0
    %3302 = vmatpush1.bf16.xpose.msra.mxu0 0
    %3303 = vmatprep.subr.bf16.mxu0 0
    %3304 = vmatpush1.bf16.xpose.msra.mxu0 0
    %3305 = vmatprep.subr.bf16.mxu0 0
    %3306 = vmatpush1.bf16.xpose.msra.mxu0 0
    %3307 = vmatprep.subr.bf16.mxu0 0
    %3308 = vmatpush1.bf16.xpose.msra.mxu0 0
    %3309 = vmatprep.subr.bf16.mxu0 0
    %3310 = vmatpush1.bf16.xpose.msra.mxu0 0
    %3311 = vmatprep.subr.bf16.mxu0 0
    %3312 = vmatpush1.bf16.xpose.msra.mxu0 0
    %3313 = vmatprep.subr.bf16.mxu0 0
    %3314 = vmatpush1.bf16.xpose.msra.mxu0 0
    %3315 = vmatprep.subr.bf16.mxu0 0
    %3316 = vmatpush1.bf16.xpose.msra.mxu0 %v3299
    %3317 = vmatprep.subr.bf16.mxu0 0
    %3318 = vmatpush2.bf16.xpose.msra.mxu0 0
    %3319 = vmatprep.subr.bf16.mxu0 0
    %3320 = vmatpush2.bf16.xpose.msra.mxu0 0
    %3321 = vmatprep.subr.bf16.mxu0 0
    %3322 = vmatpush2.bf16.xpose.msra.mxu0 0
    %3323 = vmatprep.subr.bf16.mxu0 0
    %3324 = vmatpush2.bf16.xpose.msra.mxu0 0
    %3325 = vmatprep.subr.bf16.mxu0 0
    %3326 = vmatpush2.bf16.xpose.msra.mxu0 0
    %3327 = vmatprep.subr.bf16.mxu0 0
    %3328 = vmatpush2.bf16.xpose.msra.mxu0 0
    %3329 = vmatprep.subr.bf16.mxu0 0
    %3330 = vmatpush2.bf16.xpose.msra.mxu0 0
    %3331 = vmatprep.subr.bf16.mxu0 0
    %3332 = vmatpush2.bf16.xpose.msra.mxu0 0
    %3333 = vmatprep.mubr.bf16.mxu0 0
    %3334 = vmatmul.mubr.bf16.gmra.mxu0 %v3296
    %v3335 = vpop.f32.mrf.mxu0
    %v3336 = vadd.f32 0.0, %v3335
    %v3337 = vpop.f32.mrf.mxu0
    %v3338 = vpop.f32.mrf.mxu0
    %v3339 = vpop.f32.mrf.mxu0
    %3340 = vdwg.mxu0
    %v3342 = vsel %vm1265, %v2977, 0
    %v3345 = vsel %vm1265, %v3065, 0
    %3347 = vmatprep.subr.bf16.mxu0 0
    %3348 = vmatpush1.bf16.xpose.msra.mxu0 0
    %3349 = vmatprep.subr.bf16.mxu0 0
    %3350 = vmatpush1.bf16.xpose.msra.mxu0 0
    %3351 = vmatprep.subr.bf16.mxu0 0
    %3352 = vmatpush1.bf16.xpose.msra.mxu0 0
    %3353 = vmatprep.subr.bf16.mxu0 0
    %3354 = vmatpush1.bf16.xpose.msra.mxu0 0
    %3355 = vmatprep.subr.bf16.mxu0 0
    %3356 = vmatpush1.bf16.xpose.msra.mxu0 0
    %3357 = vmatprep.subr.bf16.mxu0 0
    %3358 = vmatpush1.bf16.xpose.msra.mxu0 0
    %3359 = vmatprep.subr.bf16.mxu0 0
    %3360 = vmatpush1.bf16.xpose.msra.mxu0 0
    %3361 = vmatprep.subr.bf16.mxu0 0
    %3362 = vmatpush1.bf16.xpose.msra.mxu0 %v3345
    %3363 = vmatprep.subr.bf16.mxu0 0
    %3364 = vmatpush2.bf16.xpose.msra.mxu0 0
    %3365 = vmatprep.subr.bf16.mxu0 0
    %3366 = vmatpush2.bf16.xpose.msra.mxu0 0
    %3367 = vmatprep.subr.bf16.mxu0 0
    %3368 = vmatpush2.bf16.xpose.msra.mxu0 0
    %3369 = vmatprep.subr.bf16.mxu0 0
    %3370 = vmatpush2.bf16.xpose.msra.mxu0 0
    %3371 = vmatprep.subr.bf16.mxu0 0
    %3372 = vmatpush2.bf16.xpose.msra.mxu0 0
    %3373 = vmatprep.subr.bf16.mxu0 0
    %3374 = vmatpush2.bf16.xpose.msra.mxu0 0
    %3375 = vmatprep.subr.bf16.mxu0 0
    %3376 = vmatpush2.bf16.xpose.msra.mxu0 0
    %3377 = vmatprep.subr.bf16.mxu0 0
    %3378 = vmatpush2.bf16.xpose.msra.mxu0 0
    %3379 = vmatprep.mubr.bf16.mxu0 0
    %3380 = vmatmul.mubr.bf16.gmra.mxu0 %v3342
    %v3381 = vpop.f32.mrf.mxu0
    %v3382 = vadd.f32 0.0, %v3381
    %v3383 = vpop.f32.mrf.mxu0
    %v3384 = vpop.f32.mrf.mxu0
    %v3385 = vpop.f32.mrf.mxu0
    %3386 = vdwg.mxu0
    %v3388 = vsel %vm1265, %v2978, 0
    %v3391 = vsel %vm1265, %v3066, 0
    %3393 = vmatprep.subr.bf16.mxu0 0
    %3394 = vmatpush1.bf16.xpose.msra.mxu0 0
    %3395 = vmatprep.subr.bf16.mxu0 0
    %3396 = vmatpush1.bf16.xpose.msra.mxu0 0
    %3397 = vmatprep.subr.bf16.mxu0 0
    %3398 = vmatpush1.bf16.xpose.msra.mxu0 0
    %3399 = vmatprep.subr.bf16.mxu0 0
    %3400 = vmatpush1.bf16.xpose.msra.mxu0 0
    %3401 = vmatprep.subr.bf16.mxu0 0
    %3402 = vmatpush1.bf16.xpose.msra.mxu0 0
    %3403 = vmatprep.subr.bf16.mxu0 0
    %3404 = vmatpush1.bf16.xpose.msra.mxu0 0
    %3405 = vmatprep.subr.bf16.mxu0 0
    %3406 = vmatpush1.bf16.xpose.msra.mxu0 0
    %3407 = vmatprep.subr.bf16.mxu0 0
    %3408 = vmatpush1.bf16.xpose.msra.mxu0 %v3391
    %3409 = vmatprep.subr.bf16.mxu0 0
    %3410 = vmatpush2.bf16.xpose.msra.mxu0 0
    %3411 = vmatprep.subr.bf16.mxu0 0
    %3412 = vmatpush2.bf16.xpose.msra.mxu0 0
    %3413 = vmatprep.subr.bf16.mxu0 0
    %3414 = vmatpush2.bf16.xpose.msra.mxu0 0
    %3415 = vmatprep.subr.bf16.mxu0 0
    %3416 = vmatpush2.bf16.xpose.msra.mxu0 0
    %3417 = vmatprep.subr.bf16.mxu0 0
    %3418 = vmatpush2.bf16.xpose.msra.mxu0 0
    %3419 = vmatprep.subr.bf16.mxu0 0
    %3420 = vmatpush2.bf16.xpose.msra.mxu0 0
    %3421 = vmatprep.subr.bf16.mxu0 0
    %3422 = vmatpush2.bf16.xpose.msra.mxu0 0
    %3423 = vmatprep.subr.bf16.mxu0 0
    %3424 = vmatpush2.bf16.xpose.msra.mxu0 0
    %3425 = vmatprep.mubr.bf16.mxu0 0
    %3426 = vmatmul.mubr.bf16.gmra.mxu0 %v3388
    %v3427 = vpop.f32.mrf.mxu0
    %v3428 = vadd.f32 0.0, %v3427
    %v3429 = vpop.f32.mrf.mxu0
    %v3430 = vpop.f32.mrf.mxu0
    %v3431 = vpop.f32.mrf.mxu0
    %3432 = vdwg.mxu0
    %v3434 = vsel %vm1265, %v2979, 0
    %v3437 = vsel %vm1265, %v3067, 0
    %3439 = vmatprep.subr.bf16.mxu0 0
    %3440 = vmatpush1.bf16.xpose.msra.mxu0 0
    %3441 = vmatprep.subr.bf16.mxu0 0
    %3442 = vmatpush1.bf16.xpose.msra.mxu0 0
    %3443 = vmatprep.subr.bf16.mxu0 0
    %3444 = vmatpush1.bf16.xpose.msra.mxu0 0
    %3445 = vmatprep.subr.bf16.mxu0 0
    %3446 = vmatpush1.bf16.xpose.msra.mxu0 0
    %3447 = vmatprep.subr.bf16.mxu0 0
    %3448 = vmatpush1.bf16.xpose.msra.mxu0 0
    %3449 = vmatprep.subr.bf16.mxu0 0
    %3450 = vmatpush1.bf16.xpose.msra.mxu0 0
    %3451 = vmatprep.subr.bf16.mxu0 0
    %3452 = vmatpush1.bf16.xpose.msra.mxu0 0
    %3453 = vmatprep.subr.bf16.mxu0 0
    %3454 = vmatpush1.bf16.xpose.msra.mxu0 %v3437
    %3455 = vmatprep.subr.bf16.mxu0 0
    %3456 = vmatpush2.bf16.xpose.msra.mxu0 0
    %3457 = vmatprep.subr.bf16.mxu0 0
    %3458 = vmatpush2.bf16.xpose.msra.mxu0 0
    %3459 = vmatprep.subr.bf16.mxu0 0
    %3460 = vmatpush2.bf16.xpose.msra.mxu0 0
    %3461 = vmatprep.subr.bf16.mxu0 0
    %3462 = vmatpush2.bf16.xpose.msra.mxu0 0
    %3463 = vmatprep.subr.bf16.mxu0 0
    %3464 = vmatpush2.bf16.xpose.msra.mxu0 0
    %3465 = vmatprep.subr.bf16.mxu0 0
    %3466 = vmatpush2.bf16.xpose.msra.mxu0 0
    %3467 = vmatprep.subr.bf16.mxu0 0
    %3468 = vmatpush2.bf16.xpose.msra.mxu0 0
    %3469 = vmatprep.subr.bf16.mxu0 0
    %3470 = vmatpush2.bf16.xpose.msra.mxu0 0
    %3471 = vmatprep.mubr.bf16.mxu0 0
    %3472 = vmatmul.mubr.bf16.gmra.mxu0 %v3434
    %v3473 = vpop.f32.mrf.mxu0
    %v3474 = vadd.f32 0.0, %v3473
    %v3475 = vpop.f32.mrf.mxu0
    %v3476 = vpop.f32.mrf.mxu0
    %v3477 = vpop.f32.mrf.mxu0
    %3478 = vdwg.mxu0
    %v3480 = vsel %vm1265, %v2980, 0
    %v3483 = vsel %vm1265, %v3068, 0
    %3485 = vmatprep.subr.bf16.mxu0 0
    %3486 = vmatpush1.bf16.xpose.msra.mxu0 0
    %3487 = vmatprep.subr.bf16.mxu0 0
    %3488 = vmatpush1.bf16.xpose.msra.mxu0 0
    %3489 = vmatprep.subr.bf16.mxu0 0
    %3490 = vmatpush1.bf16.xpose.msra.mxu0 0
    %3491 = vmatprep.subr.bf16.mxu0 0
    %3492 = vmatpush1.bf16.xpose.msra.mxu0 0
    %3493 = vmatprep.subr.bf16.mxu0 0
    %3494 = vmatpush1.bf16.xpose.msra.mxu0 0
    %3495 = vmatprep.subr.bf16.mxu0 0
    %3496 = vmatpush1.bf16.xpose.msra.mxu0 0
    %3497 = vmatprep.subr.bf16.mxu0 0
    %3498 = vmatpush1.bf16.xpose.msra.mxu0 0
    %3499 = vmatprep.subr.bf16.mxu0 0
    %3500 = vmatpush1.bf16.xpose.msra.mxu0 %v3483
    %3501 = vmatprep.subr.bf16.mxu0 0
    %3502 = vmatpush2.bf16.xpose.msra.mxu0 0
    %3503 = vmatprep.subr.bf16.mxu0 0
    %3504 = vmatpush2.bf16.xpose.msra.mxu0 0
    %3505 = vmatprep.subr.bf16.mxu0 0
    %3506 = vmatpush2.bf16.xpose.msra.mxu0 0
    %3507 = vmatprep.subr.bf16.mxu0 0
    %3508 = vmatpush2.bf16.xpose.msra.mxu0 0
    %3509 = vmatprep.subr.bf16.mxu0 0
    %3510 = vmatpush2.bf16.xpose.msra.mxu0 0
    %3511 = vmatprep.subr.bf16.mxu0 0
    %3512 = vmatpush2.bf16.xpose.msra.mxu0 0
    %3513 = vmatprep.subr.bf16.mxu0 0
    %3514 = vmatpush2.bf16.xpose.msra.mxu0 0
    %3515 = vmatprep.subr.bf16.mxu0 0
    %3516 = vmatpush2.bf16.xpose.msra.mxu0 0
    %3517 = vmatprep.mubr.bf16.mxu0 0
    %3518 = vmatmul.mubr.bf16.gmra.mxu0 %v3480
    %v3519 = vpop.f32.mrf.mxu0
    %v3520 = vadd.f32 0.0, %v3519
    %v3521 = vpop.f32.mrf.mxu0
    %v3522 = vpop.f32.mrf.mxu0
    %v3523 = vpop.f32.mrf.mxu0
    %3524 = vdwg.mxu0
    %v3525 = vmul.f32 %v3198, 0.35355338
    %v3526 = vmul.f32 %v3244, 0.35355338
    %v3527 = vmul.f32 %v3290, 0.35355338
    %v3528 = vmul.f32 %v3336, 0.35355338
    %v3529 = vmul.f32 %v3382, 0.35355338
    %v3530 = vmul.f32 %v3428, 0.35355338
    %v3531 = vmul.f32 %v3474, 0.35355338
    %v3532 = vmul.f32 %v3520, 0.35355338
    %v3533 = vadd.f32 %v3525, %v2458
    %v3534 = vadd.f32 %v3526, %v2458
    %v3535 = vadd.f32 %v3527, %v2458
    %v3536 = vadd.f32 %v3528, %v2458
    %v3537 = vadd.f32 %v3529, %v2458
    %v3538 = vadd.f32 %v3530, %v2458
    %v3539 = vadd.f32 %v3531, %v2458
    %v3540 = vadd.f32 %v3532, %v2458
    %vm3541 = vcmask 27648
    %v3542 = vsel %vm3541, %v3533, -inf
    %3543 = vmax.xlane.f32.xlu0 %v3542
    %v3544 = vpop.xlane.xlu0 %3543
    %v3545 = vsel %vm3541, %v3534, -inf
    %3546 = vmax.xlane.f32.xlu0 %v3545
    %v3547 = vpop.xlane.xlu0 %3546
    %v3548 = vsel %vm3541, %v3535, -inf
    %3549 = vmax.xlane.f32.xlu0 %v3548
    %v3550 = vpop.xlane.xlu0 %3549
    %v3551 = vsel %vm3541, %v3536, -inf
    %3552 = vmax.xlane.f32.xlu0 %v3551
    %v3553 = vpop.xlane.xlu0 %3552
    %v3554 = vsel %vm3541, %v3537, -inf
    %3555 = vmax.xlane.f32.xlu0 %v3554
    %v3556 = vpop.xlane.xlu0 %3555
    %v3557 = vsel %vm3541, %v3538, -inf
    %3558 = vmax.xlane.f32.xlu0 %v3557
    %v3559 = vpop.xlane.xlu0 %3558
    %v3560 = vsel %vm3541, %v3539, -inf
    %3561 = vmax.xlane.f32.xlu0 %v3560
    %v3562 = vpop.xlane.xlu0 %3561
    %v3563 = vsel %vm3541, %v3540, -inf
    %3564 = vmax.xlane.f32.xlu0 %v3563
    %v3565 = vpop.xlane.xlu0 %3564
    %v3566 = vsub.f32 %v3533, %v3544
    %v3567 = vsub.f32 %v3534, %v3547
    %v3568 = vsub.f32 %v3535, %v3550
    %v3569 = vsub.f32 %v3536, %v3553
    %v3570 = vsub.f32 %v3537, %v3556
    %v3571 = vsub.f32 %v3538, %v3559
    %v3572 = vsub.f32 %v3539, %v3562
    %v3573 = vsub.f32 %v3540, %v3565
    %v3574 = vmul.f32 %v3566, 1.442695
    %v3575 = vpow.pop %v3574
    %v3576 = vmul.f32 %v3567, 1.442695
    %v3577 = vpow.pop %v3576
    %v3578 = vmul.f32 %v3568, 1.442695
    %v3579 = vpow.pop %v3578
    %v3580 = vmul.f32 %v3569, 1.442695
    %v3581 = vpow.pop %v3580
    %v3582 = vmul.f32 %v3570, 1.442695
    %v3583 = vpow.pop %v3582
    %v3584 = vmul.f32 %v3571, 1.442695
    %v3585 = vpow.pop %v3584
    %v3586 = vmul.f32 %v3572, 1.442695
    %v3587 = vpow.pop %v3586
    %v3588 = vmul.f32 %v3573, 1.442695
    %v3589 = vpow.pop %v3588
    %v3590 = vsel %vm3541, %v3575, 0.0
    %3591 = vadd.xlane.f32.xlu0 %v3590
    %v3592 = vpop.xlane.xlu0 %3591
    %v3593 = vsel %vm3541, %v3577, 0.0
    %3594 = vadd.xlane.f32.xlu0 %v3593
    %v3595 = vpop.xlane.xlu0 %3594
    %v3596 = vsel %vm3541, %v3579, 0.0
    %3597 = vadd.xlane.f32.xlu0 %v3596
    %v3598 = vpop.xlane.xlu0 %3597
    %v3599 = vsel %vm3541, %v3581, 0.0
    %3600 = vadd.xlane.f32.xlu0 %v3599
    %v3601 = vpop.xlane.xlu0 %3600
    %v3602 = vsel %vm3541, %v3583, 0.0
    %3603 = vadd.xlane.f32.xlu0 %v3602
    %v3604 = vpop.xlane.xlu0 %3603
    %v3605 = vsel %vm3541, %v3585, 0.0
    %3606 = vadd.xlane.f32.xlu0 %v3605
    %v3607 = vpop.xlane.xlu0 %3606
    %v3608 = vsel %vm3541, %v3587, 0.0
    %3609 = vadd.xlane.f32.xlu0 %v3608
    %v3610 = vpop.xlane.xlu0 %3609
    %v3611 = vsel %vm3541, %v3589, 0.0
    %3612 = vadd.xlane.f32.xlu0 %v3611
    %v3613 = vpop.xlane.xlu0 %3612
    %v3614 = vrcp.pop %v3592
    %v3615 = vrcp.pop %v3595
    %v3616 = vrcp.pop %v3598
    %v3617 = vrcp.pop %v3601
    %v3618 = vrcp.pop %v3604
    %v3619 = vrcp.pop %v3607
    %v3620 = vrcp.pop %v3610
    %v3621 = vrcp.pop %v3613
    %v3622 = vmul.f32 %v3575, %v3614
    %v3623 = vmul.f32 %v3577, %v3615
    %v3624 = vmul.f32 %v3579, %v3616
    %v3625 = vmul.f32 %v3581, %v3617
    %v3626 = vmul.f32 %v3583, %v3618
    %v3627 = vmul.f32 %v3585, %v3619
    %v3628 = vmul.f32 %v3587, %v3620
    %v3629 = vmul.f32 %v3589, %v3621
    %v3630 = vpack.c.bf16 %v3622, %v3622
    %v3631 = vpack.c.bf16 %v3623, %v3623
    %v3632 = vpack.c.bf16 %v3624, %v3624
    %v3633 = vpack.c.bf16 %v3625, %v3625
    %v3634 = vpack.c.bf16 %v3626, %v3626
    %v3635 = vpack.c.bf16 %v3627, %v3627
    %v3636 = vpack.c.bf16 %v3628, %v3628
    %v3637 = vpack.c.bf16 %v3629, %v3629
    %v3639 = vsel %vm482, %v3630, 0
    %v3642 = vsel %vm537, %v3149, 0
    %3644 = vmatprep.subr.bf16.mxu0 0
    %3645 = vmatpush1.bf16.msra.mxu0 0
    %3646 = vmatprep.subr.bf16.mxu0 0
    %3647 = vmatpush1.bf16.msra.mxu0 0
    %3648 = vmatprep.subr.bf16.mxu0 0
    %3649 = vmatpush1.bf16.msra.mxu0 0
    %3650 = vmatprep.subr.bf16.mxu0 0
    %3651 = vmatpush1.bf16.msra.mxu0 0
    %3652 = vmatprep.subr.bf16.mxu0 0
    %3653 = vmatpush1.bf16.msra.mxu0 0
    %3654 = vmatprep.subr.bf16.mxu0 0
    %3655 = vmatpush1.bf16.msra.mxu0 0
    %3656 = vmatprep.subr.bf16.mxu0 0
    %3657 = vmatpush1.bf16.msra.mxu0 0
    %3658 = vmatprep.subr.bf16.mxu0 0
    %3659 = vmatpush1.bf16.msra.mxu0 %v3642
    %3660 = vmatprep.subr.bf16.mxu0 0
    %3661 = vmatpush2.bf16.msra.mxu0 0
    %3662 = vmatprep.subr.bf16.mxu0 0
    %3663 = vmatpush2.bf16.msra.mxu0 0
    %3664 = vmatprep.subr.bf16.mxu0 0
    %3665 = vmatpush2.bf16.msra.mxu0 0
    %3666 = vmatprep.subr.bf16.mxu0 0
    %3667 = vmatpush2.bf16.msra.mxu0 0
    %3668 = vmatprep.subr.bf16.mxu0 0
    %3669 = vmatpush2.bf16.msra.mxu0 0
    %3670 = vmatprep.subr.bf16.mxu0 0
    %3671 = vmatpush2.bf16.msra.mxu0 0
    %3672 = vmatprep.subr.bf16.mxu0 0
    %3673 = vmatpush2.bf16.msra.mxu0 0
    %3674 = vmatprep.subr.bf16.mxu0 0
    %3675 = vmatpush2.bf16.msra.mxu0 0
    %3676 = vmatprep.mubr.bf16.mxu0 0
    %3677 = vmatmul.mubr.bf16.gmra.mxu0 %v3639
    %v3678 = vpop.f32.mrf.mxu0
    %v3679 = vadd.f32 0.0, %v3678
    %v3680 = vpop.f32.mrf.mxu0
    %v3681 = vpop.f32.mrf.mxu0
    %v3682 = vpop.f32.mrf.mxu0
    %3683 = vdwg.mxu0
    %v3685 = vsel %vm482, %v3631, 0
    %v3688 = vsel %vm537, %v3150, 0
    %3690 = vmatprep.subr.bf16.mxu0 0
    %3691 = vmatpush1.bf16.msra.mxu0 0
    %3692 = vmatprep.subr.bf16.mxu0 0
    %3693 = vmatpush1.bf16.msra.mxu0 0
    %3694 = vmatprep.subr.bf16.mxu0 0
    %3695 = vmatpush1.bf16.msra.mxu0 0
    %3696 = vmatprep.subr.bf16.mxu0 0
    %3697 = vmatpush1.bf16.msra.mxu0 0
    %3698 = vmatprep.subr.bf16.mxu0 0
    %3699 = vmatpush1.bf16.msra.mxu0 0
    %3700 = vmatprep.subr.bf16.mxu0 0
    %3701 = vmatpush1.bf16.msra.mxu0 0
    %3702 = vmatprep.subr.bf16.mxu0 0
    %3703 = vmatpush1.bf16.msra.mxu0 0
    %3704 = vmatprep.subr.bf16.mxu0 0
    %3705 = vmatpush1.bf16.msra.mxu0 %v3688
    %3706 = vmatprep.subr.bf16.mxu0 0
    %3707 = vmatpush2.bf16.msra.mxu0 0
    %3708 = vmatprep.subr.bf16.mxu0 0
    %3709 = vmatpush2.bf16.msra.mxu0 0
    %3710 = vmatprep.subr.bf16.mxu0 0
    %3711 = vmatpush2.bf16.msra.mxu0 0
    %3712 = vmatprep.subr.bf16.mxu0 0
    %3713 = vmatpush2.bf16.msra.mxu0 0
    %3714 = vmatprep.subr.bf16.mxu0 0
    %3715 = vmatpush2.bf16.msra.mxu0 0
    %3716 = vmatprep.subr.bf16.mxu0 0
    %3717 = vmatpush2.bf16.msra.mxu0 0
    %3718 = vmatprep.subr.bf16.mxu0 0
    %3719 = vmatpush2.bf16.msra.mxu0 0
    %3720 = vmatprep.subr.bf16.mxu0 0
    %3721 = vmatpush2.bf16.msra.mxu0 0
    %3722 = vmatprep.mubr.bf16.mxu0 0
    %3723 = vmatmul.mubr.bf16.gmra.mxu0 %v3685
    %v3724 = vpop.f32.mrf.mxu0
    %v3725 = vadd.f32 0.0, %v3724
    %v3726 = vpop.f32.mrf.mxu0
    %v3727 = vpop.f32.mrf.mxu0
    %v3728 = vpop.f32.mrf.mxu0
    %3729 = vdwg.mxu0
    %v3731 = vsel %vm482, %v3632, 0
    %v3734 = vsel %vm537, %v3151, 0
    %3736 = vmatprep.subr.bf16.mxu0 0
    %3737 = vmatpush1.bf16.msra.mxu0 0
    %3738 = vmatprep.subr.bf16.mxu0 0
    %3739 = vmatpush1.bf16.msra.mxu0 0
    %3740 = vmatprep.subr.bf16.mxu0 0
    %3741 = vmatpush1.bf16.msra.mxu0 0
    %3742 = vmatprep.subr.bf16.mxu0 0
    %3743 = vmatpush1.bf16.msra.mxu0 0
    %3744 = vmatprep.subr.bf16.mxu0 0
    %3745 = vmatpush1.bf16.msra.mxu0 0
    %3746 = vmatprep.subr.bf16.mxu0 0
    %3747 = vmatpush1.bf16.msra.mxu0 0
    %3748 = vmatprep.subr.bf16.mxu0 0
    %3749 = vmatpush1.bf16.msra.mxu0 0
    %3750 = vmatprep.subr.bf16.mxu0 0
    %3751 = vmatpush1.bf16.msra.mxu0 %v3734
    %3752 = vmatprep.subr.bf16.mxu0 0
    %3753 = vmatpush2.bf16.msra.mxu0 0
    %3754 = vmatprep.subr.bf16.mxu0 0
    %3755 = vmatpush2.bf16.msra.mxu0 0
    %3756 = vmatprep.subr.bf16.mxu0 0
    %3757 = vmatpush2.bf16.msra.mxu0 0
    %3758 = vmatprep.subr.bf16.mxu0 0
    %3759 = vmatpush2.bf16.msra.mxu0 0
    %3760 = vmatprep.subr.bf16.mxu0 0
    %3761 = vmatpush2.bf16.msra.mxu0 0
    %3762 = vmatprep.subr.bf16.mxu0 0
    %3763 = vmatpush2.bf16.msra.mxu0 0
    %3764 = vmatprep.subr.bf16.mxu0 0
    %3765 = vmatpush2.bf16.msra.mxu0 0
    %3766 = vmatprep.subr.bf16.mxu0 0
    %3767 = vmatpush2.bf16.msra.mxu0 0
    %3768 = vmatprep.mubr.bf16.mxu0 0
    %3769 = vmatmul.mubr.bf16.gmra.mxu0 %v3731
    %v3770 = vpop.f32.mrf.mxu0
    %v3771 = vadd.f32 0.0, %v3770
    %v3772 = vpop.f32.mrf.mxu0
    %v3773 = vpop.f32.mrf.mxu0
    %v3774 = vpop.f32.mrf.mxu0
    %3775 = vdwg.mxu0
    %v3777 = vsel %vm482, %v3633, 0
    %v3780 = vsel %vm537, %v3152, 0
    %3782 = vmatprep.subr.bf16.mxu0 0
    %3783 = vmatpush1.bf16.msra.mxu0 0
    %3784 = vmatprep.subr.bf16.mxu0 0
    %3785 = vmatpush1.bf16.msra.mxu0 0
    %3786 = vmatprep.subr.bf16.mxu0 0
    %3787 = vmatpush1.bf16.msra.mxu0 0
    %3788 = vmatprep.subr.bf16.mxu0 0
    %3789 = vmatpush1.bf16.msra.mxu0 0
    %3790 = vmatprep.subr.bf16.mxu0 0
    %3791 = vmatpush1.bf16.msra.mxu0 0
    %3792 = vmatprep.subr.bf16.mxu0 0
    %3793 = vmatpush1.bf16.msra.mxu0 0
    %3794 = vmatprep.subr.bf16.mxu0 0
    %3795 = vmatpush1.bf16.msra.mxu0 0
    %3796 = vmatprep.subr.bf16.mxu0 0
    %3797 = vmatpush1.bf16.msra.mxu0 %v3780
    %3798 = vmatprep.subr.bf16.mxu0 0
    %3799 = vmatpush2.bf16.msra.mxu0 0
    %3800 = vmatprep.subr.bf16.mxu0 0
    %3801 = vmatpush2.bf16.msra.mxu0 0
    %3802 = vmatprep.subr.bf16.mxu0 0
    %3803 = vmatpush2.bf16.msra.mxu0 0
    %3804 = vmatprep.subr.bf16.mxu0 0
    %3805 = vmatpush2.bf16.msra.mxu0 0
    %3806 = vmatprep.subr.bf16.mxu0 0
    %3807 = vmatpush2.bf16.msra.mxu0 0
    %3808 = vmatprep.subr.bf16.mxu0 0
    %3809 = vmatpush2.bf16.msra.mxu0 0
    %3810 = vmatprep.subr.bf16.mxu0 0
    %3811 = vmatpush2.bf16.msra.mxu0 0
    %3812 = vmatprep.subr.bf16.mxu0 0
    %3813 = vmatpush2.bf16.msra.mxu0 0
    %3814 = vmatprep.mubr.bf16.mxu0 0
    %3815 = vmatmul.mubr.bf16.gmra.mxu0 %v3777
    %v3816 = vpop.f32.mrf.mxu0
    %v3817 = vadd.f32 0.0, %v3816
    %v3818 = vpop.f32.mrf.mxu0
    %v3819 = vpop.f32.mrf.mxu0
    %v3820 = vpop.f32.mrf.mxu0
    %3821 = vdwg.mxu0
    %v3823 = vsel %vm482, %v3634, 0
    %v3826 = vsel %vm537, %v3153, 0
    %3828 = vmatprep.subr.bf16.mxu0 0
    %3829 = vmatpush1.bf16.msra.mxu0 0
    %3830 = vmatprep.subr.bf16.mxu0 0
    %3831 = vmatpush1.bf16.msra.mxu0 0
    %3832 = vmatprep.subr.bf16.mxu0 0
    %3833 = vmatpush1.bf16.msra.mxu0 0
    %3834 = vmatprep.subr.bf16.mxu0 0
    %3835 = vmatpush1.bf16.msra.mxu0 0
    %3836 = vmatprep.subr.bf16.mxu0 0
    %3837 = vmatpush1.bf16.msra.mxu0 0
    %3838 = vmatprep.subr.bf16.mxu0 0
    %3839 = vmatpush1.bf16.msra.mxu0 0
    %3840 = vmatprep.subr.bf16.mxu0 0
    %3841 = vmatpush1.bf16.msra.mxu0 0
    %3842 = vmatprep.subr.bf16.mxu0 0
    %3843 = vmatpush1.bf16.msra.mxu0 %v3826
    %3844 = vmatprep.subr.bf16.mxu0 0
    %3845 = vmatpush2.bf16.msra.mxu0 0
    %3846 = vmatprep.subr.bf16.mxu0 0
    %3847 = vmatpush2.bf16.msra.mxu0 0
    %3848 = vmatprep.subr.bf16.mxu0 0
    %3849 = vmatpush2.bf16.msra.mxu0 0
    %3850 = vmatprep.subr.bf16.mxu0 0
    %3851 = vmatpush2.bf16.msra.mxu0 0
    %3852 = vmatprep.subr.bf16.mxu0 0
    %3853 = vmatpush2.bf16.msra.mxu0 0
    %3854 = vmatprep.subr.bf16.mxu0 0
    %3855 = vmatpush2.bf16.msra.mxu0 0
    %3856 = vmatprep.subr.bf16.mxu0 0
    %3857 = vmatpush2.bf16.msra.mxu0 0
    %3858 = vmatprep.subr.bf16.mxu0 0
    %3859 = vmatpush2.bf16.msra.mxu0 0
    %3860 = vmatprep.mubr.bf16.mxu0 0
    %3861 = vmatmul.mubr.bf16.gmra.mxu0 %v3823
    %v3862 = vpop.f32.mrf.mxu0
    %v3863 = vadd.f32 0.0, %v3862
    %v3864 = vpop.f32.mrf.mxu0
    %v3865 = vpop.f32.mrf.mxu0
    %v3866 = vpop.f32.mrf.mxu0
    %3867 = vdwg.mxu0
    %v3869 = vsel %vm482, %v3635, 0
    %v3872 = vsel %vm537, %v3154, 0
    %3874 = vmatprep.subr.bf16.mxu0 0
    %3875 = vmatpush1.bf16.msra.mxu0 0
    %3876 = vmatprep.subr.bf16.mxu0 0
    %3877 = vmatpush1.bf16.msra.mxu0 0
    %3878 = vmatprep.subr.bf16.mxu0 0
    %3879 = vmatpush1.bf16.msra.mxu0 0
    %3880 = vmatprep.subr.bf16.mxu0 0
    %3881 = vmatpush1.bf16.msra.mxu0 0
    %3882 = vmatprep.subr.bf16.mxu0 0
    %3883 = vmatpush1.bf16.msra.mxu0 0
    %3884 = vmatprep.subr.bf16.mxu0 0
    %3885 = vmatpush1.bf16.msra.mxu0 0
    %3886 = vmatprep.subr.bf16.mxu0 0
    %3887 = vmatpush1.bf16.msra.mxu0 0
    %3888 = vmatprep.subr.bf16.mxu0 0
    %3889 = vmatpush1.bf16.msra.mxu0 %v3872
    %3890 = vmatprep.subr.bf16.mxu0 0
    %3891 = vmatpush2.bf16.msra.mxu0 0
    %3892 = vmatprep.subr.bf16.mxu0 0
    %3893 = vmatpush2.bf16.msra.mxu0 0
    %3894 = vmatprep.subr.bf16.mxu0 0
    %3895 = vmatpush2.bf16.msra.mxu0 0
    %3896 = vmatprep.subr.bf16.mxu0 0
    %3897 = vmatpush2.bf16.msra.mxu0 0
    %3898 = vmatprep.subr.bf16.mxu0 0
    %3899 = vmatpush2.bf16.msra.mxu0 0
    %3900 = vmatprep.subr.bf16.mxu0 0
    %3901 = vmatpush2.bf16.msra.mxu0 0
    %3902 = vmatprep.subr.bf16.mxu0 0
    %3903 = vmatpush2.bf16.msra.mxu0 0
    %3904 = vmatprep.subr.bf16.mxu0 0
    %3905 = vmatpush2.bf16.msra.mxu0 0
    %3906 = vmatprep.mubr.bf16.mxu0 0
    %3907 = vmatmul.mubr.bf16.gmra.mxu0 %v3869
    %v3908 = vpop.f32.mrf.mxu0
    %v3909 = vadd.f32 0.0, %v3908
    %v3910 = vpop.f32.mrf.mxu0
    %v3911 = vpop.f32.mrf.mxu0
    %v3912 = vpop.f32.mrf.mxu0
    %3913 = vdwg.mxu0
    %v3915 = vsel %vm482, %v3636, 0
    %v3918 = vsel %vm537, %v3155, 0
    %3920 = vmatprep.subr.bf16.mxu0 0
    %3921 = vmatpush1.bf16.msra.mxu0 0
    %3922 = vmatprep.subr.bf16.mxu0 0
    %3923 = vmatpush1.bf16.msra.mxu0 0
    %3924 = vmatprep.subr.bf16.mxu0 0
    %3925 = vmatpush1.bf16.msra.mxu0 0
    %3926 = vmatprep.subr.bf16.mxu0 0
    %3927 = vmatpush1.bf16.msra.mxu0 0
    %3928 = vmatprep.subr.bf16.mxu0 0
    %3929 = vmatpush1.bf16.msra.mxu0 0
    %3930 = vmatprep.subr.bf16.mxu0 0
    %3931 = vmatpush1.bf16.msra.mxu0 0
    %3932 = vmatprep.subr.bf16.mxu0 0
    %3933 = vmatpush1.bf16.msra.mxu0 0
    %3934 = vmatprep.subr.bf16.mxu0 0
    %3935 = vmatpush1.bf16.msra.mxu0 %v3918
    %3936 = vmatprep.subr.bf16.mxu0 0
    %3937 = vmatpush2.bf16.msra.mxu0 0
    %3938 = vmatprep.subr.bf16.mxu0 0
    %3939 = vmatpush2.bf16.msra.mxu0 0
    %3940 = vmatprep.subr.bf16.mxu0 0
    %3941 = vmatpush2.bf16.msra.mxu0 0
    %3942 = vmatprep.subr.bf16.mxu0 0
    %3943 = vmatpush2.bf16.msra.mxu0 0
    %3944 = vmatprep.subr.bf16.mxu0 0
    %3945 = vmatpush2.bf16.msra.mxu0 0
    %3946 = vmatprep.subr.bf16.mxu0 0
    %3947 = vmatpush2.bf16.msra.mxu0 0
    %3948 = vmatprep.subr.bf16.mxu0 0
    %3949 = vmatpush2.bf16.msra.mxu0 0
    %3950 = vmatprep.subr.bf16.mxu0 0
    %3951 = vmatpush2.bf16.msra.mxu0 0
    %3952 = vmatprep.mubr.bf16.mxu0 0
    %3953 = vmatmul.mubr.bf16.gmra.mxu0 %v3915
    %v3954 = vpop.f32.mrf.mxu0
    %v3955 = vadd.f32 0.0, %v3954
    %v3956 = vpop.f32.mrf.mxu0
    %v3957 = vpop.f32.mrf.mxu0
    %v3958 = vpop.f32.mrf.mxu0
    %3959 = vdwg.mxu0
    %v3961 = vsel %vm482, %v3637, 0
    %v3964 = vsel %vm537, %v3156, 0
    %3966 = vmatprep.subr.bf16.mxu0 0
    %3967 = vmatpush1.bf16.msra.mxu0 0
    %3968 = vmatprep.subr.bf16.mxu0 0
    %3969 = vmatpush1.bf16.msra.mxu0 0
    %3970 = vmatprep.subr.bf16.mxu0 0
    %3971 = vmatpush1.bf16.msra.mxu0 0
    %3972 = vmatprep.subr.bf16.mxu0 0
    %3973 = vmatpush1.bf16.msra.mxu0 0
    %3974 = vmatprep.subr.bf16.mxu0 0
    %3975 = vmatpush1.bf16.msra.mxu0 0
    %3976 = vmatprep.subr.bf16.mxu0 0
    %3977 = vmatpush1.bf16.msra.mxu0 0
    %3978 = vmatprep.subr.bf16.mxu0 0
    %3979 = vmatpush1.bf16.msra.mxu0 0
    %3980 = vmatprep.subr.bf16.mxu0 0
    %3981 = vmatpush1.bf16.msra.mxu0 %v3964
    %3982 = vmatprep.subr.bf16.mxu0 0
    %3983 = vmatpush2.bf16.msra.mxu0 0
    %3984 = vmatprep.subr.bf16.mxu0 0
    %3985 = vmatpush2.bf16.msra.mxu0 0
    %3986 = vmatprep.subr.bf16.mxu0 0
    %3987 = vmatpush2.bf16.msra.mxu0 0
    %3988 = vmatprep.subr.bf16.mxu0 0
    %3989 = vmatpush2.bf16.msra.mxu0 0
    %3990 = vmatprep.subr.bf16.mxu0 0
    %3991 = vmatpush2.bf16.msra.mxu0 0
    %3992 = vmatprep.subr.bf16.mxu0 0
    %3993 = vmatpush2.bf16.msra.mxu0 0
    %3994 = vmatprep.subr.bf16.mxu0 0
    %3995 = vmatpush2.bf16.msra.mxu0 0
    %3996 = vmatprep.subr.bf16.mxu0 0
    %3997 = vmatpush2.bf16.msra.mxu0 0
    %3998 = vmatprep.mubr.bf16.mxu0 0
    %3999 = vmatmul.mubr.bf16.gmra.mxu0 %v3961
    %v4000 = vpop.f32.mrf.mxu0
    %v4001 = vadd.f32 0.0, %v4000
    %v4002 = vpop.f32.mrf.mxu0
    %v4003 = vpop.f32.mrf.mxu0
    %v4004 = vpop.f32.mrf.mxu0
    %4005 = vdwg.mxu0
    %v4006 = vcombine.low %v3679, %v3771
    %v4008 = vunpack.c.l.s4 1983009808
    %v4009 = vunpack.c.0.s8 %v4008
    %v4010 = vlaneseq
    %v4011 = vshrl.u32 %v4010, 7
    %v4012 = vsub.s32 %v4009, %v4011
    %v4013 = vrot.slane %v4006, %v4012
    %v4014 = vcombine.low %v3725, %v3817
    %v4016 = vunpack.c.l.s4 1983009808
    %v4017 = vunpack.c.0.s8 %v4016
    %v4018 = vlaneseq
    %v4019 = vshrl.u32 %v4018, 7
    %v4020 = vsub.s32 %v4017, %v4019
    %v4021 = vrot.slane %v4014, %v4020
    %v4022 = vcombine.low %v3863, %v3955
    %v4024 = vunpack.c.l.s4 1983009808
    %v4025 = vunpack.c.0.s8 %v4024
    %v4026 = vlaneseq
    %v4027 = vshrl.u32 %v4026, 7
    %v4028 = vsub.s32 %v4025, %v4027
    %v4029 = vrot.slane %v4022, %v4028
    %v4030 = vcombine.low %v3909, %v4001
    %v4032 = vunpack.c.l.s4 1983009808
    %v4033 = vunpack.c.0.s8 %v4032
    %v4034 = vlaneseq
    %v4035 = vshrl.u32 %v4034, 7
    %v4036 = vsub.s32 %v4033, %v4035
    %v4037 = vrot.slane %v4030, %v4036
    %v4038 = vcombine.low %v4013, %v4021
    %v4039 = vcombine.high %v4013, %v4021
    %v4041 = vunpack.c.l.s4 1934713408
    %v4042 = vunpack.c.0.s8 %v4041
    %v4043 = vlaneseq
    %v4044 = vshrl.u32 %v4043, 7
    %v4045 = vsub.s32 %v4042, %v4044
    %v4046 = vrot.slane %v4038, %v4045
    %v4048 = vunpack.c.l.s4 1934713408
    %v4049 = vunpack.c.0.s8 %v4048
    %v4050 = vlaneseq
    %v4051 = vshrl.u32 %v4050, 7
    %v4052 = vsub.s32 %v4049, %v4051
    %v4053 = vrot.slane %v4039, %v4052
    %v4054 = vcombine.low %v4029, %v4037
    %v4055 = vcombine.high %v4029, %v4037
    %v4057 = vunpack.c.l.s4 1934713408
    %v4058 = vunpack.c.0.s8 %v4057
    %v4059 = vlaneseq
    %v4060 = vshrl.u32 %v4059, 7
    %v4061 = vsub.s32 %v4058, %v4060
    %v4062 = vrot.slane %v4054, %v4061
    %v4064 = vunpack.c.l.s4 1934713408
    %v4065 = vunpack.c.0.s8 %v4064
    %v4066 = vlaneseq
    %v4067 = vshrl.u32 %v4066, 7
    %v4068 = vsub.s32 %v4065, %v4067
    %v4069 = vrot.slane %v4055, %v4068
    %v4070 = vcombine.low %v4046, %v4062
    %v4071 = vcombine.high %v4046, %v4062
    %v4072 = vcombine.low %v4053, %v4069
    %v4073 = vcombine.high %v4053, %v4069
    %4075 = vrot.lane.b32.xlu0 %v4071, 8
    %v4076 = vpop.permute.xlu0 %4075
    %4079 = vrot.lane.b32.xlu0 %v4072, 16
    %v4080 = vpop.permute.xlu0 %4079
    %4083 = vrot.lane.b32.xlu0 %v4073, 24
    %v4084 = vpop.permute.xlu0 %4083
    %v4086 = vsel %vm1265, %v4070, %v4076
    %v4087 = vsel %vm293, %v4086, %v4080
    %v4088 = vsel %vm2281, %v4087, %v4084
    %v4089 = vpack.c.bf16 %v4088, %v4088
    %v4094 = vunpack.c.l.b16 %v2448
    %v4095 = vunpack.c.l.b16 %v2449
    %v4096 = vunpack.c.l.b16 %v2450
    %v4097 = vunpack.c.l.b16 %v2451
    %v4098 = vpack.c.b16 %v4095, %v4094
    %v4099 = vpack.c.b16 %v4097, %v4096
    %v4103 = vsel %vm358, %v4089, 0
    %4105 = vmatprep.subr.bf16.mxu0 0
    %4106 = vmatpush1.bf16.msra.mxu0 0
    %4107 = vmatprep.subr.bf16.mxu0 0
    %4108 = vmatpush1.bf16.msra.mxu0 0
    %4109 = vmatprep.subr.bf16.mxu0 0
    %4110 = vmatpush1.bf16.msra.mxu0 0
    %4111 = vmatprep.subr.bf16.mxu0 0
    %4112 = vmatpush1.bf16.msra.mxu0 0
    %4113 = vmatprep.subr.bf16.mxu0 0
    %4114 = vmatpush1.bf16.msra.mxu0 0
    %4115 = vmatprep.subr.bf16.mxu0 0
    %4116 = vmatpush1.bf16.msra.mxu0 0
    %4117 = vmatprep.subr.bf16.mxu0 0
    %4118 = vmatpush1.bf16.msra.mxu0 %v4099
    %4119 = vmatprep.subr.bf16.mxu0 0
    %4120 = vmatpush1.bf16.msra.mxu0 %v4098
    %4121 = vmatprep.subr.bf16.mxu0 0
    %4122 = vmatpush2.bf16.msra.mxu0 0
    %4123 = vmatprep.subr.bf16.mxu0 0
    %4124 = vmatpush2.bf16.msra.mxu0 0
    %4125 = vmatprep.subr.bf16.mxu0 0
    %4126 = vmatpush2.bf16.msra.mxu0 0
    %4127 = vmatprep.subr.bf16.mxu0 0
    %4128 = vmatpush2.bf16.msra.mxu0 0
    %4129 = vmatprep.subr.bf16.mxu0 0
    %4130 = vmatpush2.bf16.msra.mxu0 0
    %4131 = vmatprep.subr.bf16.mxu0 0
    %4132 = vmatpush2.bf16.msra.mxu0 0
    %4133 = vmatprep.subr.bf16.mxu0 0
    %4134 = vmatpush2.bf16.msra.mxu0 0
    %4135 = vmatprep.subr.bf16.mxu0 0
    %4136 = vmatpush2.bf16.msra.mxu0 0
    %4137 = vmatprep.mubr.bf16.mxu0 0
    %4138 = vmatmul.mubr.bf16.gmra.mxu0 %v4103
    %v4139 = vpop.f32.mrf.mxu0
    %v4140 = vadd.f32 0.0, %v4139
    %v4141 = vpop.f32.mrf.mxu0
    %v4142 = vpop.f32.mrf.mxu0
    %v4143 = vpop.f32.mrf.mxu0
    %4144 = vdwg.mxu0
    %4146 = vrot.lane.b32.xlu0 %v4140, 96
    %v4147 = vpop.permute.xlu0 %4146
    %v4149 = vadd.f32 %v2835, %v4147
    %v4150 = vpack.c.bf16 %v2670, %v2670
    %v4152 = vsel %vm2646, %v4150, 0
    %v4155 = vsel %vm2675, %v2457, 0
    %4157 = vmatprep.subr.bf16.mxu0 0
    %4158 = vmatpush1.bf16.msra.mxu0 0
    %4159 = vmatprep.subr.bf16.mxu0 0
    %4160 = vmatpush1.bf16.msra.mxu0 0
    %4161 = vmatprep.subr.bf16.mxu0 0
    %4162 = vmatpush1.bf16.msra.mxu0 0
    %4163 = vmatprep.subr.bf16.mxu0 0
    %4164 = vmatpush1.bf16.msra.mxu0 0
    %4165 = vmatprep.subr.bf16.mxu0 0
    %4166 = vmatpush1.bf16.msra.mxu0 0
    %4167 = vmatprep.subr.bf16.mxu0 0
    %4168 = vmatpush1.bf16.msra.mxu0 0
    %4169 = vmatprep.subr.bf16.mxu0 0
    %4170 = vmatpush1.bf16.msra.mxu0 0
    %4171 = vmatprep.subr.bf16.mxu0 0
    %4172 = vmatpush1.bf16.msra.mxu0 %v4155
    %4173 = vmatprep.subr.bf16.mxu0 0
    %4174 = vmatpush2.bf16.msra.mxu0 0
    %4175 = vmatprep.subr.bf16.mxu0 0
    %4176 = vmatpush2.bf16.msra.mxu0 0
    %4177 = vmatprep.subr.bf16.mxu0 0
    %4178 = vmatpush2.bf16.msra.mxu0 0
    %4179 = vmatprep.subr.bf16.mxu0 0
    %4180 = vmatpush2.bf16.msra.mxu0 0
    %4181 = vmatprep.subr.bf16.mxu0 0
    %4182 = vmatpush2.bf16.msra.mxu0 0
    %4183 = vmatprep.subr.bf16.mxu0 0
    %4184 = vmatpush2.bf16.msra.mxu0 0
    %4185 = vmatprep.subr.bf16.mxu0 0
    %4186 = vmatpush2.bf16.msra.mxu0 0
    %4187 = vmatprep.subr.bf16.mxu0 0
    %4188 = vmatpush2.bf16.msra.mxu0 0
    %4189 = vmatprep.mubr.bf16.mxu0 0
    %4190 = vmatmul.mubr.bf16.gmra.mxu0 %v4152
    %v4191 = vpop.f32.mrf.mxu0
    %v4192 = vadd.f32 0.0, %v4191
    %v4193 = vpop.f32.mrf.mxu0
    %v4194 = vpop.f32.mrf.mxu0
    %v4195 = vpop.f32.mrf.mxu0
    %4196 = vdwg.mxu0
    %4198 = vrot.lane.b32.xlu0 %v4149, 32
    %v4199 = vpop.permute.xlu0 %4198
    %v4201 = vmul.f32 %v4192, %v4199
    %v4202 = vsub.f32 1.0, %v4192
    %v4203 = vmul.f32 %v4202, %v2459
    %v4204 = vadd.f32 %v4201, %v4203
    %4206 = vrot.lane.b32.xlu0 %v2829, 96
    %v4207 = vpop.permute.xlu0 %4206
    %v4209 = vmul.f32 %v4192, %v4207
    %v4210 = vmul.f32 %v4202, %v2460
    %v4211 = vadd.f32 %v4209, %v4210
    %4212 = vst.msk [vmem:[#allocation4] sm:$0xff] %vm358, %v4204
    %4213 = vst.msk [vmem:[#allocation5] sm:$0xff] %vm358, %v4211
    // Predicated region
    $region142: #{tpu_custom_call.1} parent=1 // pred_check
      %p4214 = pneg %p220
    $region143: #{tpu_custom_call.1} parent=1 // pred_check_branch
      %4216 = sbr.rel (%p4214) target = $region145
    $region144: #{tpu_custom_call.1} parent=1 // pred_region
      %v4217 = vld [vmem:[#allocation2] sm:$0xff]
      %v4218 = vld [vmem:[#allocation3] sm:$0xff]
      %v4219 = vld [vmem:[#allocation4] sm:$0xff]
      %v4220 = vld [vmem:[#allocation5] sm:$0xff]
      %4222 = vrot.lane.b32.xlu0 %v4218, 32
      %v4223 = vpop.permute.xlu0 %4222
      %4226 = vrot.lane.b32.xlu0 %v4219, 64
      %v4227 = vpop.permute.xlu0 %4226
      %4230 = vrot.lane.b32.xlu0 %v4220, 96
      %v4231 = vpop.permute.xlu0 %4230
      %v4233 = vsel %vm358, %v4217, %v4223
      %v4234 = vsel %vm429, %v4233, %v4227
      %v4235 = vsel %vm2755, %v4234, %v4231
      %4236 = vst [vmem:[#allocation26] sm:$0xff] %v4235
    $region145: #{tpu_custom_call.1} parent=1 // pred_fallthru
      _
    // Predicated region
    $region146: #{tpu_custom_call.1} parent=1 // pred_check
      _
    $region147: #{tpu_custom_call.1} parent=1 // pred_check_branch
      %4238 = sbr.rel (0) target = $region149
    $region148: #{tpu_custom_call.1} parent=1 // pred_region
      %s4240 = ssub.s32 128, 128
      %4241 = vsyncadd [#allocation8], %s4240
      %s4243 = sshll.u32 [#allocation26], 4
      %s4244 = int_to_ptr.vmem [resolvable:$true] %s4243
      %4246 = dma.vmem_to_hbm [thread:$0]  %s4244, 128, %s22, [#allocation8]
    $region149: #{tpu_custom_call.1} parent=1 // pred_fallthru
      _
    // Predicated region
    $region150: #{tpu_custom_call.1} parent=1 // pred_check
      _
    $region151: #{tpu_custom_call.1} parent=1 // pred_check_branch
      %4248 = sbr.rel (0) target = $region153
    $region152: #{tpu_custom_call.1} parent=1 // pred_region
      %4249 = dma.done [#allocation8], 128
    $region153: #{tpu_custom_call.1} parent=1 // pred_fallthru
      _
    %4250 = vsyncpa [#allocation7], 1
    %4251 = vsyncpa [#allocation10], 1
    %4252 = vsyncpa [#allocation13], 1
    %4253 = vsyncpa [#allocation16], 1
    %4254 = vsyncpa [#allocation19], 1
    %4255 = vsyncpa [#allocation22], 1
    %4256 = vsyncpa [#allocation25], 1
    %4257 = vsyncpa [#allocation8], 1

</llo_original>
